<compile_context>
chip_gen: v7x
topology: tpu7x:2x2x1
jax: 0.10.0
libtpu: 0.0.40
codegen_flags: <defaults>
</compile_context>

<pallas_src>
import math

import jax
import jax.numpy as jnp
from jax.experimental import pallas as pl
from jax.experimental.pallas import tpu as pltpu

D_MODEL = 100                 # real feature width
DP = 128                      # padded feature width (lane-dense)
N_HEAD = 4
HEAD_DIM = D_MODEL // N_HEAD  # 25 (real)
HDP = 32                      # padded head dim
D_FF = 2048                   # nn.TransformerEncoderLayer default
FF_CHUNK = 512                # D_FF processed in 4 chunks
LN_EPS = 1e-5                 # layer_norm_eps default
NUM_LAYERS = 2
MAX_LEN = 200


# ------------------------------ fused kernel --------------------------------

def make_fused_layer_kernel(s_pad: int, s_real: int):
    """Kernel body; one grid step == one transformer encoder layer."""
    f32 = jnp.float32
    bf16 = jnp.bfloat16
    sqrt_d = math.sqrt(D_MODEL)
    inv_d = 1.0 / D_MODEL
    scale = 1.0 / math.sqrt(HEAD_DIM)

    def kernel(x_ref, pe_ref,
               wqkv_ref, wo_ref, ff1w_ref, ff2w_ref, ff1b_ref, vecs_ref,
               hw1_ref, hvec_ref,
               o_ref, h_ref):
        # TODO(synk): dropout inside the torch encoder layer is treated as
        # identity (eval semantics); training-mode dropout is not reproduced.
        l = pl.program_id(0)

        lane = jax.lax.broadcasted_iota(jnp.int32, (1, DP), 1)
        feat_mask = (lane < D_MODEL).astype(f32)     # real vs zero-pad lanes
        key_idx = jax.lax.broadcasted_iota(jnp.int32, (1, s_pad), 1)
        key_valid = key_idx < s_real                  # real vs pad key rows

        # ---- prep (first grid step only): x * sqrt(d) + positional encoding
        @pl.when(l == 0)
        def _():
            h_ref[...] = x_ref[...] * sqrt_d + pe_ref[...]
            o_ref[...] = jnp.zeros_like(o_ref)

        def layer_norm(y, w, b):
            # pad lanes of y are exactly 0, so sums over 128 lanes equal the
            # sums over the 100 real features; feat_mask keeps pads out of var.
            mu = jnp.sum(y, axis=-1, keepdims=True) * inv_d
            c = (y - mu) * feat_mask
            var = jnp.sum(c * c, axis=-1, keepdims=True) * inv_d
            return c * jax.lax.rsqrt(var + LN_EPS) * w + b

        h = h_ref[...]                                # (S, 128) f32
        vl = vecs_ref[0]                              # (9, 128) f32 bias/LN slab

        # ---- multi-head self attention (fused QKV projection, bf16 weights) -
        h_bf = h.astype(bf16)
        qkv = jnp.dot(h_bf, wqkv_ref[0], preferred_element_type=f32)  # (S,384)
        q = qkv[:, 0:DP] + vl[0:1, :]
        k = qkv[:, DP:2 * DP] + vl[1:2, :]
        v = qkv[:, 2 * DP:3 * DP] + vl[2:3, :]

        head_outs = []
        for hd in range(N_HEAD):                      # static unroll, 4 heads
            sl = slice(hd * HDP, (hd + 1) * HDP)
            qh, kh, vh = q[:, sl], k[:, sl], v[:, sl]
            s = jax.lax.dot_general(
                qh, kh, (((1,), (1,)), ((), ())),
                preferred_element_type=f32) * scale   # (S, S)
            s = jnp.where(key_valid, s, -1e30)        # mask padded keys
            s = s - jnp.max(s, axis=-1, keepdims=True)
            p = jnp.exp(s)
            p = p * pl.reciprocal(jnp.sum(p, axis=-1, keepdims=True),
                                  approx=True)
            head_outs.append(jnp.dot(p, vh, preferred_element_type=f32))
        o_heads = jnp.concatenate(head_outs, axis=1)  # (S, 128) head-major
        attn = jnp.dot(o_heads.astype(bf16), wo_ref[0],
                       preferred_element_type=f32) + vl[3:4, :]

        # ---- add & layer-norm 1 ---------------------------------------------
        y = layer_norm(h + attn, vl[4:5, :], vl[5:6, :])

        # ---- feed-forward: linear -> relu -> linear, chunked over D_FF ------
        y_bf = y.astype(bf16)
        h2 = jnp.zeros((s_pad, DP), f32)
        for c in range(D_FF // FF_CHUNK):             # static unroll, 4 chunks
            c0 = c * FF_CHUNK
            w1c = ff1w_ref[0, :, c0:c0 + FF_CHUNK]    # (128, 512) bf16
            b1c = ff1b_ref[0, :, c0:c0 + FF_CHUNK]    # (1, 512)   f32
            w2c = ff2w_ref[0, c0:c0 + FF_CHUNK, :]    # (512, 128) bf16
            h1c = jnp.dot(y_bf, w1c, preferred_element_type=f32) + b1c
            h1c = jnp.maximum(h1c, 0.0)
            h2 = h2 + jnp.dot(h1c.astype(bf16), w2c, preferred_element_type=f32)
        h2 = h2 + vl[8:9, :]

        # ---- add & layer-norm 2 (carried to next grid step via scratch) -----
        h_ref[...] = layer_norm(y + h2, vl[6:7, :], vl[7:8, :])

        # ---- classification head on the class-token row (last step only) ----
        @pl.when(l == pl.num_programs(0) - 1)
        def _():
            cls = h_ref[0:1, :]                       # (1, 128)
            hv = hvec_ref[...]                        # (3, 128)
            t = jnp.dot(cls.astype(bf16), hw1_ref[...],
                        preferred_element_type=f32) + hv[0:1, :]
            t = jnp.where(t >= 0.0, t, 0.01 * t)      # LeakyReLU(0.01)
            yv = jnp.sum(t * hv[1:2, :], axis=-1, keepdims=True) + hv[2:3, 0:1]
            o_ref[...] = 1.0 / (1.0 + jnp.exp(-yv))   # sigmoid, (1, 1)

    return kernel


# -------------------------- parameters / packing -----------------------------

def make_positional_encoding():
    position = jnp.arange(MAX_LEN, dtype=jnp.float32)[:, None]
    div_term = jnp.exp(
        jnp.arange(0, D_MODEL, 2, dtype=jnp.float32) * (-math.log(10000.0) / D_MODEL))
    pe = jnp.zeros((MAX_LEN, D_MODEL), jnp.float32)
    pe = pe.at[:, 0::2].set(jnp.sin(position * div_term))
    pe = pe.at[:, 1::2].set(jnp.cos(position * div_term))
    return pe                                                    # (200, 100)


def _uniform(key, shape, bound):
    return jax.random.uniform(key, shape, jnp.float32, -bound, bound)


def _pad_row(v, width=DP):
    v = jnp.asarray(v, jnp.float32)
    return jnp.zeros((width,), jnp.float32).at[:v.shape[0]].set(v)


def _pad_qkv_block(w):
    """w: (100,100) torch (out,in) -> (128,128) (in_pad, head-major out_pad)."""
    wt = w.T                                                     # (in, out)
    blk = jnp.zeros((DP, DP), jnp.float32)
    for h in range(N_HEAD):
        blk = blk.at[:D_MODEL, h * HDP:h * HDP + HEAD_DIM].set(
            wt[:, h * HEAD_DIM:(h + 1) * HEAD_DIM])
    return blk


def _pad_bias_heads(b):
    """(100,) -> (128,) head-major padded."""
    out = jnp.zeros((DP,), jnp.float32)
    for h in range(N_HEAD):
        out = out.at[h * HDP:h * HDP + HEAD_DIM].set(b[h * HEAD_DIM:(h + 1) * HEAD_DIM])
    return out


def _pad_out_proj(w):
    """out_proj_w: (100,100) torch (out,in) -> (128,128) (head-major in, out)."""
    wt = w.T                                                     # (concat-head in, out)
    blk = jnp.zeros((DP, DP), jnp.float32)
    for h in range(N_HEAD):
        blk = blk.at[h * HDP:h * HDP + HEAD_DIM, :D_MODEL].set(
            wt[h * HEAD_DIM:(h + 1) * HEAD_DIM, :])
    return blk


def init_params(key):
    ks = jax.random.split(key, NUM_LAYERS + 3)
    class_token = jax.random.normal(ks[0], (1, 1, D_MODEL), jnp.float32)
    bound_d = 1.0 / math.sqrt(D_MODEL)

    wqkv_l, wo_l, ff1w_l, ff2w_l, ff1b_l, vecs_l = [], [], [], [], [], []
    for i in range(NUM_LAYERS):
        lk = jax.random.split(ks[1 + i], 6)
        in_proj_w = _uniform(lk[0], (3 * D_MODEL, D_MODEL), bound_d)
        in_proj_b = jnp.zeros((3 * D_MODEL,), jnp.float32)
        out_proj_w = _uniform(lk[1], (D_MODEL, D_MODEL), bound_d)
        out_proj_b = jnp.zeros((D_MODEL,), jnp.float32)
        f1w = _uniform(lk[2], (D_FF, D_MODEL), bound_d)
        f1b = _uniform(lk[3], (D_FF,), bound_d)
        bound_f = 1.0 / math.sqrt(D_FF)
        f2w = _uniform(lk[4], (D_MODEL, D_FF), bound_f)
        f2b = _uniform(lk[5], (D_MODEL,), bound_f)
        ln1w = jnp.ones((D_MODEL,), jnp.float32)
        ln1b = jnp.zeros((D_MODEL,), jnp.float32)
        ln2w = jnp.ones((D_MODEL,), jnp.float32)
        ln2b = jnp.zeros((D_MODEL,), jnp.float32)

        qw, kw, vw = (in_proj_w[:D_MODEL], in_proj_w[D_MODEL:2 * D_MODEL],
                      in_proj_w[2 * D_MODEL:])
        qb, kb, vb = (in_proj_b[:D_MODEL], in_proj_b[D_MODEL:2 * D_MODEL],
                      in_proj_b[2 * D_MODEL:])

        wqkv_l.append(jnp.concatenate(
            [_pad_qkv_block(qw), _pad_qkv_block(kw), _pad_qkv_block(vw)], axis=1))
        wo_l.append(_pad_out_proj(out_proj_w))
        ff1w_l.append(jnp.zeros((DP, D_FF), jnp.float32).at[:D_MODEL, :].set(f1w.T))
        ff2w_l.append(jnp.zeros((D_FF, DP), jnp.float32).at[:, :D_MODEL].set(f2w.T))
        ff1b_l.append(f1b[None, :])
        vecs_l.append(jnp.stack([
            _pad_bias_heads(qb), _pad_bias_heads(kb), _pad_bias_heads(vb),
            _pad_row(out_proj_b),
            _pad_row(ln1w), _pad_row(ln1b),
            _pad_row(ln2w), _pad_row(ln2b),
            _pad_row(f2b)]))                                     # (9, 128)

    fc1_w = _uniform(ks[NUM_LAYERS + 1], (10, D_MODEL), bound_d)
    fc1_b = jnp.zeros((10,), jnp.float32)
    bound_10 = 1.0 / math.sqrt(10)
    fc2_w = _uniform(ks[NUM_LAYERS + 2], (1, 10), bound_10)
    fc2_b = jnp.zeros((1,), jnp.float32)

    hw1 = jnp.zeros((DP, DP), jnp.float32).at[:D_MODEL, :10].set(fc1_w.T)
    hvec = jnp.stack([_pad_row(fc1_b), _pad_row(fc2_w[0]), _pad_row(fc2_b)])

    bf16 = jnp.bfloat16
    return dict(
        class_token=class_token,
        pe_pad=jnp.pad(make_positional_encoding(), ((0, 0), (0, DP - D_MODEL))),
        wqkv=jnp.stack(wqkv_l).astype(bf16),    # (L, 128, 384) bf16
        wo=jnp.stack(wo_l).astype(bf16),        # (L, 128, 128) bf16
        ff1w=jnp.stack(ff1w_l).astype(bf16),    # (L, 128, 2048) bf16
        ff2w=jnp.stack(ff2w_l).astype(bf16),    # (L, 2048, 128) bf16
        ff1b=jnp.stack(ff1b_l),                 # (L, 1, 2048)   f32
        vecs=jnp.stack(vecs_l),                 # (L, 9, 128)    f32
        hw1=hw1.astype(bf16),                   # (128, 128)     bf16
        hvec=hvec,                              # (3, 128)       f32
    )


# ------------------------------ forward glue ---------------------------------

@jax.jit
def model_forward(x, params):
    # x: (1, S, 100) -- batch must be 1 (torch.cat with a (1,1,100) token)
    xc = jnp.concatenate([params["class_token"], x], axis=1)[0]  # (S+1, 100)
    s1 = xc.shape[0]
    assert s1 <= MAX_LEN, "sequence (incl. class token) exceeds MAX_LEN=200"
    s_pad = ((s1 + 7) // 8) * 8                                  # sublane align

    xc_pad = jnp.zeros((s_pad, DP), jnp.float32).at[:s1, :D_MODEL].set(xc)
    pe_pad = params["pe_pad"][:s_pad]                            # (s_pad, 128)

    kernel = make_fused_layer_kernel(s_pad, s1)

    grid_spec = pltpu.PrefetchScalarGridSpec(
        num_scalar_prefetch=0,
        grid=(NUM_LAYERS,),
        in_specs=[
            pl.BlockSpec((s_pad, DP), lambda l: (0, 0)),         # x (fetch once)
            pl.BlockSpec((s_pad, DP), lambda l: (0, 0)),         # pe (fetch once)
            pl.BlockSpec((1, DP, 3 * DP), lambda l: (l, 0, 0)),  # wqkv / layer
            pl.BlockSpec((1, DP, DP), lambda l: (l, 0, 0)),      # wo   / layer
            pl.BlockSpec((1, DP, D_FF), lambda l: (l, 0, 0)),    # ff1w / layer
            pl.BlockSpec((1, D_FF, DP), lambda l: (l, 0, 0)),    # ff2w / layer
            pl.BlockSpec((1, 1, D_FF), lambda l: (l, 0, 0)),     # ff1b / layer
            pl.BlockSpec((1, 9, DP), lambda l: (l, 0, 0)),       # bias/LN slab
            pl.BlockSpec((DP, DP), lambda l: (0, 0)),            # head fc1 W
            pl.BlockSpec((3, DP), lambda l: (0, 0)),             # head vec slab
        ],
        out_specs=pl.BlockSpec((1, 1), lambda l: (0, 0)),
        scratch_shapes=[pltpu.VMEM((s_pad, DP), jnp.float32)],   # persistent h
    )

    # Advisory cost hint for XLA scheduling around the custom call.
    flops_per_layer = (2 * s_pad * DP * 3 * DP
                       + 4 * N_HEAD * s_pad * s_pad * HDP
                       + 2 * s_pad * DP * DP
                       + 4 * s_pad * DP * D_FF)
    flops = NUM_LAYERS * flops_per_layer + 2 * DP * DP + 2 * DP
    transcendentals = NUM_LAYERS * (N_HEAD * s_pad * s_pad + 2 * s_pad) + 1
    operands = (xc_pad, pe_pad, params["wqkv"], params["wo"], params["ff1w"],
                params["ff2w"], params["ff1b"], params["vecs"],
                params["hw1"], params["hvec"])
    bytes_accessed = sum(int(a.size) * a.dtype.itemsize for a in operands) + 4

    out = pl.pallas_call(
        kernel,
        out_shape=jax.ShapeDtypeStruct((1, 1), jnp.float32),
        grid_spec=grid_spec,
        compiler_params=pltpu.CompilerParams(
            dimension_semantics=("arbitrary",)),
        cost_estimate=pl.CostEstimate(
            flops=int(flops),
            transcendentals=int(transcendentals),
            bytes_accessed=int(bytes_accessed)),
    )(*operands)
    # torch: squeeze (1,1,100)->(100,), fc1->(10,), fc2->(1,), sigmoid->(1,)
    return out.reshape((1,))


if __name__ == "__main__":
    key = jax.random.PRNGKey(0)
    pkey, xkey = jax.random.split(key)
    params = init_params(pkey)

    S = 8
    x = jax.random.normal(xkey, (1, S, D_MODEL), dtype=jnp.float32)

    out = model_forward(x, params)
    jax.block_until_ready(out)
    assert out.shape == (1,)
    assert bool(jnp.all(jnp.isfinite(out)))
    print("KERNEL_OK")
</pallas_src>

<mosaic_0001>
module attributes {stable_mosaic.version = 11 : i64} {
  func.func @kernel(%arg0: i32, %arg1: memref<16x128xf32, #tpu.memory_space<vmem>>, %arg2: memref<16x128xf32, #tpu.memory_space<vmem>>, %arg3: memref<1x128x384xbf16, #tpu.memory_space<vmem>>, %arg4: memref<1x128x128xbf16, #tpu.memory_space<vmem>>, %arg5: memref<1x128x2048xbf16, #tpu.memory_space<vmem>>, %arg6: memref<1x2048x128xbf16, #tpu.memory_space<vmem>>, %arg7: memref<1x1x2048xf32, #tpu.memory_space<vmem>>, %arg8: memref<1x9x128xf32, #tpu.memory_space<vmem>>, %arg9: memref<128x128xbf16, #tpu.memory_space<vmem>>, %arg10: memref<3x128xf32, #tpu.memory_space<vmem>>, %arg11: memref<1x1xf32, #tpu.memory_space<vmem>>, %arg12: memref<16x128xf32, #tpu.memory_space<vmem>>) attributes {dimension_semantics = [#tpu.dimension_semantics<arbitrary>], iteration_bounds = array<i64: 2>, scalar_prefetch = 0 : i64, scratch_operands = 1 : i64, tpu.core_type = #tpu.core_type<tc>, window_params = [{pipeline_mode = #tpu.pipeline_mode<synchronous>, transform_indices = @transform_0, window_bounds = array<i64: 16, 128>}, {pipeline_mode = #tpu.pipeline_mode<synchronous>, transform_indices = @transform_1, window_bounds = array<i64: 16, 128>}, {transform_indices = @transform_2, window_bounds = array<i64: 1, 128, 384>}, {transform_indices = @transform_3, window_bounds = array<i64: 1, 128, 128>}, {transform_indices = @transform_4, window_bounds = array<i64: 1, 128, 2048>}, {transform_indices = @transform_5, window_bounds = array<i64: 1, 2048, 128>}, {transform_indices = @transform_6, window_bounds = array<i64: 1, 1, 2048>}, {transform_indices = @transform_7, window_bounds = array<i64: 1, 9, 128>}, {pipeline_mode = #tpu.pipeline_mode<synchronous>, transform_indices = @transform_8, window_bounds = array<i64: 128, 128>}, {pipeline_mode = #tpu.pipeline_mode<synchronous>, transform_indices = @transform_9, window_bounds = array<i64: 3, 128>}, {pipeline_mode = #tpu.pipeline_mode<synchronous>, transform_indices = @transform_10, window_bounds = array<i64: 1, 1>}]} {
    %0 = tpu.iota {dimensions = array<i32: 1>} : vector<1x128xi32>
    %c100_i32 = arith.constant 100 : i32
    %1 = vector.broadcast %c100_i32 : i32 to vector<1x128xi32>
    %2 = arith.cmpi slt, %0, %1 : vector<1x128xi32>
    %3 = arith.extui %2 : vector<1x128xi1> to vector<1x128xi32>
    %4 = arith.sitofp %3 : vector<1x128xi32> to vector<1x128xf32>
    %5 = tpu.iota {dimensions = array<i32: 1>} : vector<1x16xi32>
    %c9_i32 = arith.constant 9 : i32
    %6 = vector.broadcast %c9_i32 : i32 to vector<1x16xi32>
    %7 = arith.cmpi slt, %5, %6 : vector<1x16xi32>
    %c0_i32 = arith.constant 0 : i32
    %8 = arith.cmpi eq, %arg0, %c0_i32 : i32
    %9 = arith.extui %8 : i1 to i32
    %c0_i32_0 = arith.constant 0 : i32
    %10 = arith.cmpi ne, %9, %c0_i32_0 : i32
    scf.if %10 {
      %c0_95 = arith.constant 0 : index
      %c0_96 = arith.constant 0 : index
      %237 = vector.load %arg1[%c0_95, %c0_96] : memref<16x128xf32, #tpu.memory_space<vmem>>, vector<16x128xf32>
      %cst_97 = arith.constant 1.000000e+01 : f32
      %238 = vector.broadcast %cst_97 : f32 to vector<16x128xf32>
      %239 = arith.mulf %237, %238 : vector<16x128xf32>
      %c0_98 = arith.constant 0 : index
      %c0_99 = arith.constant 0 : index
      %240 = vector.load %arg2[%c0_98, %c0_99] : memref<16x128xf32, #tpu.memory_space<vmem>>, vector<16x128xf32>
      %241 = arith.addf %239, %240 : vector<16x128xf32>
      %c0_100 = arith.constant 0 : index
      %c0_101 = arith.constant 0 : index
      %242 = vector.load %arg12[%c0_100, %c0_101] : memref<16x128xf32, #tpu.memory_space<vmem>>, vector<16x128xf32>
      tpu.vector_store %arg12[%c0_100, %c0_101], %241 {strides = array<i32>} : memref<16x128xf32, #tpu.memory_space<vmem>>, vector<16x128xf32>,
      %cst_102 = arith.constant 0.000000e+00 : f32
      %243 = vector.broadcast %cst_102 : f32 to vector<1x1xf32>
      %c0_103 = arith.constant 0 : index
      %c0_104 = arith.constant 0 : index
      %244 = vector.load %arg11[%c0_103, %c0_104] : memref<1x1xf32, #tpu.memory_space<vmem>>, vector<1x1xf32>
      tpu.vector_store %arg11[%c0_103, %c0_104], %243 {strides = array<i32>} : memref<1x1xf32, #tpu.memory_space<vmem>>, vector<1x1xf32>,
    } else {
    }
    %c0 = arith.constant 0 : index
    %c0_1 = arith.constant 0 : index
    %11 = vector.load %arg12[%c0, %c0_1] : memref<16x128xf32, #tpu.memory_space<vmem>>, vector<16x128xf32>
    %c0_2 = arith.constant 0 : index
    %c0_3 = arith.constant 0 : index
    %c0_4 = arith.constant 0 : index
    %12 = vector.load %arg8[%c0_2, %c0_3, %c0_4] : memref<1x9x128xf32, #tpu.memory_space<vmem>>, vector<1x9x128xf32>
    %13 = vector.shape_cast %12 : vector<1x9x128xf32> to vector<9x128xf32>
    %14 = arith.truncf %11 : vector<16x128xf32> to vector<16x128xbf16>
    %c0_5 = arith.constant 0 : index
    %c0_6 = arith.constant 0 : index
    %c0_7 = arith.constant 0 : index
    %15 = vector.load %arg3[%c0_5, %c0_6, %c0_7] : memref<1x128x384xbf16, #tpu.memory_space<vmem>>, vector<1x128x384xbf16>
    %16 = vector.shape_cast %15 : vector<1x128x384xbf16> to vector<128x384xbf16>
    %cst = arith.constant dense<0.000000e+00> : vector<16x384xf32>
    %17 = tpu.matmul %14, %16, %cst {dimension_numbers = #tpu.dot_dimension_numbers<[1], [0], [0], [1], [0, 0, 1, 1], [], []>} : vector<16x128xbf16>, vector<128x384xbf16>, vector<16x384xf32> -> vector<16x384xf32>
    %18 = vector.extract_strided_slice %17 {offsets = [0, 0], sizes = [16, 128], strides = [1, 1]} : vector<16x384xf32> to vector<16x128xf32>
    %19 = vector.extract_strided_slice %13 {offsets = [0, 0], sizes = [1, 128], strides = [1, 1]} : vector<9x128xf32> to vector<1x128xf32>
    %20 = vector.broadcast %19 : vector<1x128xf32> to vector<16x128xf32>
    %21 = arith.addf %18, %20 : vector<16x128xf32>
    %22 = vector.extract_strided_slice %17 {offsets = [0, 128], sizes = [16, 128], strides = [1, 1]} : vector<16x384xf32> to vector<16x128xf32>
    %23 = vector.extract_strided_slice %13 {offsets = [1, 0], sizes = [1, 128], strides = [1, 1]} : vector<9x128xf32> to vector<1x128xf32>
    %24 = vector.broadcast %23 : vector<1x128xf32> to vector<16x128xf32>
    %25 = arith.addf %22, %24 : vector<16x128xf32>
    %26 = vector.extract_strided_slice %17 {offsets = [0, 256], sizes = [16, 128], strides = [1, 1]} : vector<16x384xf32> to vector<16x128xf32>
    %27 = vector.extract_strided_slice %13 {offsets = [2, 0], sizes = [1, 128], strides = [1, 1]} : vector<9x128xf32> to vector<1x128xf32>
    %28 = vector.broadcast %27 : vector<1x128xf32> to vector<16x128xf32>
    %29 = arith.addf %26, %28 : vector<16x128xf32>
    %30 = vector.extract_strided_slice %21 {offsets = [0, 0], sizes = [16, 32], strides = [1, 1]} : vector<16x128xf32> to vector<16x32xf32>
    %31 = vector.extract_strided_slice %25 {offsets = [0, 0], sizes = [16, 32], strides = [1, 1]} : vector<16x128xf32> to vector<16x32xf32>
    %32 = vector.extract_strided_slice %29 {offsets = [0, 0], sizes = [16, 32], strides = [1, 1]} : vector<16x128xf32> to vector<16x32xf32>
    %cst_8 = arith.constant dense<0.000000e+00> : vector<16x16xf32>
    %33 = tpu.matmul %30, %31, %cst_8 {dimension_numbers = #tpu.dot_dimension_numbers<[1], [1], [0], [0], [0, 0, 1, 0], [], []>} : vector<16x32xf32>, vector<16x32xf32>, vector<16x16xf32> -> vector<16x16xf32>
    %cst_9 = arith.constant 2.000000e-01 : f32
    %34 = vector.broadcast %cst_9 : f32 to vector<16x16xf32>
    %35 = arith.mulf %33, %34 : vector<16x16xf32>
    %cst_10 = arith.constant -1.000000e+30 : f32
    %36 = vector.shape_cast %7 : vector<1x16xi1> to vector<1x16xi1>
    %37 = vector.broadcast %36 : vector<1x16xi1> to vector<16x16xi1>
    %38 = vector.broadcast %cst_10 : f32 to vector<16x16xf32>
    %39 = arith.select %37, %35, %38 : vector<16x16xi1>, vector<16x16xf32>
    %cst_11 = arith.constant dense<0xFF800000> : vector<16xf32>
    %40 = vector.multi_reduction <maximumf>, %39, %cst_11 [1] : vector<16x16xf32> to vector<16xf32>
    %41 = vector.shape_cast %40 : vector<16xf32> to vector<16x1xf32>
    %42 = vector.broadcast %41 : vector<16x1xf32> to vector<16x16xf32>
    %43 = arith.subf %39, %42 : vector<16x16xf32>
    %44 = math.exp %43 : vector<16x16xf32>
    %cst_12 = arith.constant dense<0.000000e+00> : vector<16xf32>
    %45 = vector.multi_reduction <add>, %44, %cst_12 [1] : vector<16x16xf32> to vector<16xf32>
    %46 = vector.shape_cast %45 : vector<16xf32> to vector<16x1xf32>
    %47 = tpu.reciprocal %46 {approx = true} : vector<16x1xf32> -> vector<16x1xf32>
    %48 = vector.broadcast %47 : vector<16x1xf32> to vector<16x16xf32>
    %49 = arith.mulf %44, %48 : vector<16x16xf32>
    %cst_13 = arith.constant dense<0.000000e+00> : vector<16x32xf32>
    %50 = tpu.matmul %49, %32, %cst_13 {dimension_numbers = #tpu.dot_dimension_numbers<[1], [0], [0], [1], [0, 0, 1, 1], [], []>} : vector<16x16xf32>, vector<16x32xf32>, vector<16x32xf32> -> vector<16x32xf32>
    %51 = vector.extract_strided_slice %21 {offsets = [0, 32], sizes = [16, 32], strides = [1, 1]} : vector<16x128xf32> to vector<16x32xf32>
    %52 = vector.extract_strided_slice %25 {offsets = [0, 32], sizes = [16, 32], strides = [1, 1]} : vector<16x128xf32> to vector<16x32xf32>
    %53 = vector.extract_strided_slice %29 {offsets = [0, 32], sizes = [16, 32], strides = [1, 1]} : vector<16x128xf32> to vector<16x32xf32>
    %cst_14 = arith.constant dense<0.000000e+00> : vector<16x16xf32>
    %54 = tpu.matmul %51, %52, %cst_14 {dimension_numbers = #tpu.dot_dimension_numbers<[1], [1], [0], [0], [0, 0, 1, 0], [], []>} : vector<16x32xf32>, vector<16x32xf32>, vector<16x16xf32> -> vector<16x16xf32>
    %cst_15 = arith.constant 2.000000e-01 : f32
    %55 = vector.broadcast %cst_15 : f32 to vector<16x16xf32>
    %56 = arith.mulf %54, %55 : vector<16x16xf32>
    %cst_16 = arith.constant -1.000000e+30 : f32
    %57 = vector.shape_cast %7 : vector<1x16xi1> to vector<1x16xi1>
    %58 = vector.broadcast %57 : vector<1x16xi1> to vector<16x16xi1>
    %59 = vector.broadcast %cst_16 : f32 to vector<16x16xf32>
    %60 = arith.select %58, %56, %59 : vector<16x16xi1>, vector<16x16xf32>
    %cst_17 = arith.constant dense<0xFF800000> : vector<16xf32>
    %61 = vector.multi_reduction <maximumf>, %60, %cst_17 [1] : vector<16x16xf32> to vector<16xf32>
    %62 = vector.shape_cast %61 : vector<16xf32> to vector<16x1xf32>
    %63 = vector.broadcast %62 : vector<16x1xf32> to vector<16x16xf32>
    %64 = arith.subf %60, %63 : vector<16x16xf32>
    %65 = math.exp %64 : vector<16x16xf32>
    %cst_18 = arith.constant dense<0.000000e+00> : vector<16xf32>
    %66 = vector.multi_reduction <add>, %65, %cst_18 [1] : vector<16x16xf32> to vector<16xf32>
    %67 = vector.shape_cast %66 : vector<16xf32> to vector<16x1xf32>
    %68 = tpu.reciprocal %67 {approx = true} : vector<16x1xf32> -> vector<16x1xf32>
    %69 = vector.broadcast %68 : vector<16x1xf32> to vector<16x16xf32>
    %70 = arith.mulf %65, %69 : vector<16x16xf32>
    %cst_19 = arith.constant dense<0.000000e+00> : vector<16x32xf32>
    %71 = tpu.matmul %70, %53, %cst_19 {dimension_numbers = #tpu.dot_dimension_numbers<[1], [0], [0], [1], [0, 0, 1, 1], [], []>} : vector<16x16xf32>, vector<16x32xf32>, vector<16x32xf32> -> vector<16x32xf32>
    %72 = vector.extract_strided_slice %21 {offsets = [0, 64], sizes = [16, 32], strides = [1, 1]} : vector<16x128xf32> to vector<16x32xf32>
    %73 = vector.extract_strided_slice %25 {offsets = [0, 64], sizes = [16, 32], strides = [1, 1]} : vector<16x128xf32> to vector<16x32xf32>
    %74 = vector.extract_strided_slice %29 {offsets = [0, 64], sizes = [16, 32], strides = [1, 1]} : vector<16x128xf32> to vector<16x32xf32>
    %cst_20 = arith.constant dense<0.000000e+00> : vector<16x16xf32>
    %75 = tpu.matmul %72, %73, %cst_20 {dimension_numbers = #tpu.dot_dimension_numbers<[1], [1], [0], [0], [0, 0, 1, 0], [], []>} : vector<16x32xf32>, vector<16x32xf32>, vector<16x16xf32> -> vector<16x16xf32>
    %cst_21 = arith.constant 2.000000e-01 : f32
    %76 = vector.broadcast %cst_21 : f32 to vector<16x16xf32>
    %77 = arith.mulf %75, %76 : vector<16x16xf32>
    %cst_22 = arith.constant -1.000000e+30 : f32
    %78 = vector.shape_cast %7 : vector<1x16xi1> to vector<1x16xi1>
    %79 = vector.broadcast %78 : vector<1x16xi1> to vector<16x16xi1>
    %80 = vector.broadcast %cst_22 : f32 to vector<16x16xf32>
    %81 = arith.select %79, %77, %80 : vector<16x16xi1>, vector<16x16xf32>
    %cst_23 = arith.constant dense<0xFF800000> : vector<16xf32>
    %82 = vector.multi_reduction <maximumf>, %81, %cst_23 [1] : vector<16x16xf32> to vector<16xf32>
    %83 = vector.shape_cast %82 : vector<16xf32> to vector<16x1xf32>
    %84 = vector.broadcast %83 : vector<16x1xf32> to vector<16x16xf32>
    %85 = arith.subf %81, %84 : vector<16x16xf32>
    %86 = math.exp %85 : vector<16x16xf32>
    %cst_24 = arith.constant dense<0.000000e+00> : vector<16xf32>
    %87 = vector.multi_reduction <add>, %86, %cst_24 [1] : vector<16x16xf32> to vector<16xf32>
    %88 = vector.shape_cast %87 : vector<16xf32> to vector<16x1xf32>
    %89 = tpu.reciprocal %88 {approx = true} : vector<16x1xf32> -> vector<16x1xf32>
    %90 = vector.broadcast %89 : vector<16x1xf32> to vector<16x16xf32>
    %91 = arith.mulf %86, %90 : vector<16x16xf32>
    %cst_25 = arith.constant dense<0.000000e+00> : vector<16x32xf32>
    %92 = tpu.matmul %91, %74, %cst_25 {dimension_numbers = #tpu.dot_dimension_numbers<[1], [0], [0], [1], [0, 0, 1, 1], [], []>} : vector<16x16xf32>, vector<16x32xf32>, vector<16x32xf32> -> vector<16x32xf32>
    %93 = vector.extract_strided_slice %21 {offsets = [0, 96], sizes = [16, 32], strides = [1, 1]} : vector<16x128xf32> to vector<16x32xf32>
    %94 = vector.extract_strided_slice %25 {offsets = [0, 96], sizes = [16, 32], strides = [1, 1]} : vector<16x128xf32> to vector<16x32xf32>
    %95 = vector.extract_strided_slice %29 {offsets = [0, 96], sizes = [16, 32], strides = [1, 1]} : vector<16x128xf32> to vector<16x32xf32>
    %cst_26 = arith.constant dense<0.000000e+00> : vector<16x16xf32>
    %96 = tpu.matmul %93, %94, %cst_26 {dimension_numbers = #tpu.dot_dimension_numbers<[1], [1], [0], [0], [0, 0, 1, 0], [], []>} : vector<16x32xf32>, vector<16x32xf32>, vector<16x16xf32> -> vector<16x16xf32>
    %cst_27 = arith.constant 2.000000e-01 : f32
    %97 = vector.broadcast %cst_27 : f32 to vector<16x16xf32>
    %98 = arith.mulf %96, %97 : vector<16x16xf32>
    %cst_28 = arith.constant -1.000000e+30 : f32
    %99 = vector.shape_cast %7 : vector<1x16xi1> to vector<1x16xi1>
    %100 = vector.broadcast %99 : vector<1x16xi1> to vector<16x16xi1>
    %101 = vector.broadcast %cst_28 : f32 to vector<16x16xf32>
    %102 = arith.select %100, %98, %101 : vector<16x16xi1>, vector<16x16xf32>
    %cst_29 = arith.constant dense<0xFF800000> : vector<16xf32>
    %103 = vector.multi_reduction <maximumf>, %102, %cst_29 [1] : vector<16x16xf32> to vector<16xf32>
    %104 = vector.shape_cast %103 : vector<16xf32> to vector<16x1xf32>
    %105 = vector.broadcast %104 : vector<16x1xf32> to vector<16x16xf32>
    %106 = arith.subf %102, %105 : vector<16x16xf32>
    %107 = math.exp %106 : vector<16x16xf32>
    %cst_30 = arith.constant dense<0.000000e+00> : vector<16xf32>
    %108 = vector.multi_reduction <add>, %107, %cst_30 [1] : vector<16x16xf32> to vector<16xf32>
    %109 = vector.shape_cast %108 : vector<16xf32> to vector<16x1xf32>
    %110 = tpu.reciprocal %109 {approx = true} : vector<16x1xf32> -> vector<16x1xf32>
    %111 = vector.broadcast %110 : vector<16x1xf32> to vector<16x16xf32>
    %112 = arith.mulf %107, %111 : vector<16x16xf32>
    %cst_31 = arith.constant dense<0.000000e+00> : vector<16x32xf32>
    %113 = tpu.matmul %112, %95, %cst_31 {dimension_numbers = #tpu.dot_dimension_numbers<[1], [0], [0], [1], [0, 0, 1, 1], [], []>} : vector<16x16xf32>, vector<16x32xf32>, vector<16x32xf32> -> vector<16x32xf32>
    %114 = tpu.concatenate %50, %71, %92, %113 in 1 : vector<16x32xf32>, vector<16x32xf32>, vector<16x32xf32>, vector<16x32xf32> -> vector<16x128xf32>
    %115 = arith.truncf %114 : vector<16x128xf32> to vector<16x128xbf16>
    %c0_32 = arith.constant 0 : index
    %c0_33 = arith.constant 0 : index
    %c0_34 = arith.constant 0 : index
    %116 = vector.load %arg4[%c0_32, %c0_33, %c0_34] : memref<1x128x128xbf16, #tpu.memory_space<vmem>>, vector<1x128x128xbf16>
    %117 = vector.shape_cast %116 : vector<1x128x128xbf16> to vector<128x128xbf16>
    %cst_35 = arith.constant dense<0.000000e+00> : vector<16x128xf32>
    %118 = tpu.matmul %115, %117, %cst_35 {dimension_numbers = #tpu.dot_dimension_numbers<[1], [0], [0], [1], [0, 0, 1, 1], [], []>} : vector<16x128xbf16>, vector<128x128xbf16>, vector<16x128xf32> -> vector<16x128xf32>
    %119 = vector.extract_strided_slice %13 {offsets = [3, 0], sizes = [1, 128], strides = [1, 1]} : vector<9x128xf32> to vector<1x128xf32>
    %120 = vector.broadcast %119 : vector<1x128xf32> to vector<16x128xf32>
    %121 = arith.addf %118, %120 : vector<16x128xf32>
    %122 = arith.addf %11, %121 : vector<16x128xf32>
    %123 = vector.extract_strided_slice %13 {offsets = [4, 0], sizes = [1, 128], strides = [1, 1]} : vector<9x128xf32> to vector<1x128xf32>
    %124 = vector.extract_strided_slice %13 {offsets = [5, 0], sizes = [1, 128], strides = [1, 1]} : vector<9x128xf32> to vector<1x128xf32>
    %cst_36 = arith.constant dense<0.000000e+00> : vector<16xf32>
    %125 = vector.multi_reduction <add>, %122, %cst_36 [1] : vector<16x128xf32> to vector<16xf32>
    %126 = vector.shape_cast %125 : vector<16xf32> to vector<16x1xf32>
    %cst_37 = arith.constant 0.00999999977 : f32
    %127 = vector.broadcast %cst_37 : f32 to vector<16x1xf32>
    %128 = arith.mulf %126, %127 : vector<16x1xf32>
    %129 = vector.broadcast %128 : vector<16x1xf32> to vector<16x128xf32>
    %130 = arith.subf %122, %129 : vector<16x128xf32>
    %131 = vector.broadcast %4 : vector<1x128xf32> to vector<16x128xf32>
    %132 = arith.mulf %130, %131 : vector<16x128xf32>
    %133 = arith.mulf %132, %132 : vector<16x128xf32>
    %cst_38 = arith.constant dense<0.000000e+00> : vector<16xf32>
    %134 = vector.multi_reduction <add>, %133, %cst_38 [1] : vector<16x128xf32> to vector<16xf32>
    %135 = vector.shape_cast %134 : vector<16xf32> to vector<16x1xf32>
    %cst_39 = arith.constant 0.00999999977 : f32
    %136 = vector.broadcast %cst_39 : f32 to vector<16x1xf32>
    %137 = arith.mulf %135, %136 : vector<16x1xf32>
    %cst_40 = arith.constant 9.99999974E-6 : f32
    %138 = vector.broadcast %cst_40 : f32 to vector<16x1xf32>
    %139 = arith.addf %137, %138 : vector<16x1xf32>
    %140 = math.rsqrt %139 : vector<16x1xf32>
    %141 = vector.broadcast %140 : vector<16x1xf32> to vector<16x128xf32>
    %142 = arith.mulf %132, %141 : vector<16x128xf32>
    %143 = vector.broadcast %123 : vector<1x128xf32> to vector<16x128xf32>
    %144 = arith.mulf %142, %143 : vector<16x128xf32>
    %145 = vector.broadcast %124 : vector<1x128xf32> to vector<16x128xf32>
    %146 = arith.addf %144, %145 : vector<16x128xf32>
    %147 = arith.truncf %146 : vector<16x128xf32> to vector<16x128xbf16>
    %cst_41 = arith.constant 0.000000e+00 : f32
    %148 = vector.broadcast %cst_41 : f32 to vector<16x128xf32>
    %c0_42 = arith.constant 0 : index
    %c0_43 = arith.constant 0 : index
    %c0_44 = arith.constant 0 : index
    %149 = vector.load %arg5[%c0_42, %c0_43, %c0_44] : memref<1x128x2048xbf16, #tpu.memory_space<vmem>>, vector<1x128x512xbf16>
    %150 = vector.shape_cast %149 : vector<1x128x512xbf16> to vector<128x512xbf16>
    %c0_45 = arith.constant 0 : index
    %c0_46 = arith.constant 0 : index
    %c0_47 = arith.constant 0 : index
    %151 = vector.load %arg7[%c0_45, %c0_46, %c0_47] : memref<1x1x2048xf32, #tpu.memory_space<vmem>>, vector<1x1x512xf32>
    %152 = vector.shape_cast %151 : vector<1x1x512xf32> to vector<1x512xf32>
    %c0_48 = arith.constant 0 : index
    %c0_49 = arith.constant 0 : index
    %c0_50 = arith.constant 0 : index
    %153 = vector.load %arg6[%c0_48, %c0_49, %c0_50] : memref<1x2048x128xbf16, #tpu.memory_space<vmem>>, vector<1x512x128xbf16>
    %154 = vector.shape_cast %153 : vector<1x512x128xbf16> to vector<512x128xbf16>
    %cst_51 = arith.constant dense<0.000000e+00> : vector<16x512xf32>
    %155 = tpu.matmul %147, %150, %cst_51 {dimension_numbers = #tpu.dot_dimension_numbers<[1], [0], [0], [1], [0, 0, 1, 1], [], []>} : vector<16x128xbf16>, vector<128x512xbf16>, vector<16x512xf32> -> vector<16x512xf32>
    %156 = vector.broadcast %152 : vector<1x512xf32> to vector<16x512xf32>
    %157 = arith.addf %155, %156 : vector<16x512xf32>
    %cst_52 = arith.constant 0.000000e+00 : f32
    %158 = vector.broadcast %cst_52 : f32 to vector<16x512xf32>
    %159 = arith.maximumf %157, %158 : vector<16x512xf32>
    %160 = arith.truncf %159 : vector<16x512xf32> to vector<16x512xbf16>
    %cst_53 = arith.constant dense<0.000000e+00> : vector<16x128xf32>
    %161 = tpu.matmul %160, %154, %cst_53 {dimension_numbers = #tpu.dot_dimension_numbers<[1], [0], [0], [1], [0, 0, 1, 1], [], []>} : vector<16x512xbf16>, vector<512x128xbf16>, vector<16x128xf32> -> vector<16x128xf32>
    %162 = arith.addf %148, %161 : vector<16x128xf32>
    %c0_54 = arith.constant 0 : index
    %c0_55 = arith.constant 0 : index
    %c512 = arith.constant 512 : index
    %163 = vector.load %arg5[%c0_54, %c0_55, %c512] : memref<1x128x2048xbf16, #tpu.memory_space<vmem>>, vector<1x128x512xbf16>
    %164 = vector.shape_cast %163 : vector<1x128x512xbf16> to vector<128x512xbf16>
    %c0_56 = arith.constant 0 : index
    %c0_57 = arith.constant 0 : index
    %c512_58 = arith.constant 512 : index
    %165 = vector.load %arg7[%c0_56, %c0_57, %c512_58] : memref<1x1x2048xf32, #tpu.memory_space<vmem>>, vector<1x1x512xf32>
    %166 = vector.shape_cast %165 : vector<1x1x512xf32> to vector<1x512xf32>
    %c0_59 = arith.constant 0 : index
    %c512_60 = arith.constant 512 : index
    %c0_61 = arith.constant 0 : index
    %167 = vector.load %arg6[%c0_59, %c512_60, %c0_61] : memref<1x2048x128xbf16, #tpu.memory_space<vmem>>, vector<1x512x128xbf16>
    %168 = vector.shape_cast %167 : vector<1x512x128xbf16> to vector<512x128xbf16>
    %cst_62 = arith.constant dense<0.000000e+00> : vector<16x512xf32>
    %169 = tpu.matmul %147, %164, %cst_62 {dimension_numbers = #tpu.dot_dimension_numbers<[1], [0], [0], [1], [0, 0, 1, 1], [], []>} : vector<16x128xbf16>, vector<128x512xbf16>, vector<16x512xf32> -> vector<16x512xf32>
    %170 = vector.broadcast %166 : vector<1x512xf32> to vector<16x512xf32>
    %171 = arith.addf %169, %170 : vector<16x512xf32>
    %cst_63 = arith.constant 0.000000e+00 : f32
    %172 = vector.broadcast %cst_63 : f32 to vector<16x512xf32>
    %173 = arith.maximumf %171, %172 : vector<16x512xf32>
    %174 = arith.truncf %173 : vector<16x512xf32> to vector<16x512xbf16>
    %cst_64 = arith.constant dense<0.000000e+00> : vector<16x128xf32>
    %175 = tpu.matmul %174, %168, %cst_64 {dimension_numbers = #tpu.dot_dimension_numbers<[1], [0], [0], [1], [0, 0, 1, 1], [], []>} : vector<16x512xbf16>, vector<512x128xbf16>, vector<16x128xf32> -> vector<16x128xf32>
    %176 = arith.addf %162, %175 : vector<16x128xf32>
    %c0_65 = arith.constant 0 : index
    %c0_66 = arith.constant 0 : index
    %c1024 = arith.constant 1024 : index
    %177 = vector.load %arg5[%c0_65, %c0_66, %c1024] : memref<1x128x2048xbf16, #tpu.memory_space<vmem>>, vector<1x128x512xbf16>
    %178 = vector.shape_cast %177 : vector<1x128x512xbf16> to vector<128x512xbf16>
    %c0_67 = arith.constant 0 : index
    %c0_68 = arith.constant 0 : index
    %c1024_69 = arith.constant 1024 : index
    %179 = vector.load %arg7[%c0_67, %c0_68, %c1024_69] : memref<1x1x2048xf32, #tpu.memory_space<vmem>>, vector<1x1x512xf32>
    %180 = vector.shape_cast %179 : vector<1x1x512xf32> to vector<1x512xf32>
    %c0_70 = arith.constant 0 : index
    %c1024_71 = arith.constant 1024 : index
    %c0_72 = arith.constant 0 : index
    %181 = vector.load %arg6[%c0_70, %c1024_71, %c0_72] : memref<1x2048x128xbf16, #tpu.memory_space<vmem>>, vector<1x512x128xbf16>
    %182 = vector.shape_cast %181 : vector<1x512x128xbf16> to vector<512x128xbf16>
    %cst_73 = arith.constant dense<0.000000e+00> : vector<16x512xf32>
    %183 = tpu.matmul %147, %178, %cst_73 {dimension_numbers = #tpu.dot_dimension_numbers<[1], [0], [0], [1], [0, 0, 1, 1], [], []>} : vector<16x128xbf16>, vector<128x512xbf16>, vector<16x512xf32> -> vector<16x512xf32>
    %184 = vector.broadcast %180 : vector<1x512xf32> to vector<16x512xf32>
    %185 = arith.addf %183, %184 : vector<16x512xf32>
    %cst_74 = arith.constant 0.000000e+00 : f32
    %186 = vector.broadcast %cst_74 : f32 to vector<16x512xf32>
    %187 = arith.maximumf %185, %186 : vector<16x512xf32>
    %188 = arith.truncf %187 : vector<16x512xf32> to vector<16x512xbf16>
    %cst_75 = arith.constant dense<0.000000e+00> : vector<16x128xf32>
    %189 = tpu.matmul %188, %182, %cst_75 {dimension_numbers = #tpu.dot_dimension_numbers<[1], [0], [0], [1], [0, 0, 1, 1], [], []>} : vector<16x512xbf16>, vector<512x128xbf16>, vector<16x128xf32> -> vector<16x128xf32>
    %190 = arith.addf %176, %189 : vector<16x128xf32>
    %c0_76 = arith.constant 0 : index
    %c0_77 = arith.constant 0 : index
    %c1536 = arith.constant 1536 : index
    %191 = vector.load %arg5[%c0_76, %c0_77, %c1536] : memref<1x128x2048xbf16, #tpu.memory_space<vmem>>, vector<1x128x512xbf16>
    %192 = vector.shape_cast %191 : vector<1x128x512xbf16> to vector<128x512xbf16>
    %c0_78 = arith.constant 0 : index
    %c0_79 = arith.constant 0 : index
    %c1536_80 = arith.constant 1536 : index
    %193 = vector.load %arg7[%c0_78, %c0_79, %c1536_80] : memref<1x1x2048xf32, #tpu.memory_space<vmem>>, vector<1x1x512xf32>
    %194 = vector.shape_cast %193 : vector<1x1x512xf32> to vector<1x512xf32>
    %c0_81 = arith.constant 0 : index
    %c1536_82 = arith.constant 1536 : index
    %c0_83 = arith.constant 0 : index
    %195 = vector.load %arg6[%c0_81, %c1536_82, %c0_83] : memref<1x2048x128xbf16, #tpu.memory_space<vmem>>, vector<1x512x128xbf16>
    %196 = vector.shape_cast %195 : vector<1x512x128xbf16> to vector<512x128xbf16>
    %cst_84 = arith.constant dense<0.000000e+00> : vector<16x512xf32>
    %197 = tpu.matmul %147, %192, %cst_84 {dimension_numbers = #tpu.dot_dimension_numbers<[1], [0], [0], [1], [0, 0, 1, 1], [], []>} : vector<16x128xbf16>, vector<128x512xbf16>, vector<16x512xf32> -> vector<16x512xf32>
    %198 = vector.broadcast %194 : vector<1x512xf32> to vector<16x512xf32>
    %199 = arith.addf %197, %198 : vector<16x512xf32>
    %cst_85 = arith.constant 0.000000e+00 : f32
    %200 = vector.broadcast %cst_85 : f32 to vector<16x512xf32>
    %201 = arith.maximumf %199, %200 : vector<16x512xf32>
    %202 = arith.truncf %201 : vector<16x512xf32> to vector<16x512xbf16>
    %cst_86 = arith.constant dense<0.000000e+00> : vector<16x128xf32>
    %203 = tpu.matmul %202, %196, %cst_86 {dimension_numbers = #tpu.dot_dimension_numbers<[1], [0], [0], [1], [0, 0, 1, 1], [], []>} : vector<16x512xbf16>, vector<512x128xbf16>, vector<16x128xf32> -> vector<16x128xf32>
    %204 = arith.addf %190, %203 : vector<16x128xf32>
    %205 = vector.extract_strided_slice %13 {offsets = [8, 0], sizes = [1, 128], strides = [1, 1]} : vector<9x128xf32> to vector<1x128xf32>
    %206 = vector.broadcast %205 : vector<1x128xf32> to vector<16x128xf32>
    %207 = arith.addf %204, %206 : vector<16x128xf32>
    %208 = arith.addf %146, %207 : vector<16x128xf32>
    %209 = vector.extract_strided_slice %13 {offsets = [6, 0], sizes = [1, 128], strides = [1, 1]} : vector<9x128xf32> to vector<1x128xf32>
    %210 = vector.extract_strided_slice %13 {offsets = [7, 0], sizes = [1, 128], strides = [1, 1]} : vector<9x128xf32> to vector<1x128xf32>
    %cst_87 = arith.constant dense<0.000000e+00> : vector<16xf32>
    %211 = vector.multi_reduction <add>, %208, %cst_87 [1] : vector<16x128xf32> to vector<16xf32>
    %212 = vector.shape_cast %211 : vector<16xf32> to vector<16x1xf32>
    %cst_88 = arith.constant 0.00999999977 : f32
    %213 = vector.broadcast %cst_88 : f32 to vector<16x1xf32>
    %214 = arith.mulf %212, %213 : vector<16x1xf32>
    %215 = vector.broadcast %214 : vector<16x1xf32> to vector<16x128xf32>
    %216 = arith.subf %208, %215 : vector<16x128xf32>
    %217 = vector.broadcast %4 : vector<1x128xf32> to vector<16x128xf32>
    %218 = arith.mulf %216, %217 : vector<16x128xf32>
    %219 = arith.mulf %218, %218 : vector<16x128xf32>
    %cst_89 = arith.constant dense<0.000000e+00> : vector<16xf32>
    %220 = vector.multi_reduction <add>, %219, %cst_89 [1] : vector<16x128xf32> to vector<16xf32>
    %221 = vector.shape_cast %220 : vector<16xf32> to vector<16x1xf32>
    %cst_90 = arith.constant 0.00999999977 : f32
    %222 = vector.broadcast %cst_90 : f32 to vector<16x1xf32>
    %223 = arith.mulf %221, %222 : vector<16x1xf32>
    %cst_91 = arith.constant 9.99999974E-6 : f32
    %224 = vector.broadcast %cst_91 : f32 to vector<16x1xf32>
    %225 = arith.addf %223, %224 : vector<16x1xf32>
    %226 = math.rsqrt %225 : vector<16x1xf32>
    %227 = vector.broadcast %226 : vector<16x1xf32> to vector<16x128xf32>
    %228 = arith.mulf %218, %227 : vector<16x128xf32>
    %229 = vector.broadcast %209 : vector<1x128xf32> to vector<16x128xf32>
    %230 = arith.mulf %228, %229 : vector<16x128xf32>
    %231 = vector.broadcast %210 : vector<1x128xf32> to vector<16x128xf32>
    %232 = arith.addf %230, %231 : vector<16x128xf32>
    %c0_92 = arith.constant 0 : index
    %c0_93 = arith.constant 0 : index
    %233 = vector.load %arg12[%c0_92, %c0_93] : memref<16x128xf32, #tpu.memory_space<vmem>>, vector<16x128xf32>
    tpu.vector_store %arg12[%c0_92, %c0_93], %232 {strides = array<i32>} : memref<16x128xf32, #tpu.memory_space<vmem>>, vector<16x128xf32>,
    %c1_i32 = arith.constant 1 : i32
    %234 = arith.cmpi eq, %arg0, %c1_i32 : i32
    %235 = arith.extui %234 : i1 to i32
    %c0_i32_94 = arith.constant 0 : i32
    %236 = arith.cmpi ne, %235, %c0_i32_94 : i32
    scf.if %236 {
      %c0_95 = arith.constant 0 : index
      %c0_96 = arith.constant 0 : index
      %237 = vector.load %arg12[%c0_95, %c0_96] : memref<16x128xf32, #tpu.memory_space<vmem>>, vector<1x128xf32>
      %c0_97 = arith.constant 0 : index
      %c0_98 = arith.constant 0 : index
      %238 = vector.load %arg10[%c0_97, %c0_98] : memref<3x128xf32, #tpu.memory_space<vmem>>, vector<3x128xf32>
      %239 = arith.truncf %237 : vector<1x128xf32> to vector<1x128xbf16>
      %c0_99 = arith.constant 0 : index
      %c0_100 = arith.constant 0 : index
      %240 = vector.load %arg9[%c0_99, %c0_100] : memref<128x128xbf16, #tpu.memory_space<vmem>>, vector<128x128xbf16>
      %cst_101 = arith.constant dense<0.000000e+00> : vector<1x128xf32>
      %241 = tpu.matmul %239, %240, %cst_101 {dimension_numbers = #tpu.dot_dimension_numbers<[1], [0], [0], [1], [0, 0, 1, 1], [], []>} : vector<1x128xbf16>, vector<128x128xbf16>, vector<1x128xf32> -> vector<1x128xf32>
      %242 = vector.extract_strided_slice %238 {offsets = [0, 0], sizes = [1, 128], strides = [1, 1]} : vector<3x128xf32> to vector<1x128xf32>
      %243 = arith.addf %241, %242 : vector<1x128xf32>
      %cst_102 = arith.constant 0.000000e+00 : f32
      %244 = vector.broadcast %cst_102 : f32 to vector<1x128xf32>
      %245 = arith.cmpf oge, %243, %244 : vector<1x128xf32>
      %cst_103 = arith.constant 0.00999999977 : f32
      %246 = vector.broadcast %cst_103 : f32 to vector<1x128xf32>
      %247 = arith.mulf %246, %243 : vector<1x128xf32>
      %248 = arith.select %245, %243, %247 : vector<1x128xi1>, vector<1x128xf32>
      %249 = vector.extract_strided_slice %238 {offsets = [1, 0], sizes = [1, 128], strides = [1, 1]} : vector<3x128xf32> to vector<1x128xf32>
      %250 = arith.mulf %248, %249 : vector<1x128xf32>
      %cst_104 = arith.constant dense<0.000000e+00> : vector<1xf32>
      %251 = vector.multi_reduction <add>, %250, %cst_104 [1] : vector<1x128xf32> to vector<1xf32>
      %252 = vector.shape_cast %251 : vector<1xf32> to vector<1x1xf32>
      %253 = vector.extract_strided_slice %238 {offsets = [2, 0], sizes = [1, 1], strides = [1, 1]} : vector<3x128xf32> to vector<1x1xf32>
      %254 = arith.addf %252, %253 : vector<1x1xf32>
      %cst_105 = arith.constant 0.000000e+00 : f32
      %255 = vector.broadcast %cst_105 : f32 to vector<1x1xf32>
      %256 = arith.subf %255, %254 : vector<1x1xf32>
      %257 = math.exp %256 : vector<1x1xf32>
      %cst_106 = arith.constant 1.000000e+00 : f32
      %258 = vector.broadcast %cst_106 : f32 to vector<1x1xf32>
      %259 = arith.addf %258, %257 : vector<1x1xf32>
      %cst_107 = arith.constant 1.000000e+00 : f32
      %260 = vector.broadcast %cst_107 : f32 to vector<1x1xf32>
      %261 = arith.divf %260, %259 : vector<1x1xf32>
      %c0_108 = arith.constant 0 : index
      %c0_109 = arith.constant 0 : index
      %262 = vector.load %arg11[%c0_108, %c0_109] : memref<1x1xf32, #tpu.memory_space<vmem>>, vector<1x1xf32>
      tpu.vector_store %arg11[%c0_108, %c0_109], %261 {strides = array<i32>} : memref<1x1xf32, #tpu.memory_space<vmem>>, vector<1x1xf32>,
    } else {
    }
    return
  }
  func.func @transform_0(%arg0: i32) -> (i32, i32) {
    %c0_i32 = arith.constant 0 : i32
    %c0_i32_0 = arith.constant 0 : i32
    %c0_i32_1 = arith.constant 0 : i32
    return %c0_i32, %c0_i32_0 : i32, i32
  }
  func.func @transform_1(%arg0: i32) -> (i32, i32) {
    %c0_i32 = arith.constant 0 : i32
    %c0_i32_0 = arith.constant 0 : i32
    %c0_i32_1 = arith.constant 0 : i32
    return %c0_i32, %c0_i32_0 : i32, i32
  }
  func.func @transform_2(%arg0: i32) -> (i32, i32, i32) {
    %c0_i32 = arith.constant 0 : i32
    %c0_i32_0 = arith.constant 0 : i32
    %c0_i32_1 = arith.constant 0 : i32
    return %arg0, %c0_i32, %c0_i32_0 : i32, i32, i32
  }
  func.func @transform_3(%arg0: i32) -> (i32, i32, i32) {
    %c0_i32 = arith.constant 0 : i32
    %c0_i32_0 = arith.constant 0 : i32
    %c0_i32_1 = arith.constant 0 : i32
    return %arg0, %c0_i32, %c0_i32_0 : i32, i32, i32
  }
  func.func @transform_4(%arg0: i32) -> (i32, i32, i32) {
    %c0_i32 = arith.constant 0 : i32
    %c0_i32_0 = arith.constant 0 : i32
    %c0_i32_1 = arith.constant 0 : i32
    return %arg0, %c0_i32, %c0_i32_0 : i32, i32, i32
  }
  func.func @transform_5(%arg0: i32) -> (i32, i32, i32) {
    %c0_i32 = arith.constant 0 : i32
    %c0_i32_0 = arith.constant 0 : i32
    %c0_i32_1 = arith.constant 0 : i32
    return %arg0, %c0_i32, %c0_i32_0 : i32, i32, i32
  }
  func.func @transform_6(%arg0: i32) -> (i32, i32, i32) {
    %c0_i32 = arith.constant 0 : i32
    %c0_i32_0 = arith.constant 0 : i32
    %c0_i32_1 = arith.constant 0 : i32
    return %arg0, %c0_i32, %c0_i32_0 : i32, i32, i32
  }
  func.func @transform_7(%arg0: i32) -> (i32, i32, i32) {
    %c0_i32 = arith.constant 0 : i32
    %c0_i32_0 = arith.constant 0 : i32
    %c0_i32_1 = arith.constant 0 : i32
    return %arg0, %c0_i32, %c0_i32_0 : i32, i32, i32
  }
  func.func @transform_8(%arg0: i32) -> (i32, i32) {
    %c0_i32 = arith.constant 0 : i32
    %c0_i32_0 = arith.constant 0 : i32
    %c0_i32_1 = arith.constant 0 : i32
    return %c0_i32, %c0_i32_0 : i32, i32
  }
  func.func @transform_9(%arg0: i32) -> (i32, i32) {
    %c0_i32 = arith.constant 0 : i32
    %c0_i32_0 = arith.constant 0 : i32
    %c0_i32_1 = arith.constant 0 : i32
    return %c0_i32, %c0_i32_0 : i32, i32
  }
  func.func @transform_10(%arg0: i32) -> (i32, i32) {
    %c0_i32 = arith.constant 0 : i32
    %c0_i32_0 = arith.constant 0 : i32
    %c0_i32_1 = arith.constant 0 : i32
    return %c0_i32, %c0_i32_0 : i32, i32
  }
}

</mosaic_0001>

<llo_original>
// kernel: model_forward.1
$region0: #{model_forward.1}
  #allocation0 [shape = 'u32[]', space=smem, size = 0x4, offset = 0x4, fixed_abs, tag = 'smem constant byte address 0x4 - core index']
  #allocation1 [shape = 'u32[144,128]{1,0:T(1,128)}', space=vmem, size = 0x12000, scoped, tag = 'internal scratch']
  #allocation2 [shape = 'f32[16,128]{1,0:T(8,128)}', space=vmem, size = 0x2000, scoped, tag = 'scratch operand']
  %s0 = inlined_call_operand.vmem [shape: f32[16,128], index: 0, kind: input, shape index: {}]
  %s1 = inlined_call_operand.vmem [shape: f32[16,128], index: 1, kind: input, shape index: {}]
  %s2 = inlined_call_operand.hbm [shape: bf16[2,128,384], index: 2, kind: input, shape index: {}]
  %s3 = inlined_call_operand.vmem [shape: bf16[2,128,128], index: 3, kind: input, shape index: {}]
  %s4 = inlined_call_operand.hbm [shape: bf16[2,128,2048], index: 4, kind: input, shape index: {}]
  %s5 = inlined_call_operand.hbm [shape: bf16[2,2048,128], index: 5, kind: input, shape index: {}]
  %s6 = inlined_call_operand.hbm [shape: f32[2,1,2048], index: 6, kind: input, shape index: {}]
  %s7 = inlined_call_operand.vmem [shape: f32[2,9,128], index: 7, kind: input, shape index: {}]
  %s8 = inlined_call_operand.hbm [shape: bf16[128,128], index: 8, kind: input, shape index: {}]
  %s9 = inlined_call_operand.vmem [shape: f32[3,128], index: 9, kind: input, shape index: {}]
  %s10 = inlined_call_operand.hbm [shape: f32[1,1], index: 10, kind: output, shape index: {}]
  %s11 = sld [smem:[#allocation0]]
  $region101: #{model_forward.1} parent=0
    _
  %s13 = ssub.s32 1, %s11
  %s14 = scalar_select 0, %s13, %s11
  $region1: #{model_forward.1} parent=0
    #allocation3 [shape = 'u8[196608]{0}', space=vmem, size = 0x30000, scoped, tag = 'input window, operand 2']
    #allocation4 [shape = 's32[2]{0}', space=sflag, size = 0x8, scoped, tag = 'scoped memory for model_forward.1']
    #allocation5 [shape = 's32[2]{0}', space=sflag, size = 0x8, scoped, tag = 'scoped memory for model_forward.1']
    #allocation6 [shape = 'u8[1048576]{0}', space=vmem, size = 0x100000, scoped, tag = 'input window, operand 4']
    #allocation7 [shape = 's32[2]{0}', space=sflag, size = 0x8, scoped, tag = 'scoped memory for model_forward.1']
    #allocation8 [shape = 'u8[1048576]{0}', space=vmem, size = 0x100000, scoped, tag = 'input window, operand 5']
    #allocation9 [shape = 'u8[16384]{0}', space=vmem, size = 0x4000, scoped, tag = 'input window, operand 6']
    #allocation10 [shape = 's32[2]{0}', space=sflag, size = 0x8, scoped, tag = 'scoped memory for model_forward.1']
    #allocation11 [shape = 'u8[32768]{0}', space=vmem, size = 0x8000, scoped, tag = 'input window, operand 8, single buffered']
    #allocation12 [shape = 'u8[512]{0}', space=vmem, size = 0x400, scoped, tag = 'output window, operand 0, single buffered']
    %15 = vsyncpa [#allocation4], 0
    %s16 = scalar_lea.sflag [#allocation4], 1
    %17 = vsyncpa %s16, 0
    %18 = vsyncpa [#allocation7], 0
    %s19 = scalar_lea.sflag [#allocation7], 1
    %20 = vsyncpa %s19, 0
    %21 = vsyncpa [#allocation10], 0
    %s22 = scalar_lea.sflag [#allocation10], 1
    %23 = vsyncpa %s22, 0
    %24 = vsyncpa [#allocation5], 0
    loop: start=0, step=1, limit=4
    $region2: #{model_forward.1} parent=1 // loop_pre_header
      _
    $region3: #{model_forward.1} parent=1 // loop_header
      %s26 = sphi 0, %s30
      %p27 = scmp.ge.s32.totalorder %s26, 4
      %s34 = sphi 0, %s34
      %s36 = sphi 0, %s34
      %s37 = sphi 0, %s36
      %s51 = sphi 0, %s37
      %s55 = sphi 0, %s55
      %s57 = sphi 0, %s55
      %s58 = sphi 0, %s57
      %s72 = sphi 0, %s58
      %s78 = sphi 0, %s80
      %s81 = sphi 0, %s78
      %s82 = sphi 0, %s81
      %s98 = sphi 0, %s82
      %s104 = sphi 0, %s106
      %s107 = sphi 0, %s104
      %s108 = sphi 0, %s107
      %s124 = sphi 0, %s108
      %s130 = sphi 0, %s132
      %s133 = sphi 0, %s130
      %s134 = sphi 0, %s133
      %s150 = sphi 0, %s134
      %s156 = sphi 0, %s158
      %s159 = sphi 0, %s156
      %s160 = sphi 0, %s159
      %s176 = sphi 0, %s160
      %s182 = sphi 0, %s184
      %s185 = sphi 0, %s182
      %s186 = sphi 0, %s185
      %s202 = sphi 0, %s186
      %s208 = sphi 0, %s210
      %s211 = sphi 0, %s208
      %s212 = sphi 0, %s211
      %s228 = sphi 0, %s212
      %s232 = sphi 0, %s232
      %s234 = sphi 0, %s232
      %s235 = sphi 0, %s234
      %s249 = sphi 0, %s235
      %s253 = sphi 0, %s253
      %s255 = sphi 0, %s253
      %s256 = sphi 0, %s255
      %s270 = sphi 0, %s256
      %s274 = sphi 0, %s274
      %s276 = sphi 0, %s274
      %s277 = sphi 0, %s276
      %s291 = sphi 0, %s277
    $region4: #{model_forward.1} parent=1 // loop_header_branch
      %29 = sbr.rel (%p27) target = $region8
    $region5: #{model_forward.1} parent=1 // loop_body
      %s31 = ssub.s32 %s26, 1
      %s32 = ssub.s32 %s26, 2
      %s33 = sadd.s32 %s26, 1
      %s35 = sadd.s32 %s34, 1
      %p38 = scmp.eq.s32.totalorder %s26, 1
      %p39 = scmp.ne.s32.totalorder %s34, %s36
      %p40 = scmp.eq.s32.totalorder %s26, 0
      %p41 = por %p39, %p40
      %p42 = scmp.ne.s32.totalorder %s34, %s36
      %p43 = scmp.eq.s32.totalorder %s31, 1
      %p44 = por %p42, %p43
      %p45 = scmp.ne.s32.totalorder %s36, %s37
      %p46 = scmp.eq.s32.totalorder %s31, 0
      %p47 = por %p45, %p46
      %p48 = scmp.ne.s32.totalorder %s36, %s37
      %p49 = scmp.eq.s32.totalorder %s32, 1
      %p50 = por %p48, %p49
      %p52 = scmp.ne.s32.totalorder %s37, %s51
      %p53 = scmp.eq.s32.totalorder %s32, 0
      %p54 = por %p52, %p53
      %s56 = sadd.s32 %s55, 1
      %p59 = scmp.eq.s32.totalorder %s26, 1
      %p60 = scmp.ne.s32.totalorder %s55, %s57
      %p61 = scmp.eq.s32.totalorder %s26, 0
      %p62 = por %p60, %p61
      %p63 = scmp.ne.s32.totalorder %s55, %s57
      %p64 = scmp.eq.s32.totalorder %s31, 1
      %p65 = por %p63, %p64
      %p66 = scmp.ne.s32.totalorder %s57, %s58
      %p67 = scmp.eq.s32.totalorder %s31, 0
      %p68 = por %p66, %p67
      %p69 = scmp.ne.s32.totalorder %s57, %s58
      %p70 = scmp.eq.s32.totalorder %s32, 1
      %p71 = por %p69, %p70
      %p73 = scmp.ne.s32.totalorder %s58, %s72
      %p74 = scmp.eq.s32.totalorder %s32, 0
      %p75 = por %p73, %p74
      %s76 = ssub.s32 %s26, %s33
      %p77 = scmp.eq.s32.totalorder %s76, 0
      %s79 = sadd.s32 %s78, 1
      %s80 = scalar_select %p77, %s78, %s79
      %p83 = pneg %p77
      %p84 = scmp.eq.s32.totalorder %s26, 1
      %p85 = por %p83, %p84
      %p86 = scmp.ne.s32.totalorder %s78, %s81
      %p87 = scmp.eq.s32.totalorder %s26, 0
      %p88 = por %p86, %p87
      %p89 = scmp.ne.s32.totalorder %s78, %s81
      %p90 = scmp.eq.s32.totalorder %s31, 1
      %p91 = por %p89, %p90
      %p92 = scmp.ne.s32.totalorder %s81, %s82
      %p93 = scmp.eq.s32.totalorder %s31, 0
      %p94 = por %p92, %p93
      %p95 = scmp.ne.s32.totalorder %s81, %s82
      %p96 = scmp.eq.s32.totalorder %s32, 1
      %p97 = por %p95, %p96
      %p99 = scmp.ne.s32.totalorder %s82, %s98
      %p100 = scmp.eq.s32.totalorder %s32, 0
      %p101 = por %p99, %p100
      %s102 = ssub.s32 %s26, %s33
      %p103 = scmp.eq.s32.totalorder %s102, 0
      %s105 = sadd.s32 %s104, 1
      %s106 = scalar_select %p103, %s104, %s105
      %p109 = pneg %p103
      %p110 = scmp.eq.s32.totalorder %s26, 1
      %p111 = por %p109, %p110
      %p112 = scmp.ne.s32.totalorder %s104, %s107
      %p113 = scmp.eq.s32.totalorder %s26, 0
      %p114 = por %p112, %p113
      %p115 = scmp.ne.s32.totalorder %s104, %s107
      %p116 = scmp.eq.s32.totalorder %s31, 1
      %p117 = por %p115, %p116
      %p118 = scmp.ne.s32.totalorder %s107, %s108
      %p119 = scmp.eq.s32.totalorder %s31, 0
      %p120 = por %p118, %p119
      %p121 = scmp.ne.s32.totalorder %s107, %s108
      %p122 = scmp.eq.s32.totalorder %s32, 1
      %p123 = por %p121, %p122
      %p125 = scmp.ne.s32.totalorder %s108, %s124
      %p126 = scmp.eq.s32.totalorder %s32, 0
      %p127 = por %p125, %p126
      %s128 = ssub.s32 %s26, %s33
      %p129 = scmp.eq.s32.totalorder %s128, 0
      %s131 = sadd.s32 %s130, 1
      %s132 = scalar_select %p129, %s130, %s131
      %p135 = pneg %p129
      %p136 = scmp.eq.s32.totalorder %s26, 1
      %p137 = por %p135, %p136
      %p138 = scmp.ne.s32.totalorder %s130, %s133
      %p139 = scmp.eq.s32.totalorder %s26, 0
      %p140 = por %p138, %p139
      %p141 = scmp.ne.s32.totalorder %s130, %s133
      %p142 = scmp.eq.s32.totalorder %s31, 1
      %p143 = por %p141, %p142
      %p144 = scmp.ne.s32.totalorder %s133, %s134
      %p145 = scmp.eq.s32.totalorder %s31, 0
      %p146 = por %p144, %p145
      %p147 = scmp.ne.s32.totalorder %s133, %s134
      %p148 = scmp.eq.s32.totalorder %s32, 1
      %p149 = por %p147, %p148
      %p151 = scmp.ne.s32.totalorder %s134, %s150
      %p152 = scmp.eq.s32.totalorder %s32, 0
      %p153 = por %p151, %p152
      %s154 = ssub.s32 %s26, %s33
      %p155 = scmp.eq.s32.totalorder %s154, 0
      %s157 = sadd.s32 %s156, 1
      %s158 = scalar_select %p155, %s156, %s157
      %p161 = pneg %p155
      %p162 = scmp.eq.s32.totalorder %s26, 1
      %p163 = por %p161, %p162
      %p164 = scmp.ne.s32.totalorder %s156, %s159
      %p165 = scmp.eq.s32.totalorder %s26, 0
      %p166 = por %p164, %p165
      %p167 = scmp.ne.s32.totalorder %s156, %s159
      %p168 = scmp.eq.s32.totalorder %s31, 1
      %p169 = por %p167, %p168
      %p170 = scmp.ne.s32.totalorder %s159, %s160
      %p171 = scmp.eq.s32.totalorder %s31, 0
      %p172 = por %p170, %p171
      %p173 = scmp.ne.s32.totalorder %s159, %s160
      %p174 = scmp.eq.s32.totalorder %s32, 1
      %p175 = por %p173, %p174
      %p177 = scmp.ne.s32.totalorder %s160, %s176
      %p178 = scmp.eq.s32.totalorder %s32, 0
      %p179 = por %p177, %p178
      %s180 = ssub.s32 %s26, %s33
      %p181 = scmp.eq.s32.totalorder %s180, 0
      %s183 = sadd.s32 %s182, 1
      %s184 = scalar_select %p181, %s182, %s183
      %p187 = pneg %p181
      %p188 = scmp.eq.s32.totalorder %s26, 1
      %p189 = por %p187, %p188
      %p190 = scmp.ne.s32.totalorder %s182, %s185
      %p191 = scmp.eq.s32.totalorder %s26, 0
      %p192 = por %p190, %p191
      %p193 = scmp.ne.s32.totalorder %s182, %s185
      %p194 = scmp.eq.s32.totalorder %s31, 1
      %p195 = por %p193, %p194
      %p196 = scmp.ne.s32.totalorder %s185, %s186
      %p197 = scmp.eq.s32.totalorder %s31, 0
      %p198 = por %p196, %p197
      %p199 = scmp.ne.s32.totalorder %s185, %s186
      %p200 = scmp.eq.s32.totalorder %s32, 1
      %p201 = por %p199, %p200
      %p203 = scmp.ne.s32.totalorder %s186, %s202
      %p204 = scmp.eq.s32.totalorder %s32, 0
      %p205 = por %p203, %p204
      %s206 = ssub.s32 %s26, %s33
      %p207 = scmp.eq.s32.totalorder %s206, 0
      %s209 = sadd.s32 %s208, 1
      %s210 = scalar_select %p207, %s208, %s209
      %p213 = pneg %p207
      %p214 = scmp.eq.s32.totalorder %s26, 1
      %p215 = por %p213, %p214
      %p216 = scmp.ne.s32.totalorder %s208, %s211
      %p217 = scmp.eq.s32.totalorder %s26, 0
      %p218 = por %p216, %p217
      %p219 = scmp.ne.s32.totalorder %s208, %s211
      %p220 = scmp.eq.s32.totalorder %s31, 1
      %p221 = por %p219, %p220
      %p222 = scmp.ne.s32.totalorder %s211, %s212
      %p223 = scmp.eq.s32.totalorder %s31, 0
      %p224 = por %p222, %p223
      %p225 = scmp.ne.s32.totalorder %s211, %s212
      %p226 = scmp.eq.s32.totalorder %s32, 1
      %p227 = por %p225, %p226
      %p229 = scmp.ne.s32.totalorder %s212, %s228
      %p230 = scmp.eq.s32.totalorder %s32, 0
      %p231 = por %p229, %p230
      %s233 = sadd.s32 %s232, 1
      %p236 = scmp.eq.s32.totalorder %s26, 1
      %p237 = scmp.ne.s32.totalorder %s232, %s234
      %p238 = scmp.eq.s32.totalorder %s26, 0
      %p239 = por %p237, %p238
      %p240 = scmp.ne.s32.totalorder %s232, %s234
      %p241 = scmp.eq.s32.totalorder %s31, 1
      %p242 = por %p240, %p241
      %p243 = scmp.ne.s32.totalorder %s234, %s235
      %p244 = scmp.eq.s32.totalorder %s31, 0
      %p245 = por %p243, %p244
      %p246 = scmp.ne.s32.totalorder %s234, %s235
      %p247 = scmp.eq.s32.totalorder %s32, 1
      %p248 = por %p246, %p247
      %p250 = scmp.ne.s32.totalorder %s235, %s249
      %p251 = scmp.eq.s32.totalorder %s32, 0
      %p252 = por %p250, %p251
      %s254 = sadd.s32 %s253, 1
      %p257 = scmp.eq.s32.totalorder %s26, 1
      %p258 = scmp.ne.s32.totalorder %s253, %s255
      %p259 = scmp.eq.s32.totalorder %s26, 0
      %p260 = por %p258, %p259
      %p261 = scmp.ne.s32.totalorder %s253, %s255
      %p262 = scmp.eq.s32.totalorder %s31, 1
      %p263 = por %p261, %p262
      %p264 = scmp.ne.s32.totalorder %s255, %s256
      %p265 = scmp.eq.s32.totalorder %s31, 0
      %p266 = por %p264, %p265
      %p267 = scmp.ne.s32.totalorder %s255, %s256
      %p268 = scmp.eq.s32.totalorder %s32, 1
      %p269 = por %p267, %p268
      %p271 = scmp.ne.s32.totalorder %s256, %s270
      %p272 = scmp.eq.s32.totalorder %s32, 0
      %p273 = por %p271, %p272
      %s275 = sadd.s32 %s274, 1
      %p278 = scmp.eq.s32.totalorder %s26, 1
      %p279 = scmp.ne.s32.totalorder %s274, %s276
      %p280 = scmp.eq.s32.totalorder %s26, 0
      %p281 = por %p279, %p280
      %p282 = scmp.ne.s32.totalorder %s274, %s276
      %p283 = scmp.eq.s32.totalorder %s31, 1
      %p284 = por %p282, %p283
      %p285 = scmp.ne.s32.totalorder %s276, %s277
      %p286 = scmp.eq.s32.totalorder %s31, 0
      %p287 = por %p285, %p286
      %p288 = scmp.ne.s32.totalorder %s276, %s277
      %p289 = scmp.eq.s32.totalorder %s32, 1
      %p290 = por %p288, %p289
      %p292 = scmp.ne.s32.totalorder %s277, %s291
      %p293 = scmp.eq.s32.totalorder %s32, 0
      %p294 = por %p292, %p293
      %p295 = scmp.le.s32.totalorder 1, %s26
      %p296 = scmp.lt.s32.totalorder %s26, 3
      %p297 = pnand %p295, %p296
      %p298 = pneg %p297
      // Predicated region
      $region9: #{model_forward.1} parent=5 // pred_check
        _
      $region10: #{model_forward.1} parent=5 // pred_check_branch
        %300 = sbr.rel (%p297) target = $region12
      $region11: #{model_forward.1} parent=5 // pred_region
        %s301 = ssub.s32 %s26, 1
        // Predicated region
        $region13: #{model_forward.1} parent=11 // pred_check
          %p302 = pneg %p47
        $region14: #{model_forward.1} parent=11 // pred_check_branch
          %304 = sbr.rel (%p302) target = $region16
        $region15: #{model_forward.1} parent=11 // pred_region
          _
        $region16: #{model_forward.1} parent=11 // pred_fallthru
          _
        // Predicated region
        $region17: #{model_forward.1} parent=11 // pred_check
          %p305 = pneg %p68
        $region18: #{model_forward.1} parent=11 // pred_check_branch
          %307 = sbr.rel (%p305) target = $region20
        $region19: #{model_forward.1} parent=11 // pred_region
          _
        $region20: #{model_forward.1} parent=11 // pred_fallthru
          _
        // Predicated region
        $region21: #{model_forward.1} parent=11 // pred_check
          %p308 = pneg %p245
        $region22: #{model_forward.1} parent=11 // pred_check_branch
          %310 = sbr.rel (%p308) target = $region24
        $region23: #{model_forward.1} parent=11 // pred_region
          %s312 = ssub.s32 1024, 1024
          %313 = vsyncadd [#allocation10], %s312
          %s314 = sshll.u32 [#allocation11], 4
          %s315 = int_to_ptr.vmem [resolvable:$true] %s314
          %320 = dma.hbm_to_vmem [thread:$0]  %s8, 1024, %s315, [#allocation10], 64, 64, 4
        $region24: #{model_forward.1} parent=11 // pred_fallthru
          _
        // Predicated region
        $region25: #{model_forward.1} parent=11 // pred_check
          %p321 = pneg %p266
        $region26: #{model_forward.1} parent=11 // pred_check_branch
          %323 = sbr.rel (%p321) target = $region28
        $region27: #{model_forward.1} parent=11 // pred_region
          _
        $region28: #{model_forward.1} parent=11 // pred_fallthru
          _
      $region12: #{model_forward.1} parent=5 // pred_fallthru
        _
      %p324 = scmp.lt.s32.totalorder %s26, 2
      // Predicated region
      $region29: #{model_forward.1} parent=5 // pred_check
        %p325 = pneg %p324
      $region30: #{model_forward.1} parent=5 // pred_check_branch
        %327 = sbr.rel (%p325) target = $region32
      $region31: #{model_forward.1} parent=5 // pred_region
        // Predicated region
        $region33: #{model_forward.1} parent=31 // pred_check
          %p328 = pneg %p88
        $region34: #{model_forward.1} parent=31 // pred_check_branch
          %330 = sbr.rel (%p328) target = $region36
        $region35: #{model_forward.1} parent=31 // pred_region
          %s331 = sand.u32 %s78, 1
          %s332 = scalar_lea.sflag [#allocation4], %s331
          %s333 = sand.u32 %s78, 1
          %s334 = smul.addr %s333, 192
          %s335 = scalar_lea.vmem [#allocation3], %s334
          %s337 = ssub.s32 3072, 3072
          %338 = vsyncadd %s332, %s337
          %s339 = smul.addr %s26, 48
          %s340 = smul.addr %s339, 64
          %s341 = scalar_lea.hbm %s2, %s340
          %s342 = sshll.u32 %s335, 4
          %s343 = int_to_ptr.vmem [resolvable:$true] %s342
          %348 = dma.hbm_to_vmem [thread:$0]  %s341, 3072, %s343, %s332, 192, 192, 12
        $region36: #{model_forward.1} parent=31 // pred_fallthru
          _
        // Predicated region
        $region37: #{model_forward.1} parent=31 // pred_check
          %p349 = pneg %p114
        $region38: #{model_forward.1} parent=31 // pred_check_branch
          %351 = sbr.rel (%p349) target = $region40
        $region39: #{model_forward.1} parent=31 // pred_region
          %p352 = scmp.lt.s32.totalorder %s26, 1
          %s353 = scalar_select %p352, %s26, 1
          %s354 = smul.addr %s353, 16
          %s355 = smul.addr %s354, 4
          %s356 = scalar_lea.vmem %s3, %s355
        $region40: #{model_forward.1} parent=31 // pred_fallthru
          _
        // Predicated region
        $region41: #{model_forward.1} parent=31 // pred_check
          %p357 = pneg %p140
        $region42: #{model_forward.1} parent=31 // pred_check_branch
          %359 = sbr.rel (%p357) target = $region44
        $region43: #{model_forward.1} parent=31 // pred_region
          %s360 = sand.u32 %s26, 1
          %s361 = scalar_lea.sflag [#allocation7], %s360
          %s362 = sand.u32 %s130, 1
          %s363 = smul.addr %s362, 1024
          %s364 = scalar_lea.vmem [#allocation6], %s363
          %s366 = ssub.s32 16384, 16384
          %367 = vsyncadd %s361, %s366
          %s368 = smul.addr %s26, 256
          %s369 = smul.addr %s368, 64
          %s370 = scalar_lea.hbm %s4, %s369
          %s371 = sshll.u32 %s364, 4
          %s372 = int_to_ptr.vmem [resolvable:$true] %s371
          %377 = dma.hbm_to_vmem [thread:$0]  %s370, 16384, %s372, %s361, 1024, 1024, 64
        $region44: #{model_forward.1} parent=31 // pred_fallthru
          _
        // Predicated region
        $region45: #{model_forward.1} parent=31 // pred_check
          %p378 = pneg %p166
        $region46: #{model_forward.1} parent=31 // pred_check_branch
          %380 = sbr.rel (%p378) target = $region48
        $region47: #{model_forward.1} parent=31 // pred_region
          %s381 = sand.u32 %s26, 1
          %s382 = scalar_lea.sflag [#allocation7], %s381
          %s383 = sand.u32 %s156, 1
          %s384 = smul.addr %s383, 1024
          %s385 = scalar_lea.vmem [#allocation8], %s384
          %s387 = ssub.s32 16384, 16384
          %388 = vsyncadd %s382, %s387
          %s389 = smul.addr %s26, 256
          %s390 = smul.addr %s389, 64
          %s391 = scalar_lea.hbm %s5, %s390
          %s392 = sshll.u32 %s385, 4
          %s393 = int_to_ptr.vmem [resolvable:$true] %s392
          %398 = dma.hbm_to_vmem [thread:$0]  %s391, 16384, %s393, %s382, 64, 64, 4
        $region48: #{model_forward.1} parent=31 // pred_fallthru
          _
        // Predicated region
        $region49: #{model_forward.1} parent=31 // pred_check
          %p399 = pneg %p192
        $region50: #{model_forward.1} parent=31 // pred_check_branch
          %401 = sbr.rel (%p399) target = $region52
        $region51: #{model_forward.1} parent=31 // pred_region
          %s402 = sand.u32 %s26, 1
          %s403 = scalar_lea.sflag [#allocation10], %s402
          %s404 = sand.u32 %s182, 1
          %s405 = smul.addr %s404, 16
          %s406 = scalar_lea.vmem [#allocation9], %s405
          %s408 = ssub.s32 256, 256
          %409 = vsyncadd %s403, %s408
          %s410 = smul.addr %s26, 16
          %s411 = smul.addr %s410, 16
          %s412 = scalar_lea.hbm %s6, %s411
          %s414 = sshll.u32 %s406, 4
          %s415 = int_to_ptr.vmem [resolvable:$true] %s414
          %417 = dma.hbm_to_vmem [thread:$0]  %s412, 256, %s415, %s403
        $region52: #{model_forward.1} parent=31 // pred_fallthru
          _
        // Predicated region
        $region53: #{model_forward.1} parent=31 // pred_check
          %p418 = pneg %p218
        $region54: #{model_forward.1} parent=31 // pred_check_branch
          %420 = sbr.rel (%p418) target = $region56
        $region55: #{model_forward.1} parent=31 // pred_region
          %p421 = scmp.lt.s32.totalorder %s26, 1
          %s422 = scalar_select %p421, %s26, 1
          %s423 = smul.addr %s422, 2
          %s424 = smul.addr %s423, 8
          %s425 = scalar_lea.vmem %s7, %s424
        $region56: #{model_forward.1} parent=31 // pred_fallthru
          _
      $region32: #{model_forward.1} parent=5 // pred_fallthru
        _
      %p426 = scmp.le.s32.totalorder 1, %s26
      %p427 = scmp.lt.s32.totalorder %s26, 3
      %p428 = pnand %p426, %p427
      %p429 = pneg %p428
      // Predicated region
      $region57: #{model_forward.1} parent=5 // pred_check
        _
      $region58: #{model_forward.1} parent=5 // pred_check_branch
        %431 = sbr.rel (%p428) target = $region60
      $region59: #{model_forward.1} parent=5 // pred_region
        %s432 = ssub.s32 %s26, 1
        %s433 = sand.u32 %s81, 1
        %s434 = scalar_lea.sflag [#allocation4], %s433
        %s435 = sand.u32 %s81, 1
        %s436 = smul.addr %s435, 192
        %s437 = scalar_lea.vmem [#allocation3], %s436
        // Predicated region
        $region61: #{model_forward.1} parent=59 // pred_check
          %p438 = pneg %p94
        $region62: #{model_forward.1} parent=59 // pred_check_branch
          %440 = sbr.rel (%p438) target = $region64
        $region63: #{model_forward.1} parent=59 // pred_region
          %441 = dma.done %s434, 3072
        $region64: #{model_forward.1} parent=59 // pred_fallthru
          _
        %s442 = sand.u32 %s31, 1
        %s443 = scalar_lea.sflag [#allocation7], %s442
        %s444 = sand.u32 %s133, 1
        %s445 = smul.addr %s444, 1024
        %s446 = scalar_lea.vmem [#allocation6], %s445
        // Predicated region
        $region65: #{model_forward.1} parent=59 // pred_check
          %p447 = pneg %p146
        $region66: #{model_forward.1} parent=59 // pred_check_branch
          %449 = sbr.rel (%p447) target = $region68
        $region67: #{model_forward.1} parent=59 // pred_region
          %450 = dma.done %s443, 16384
        $region68: #{model_forward.1} parent=59 // pred_fallthru
          _
        %s451 = sand.u32 %s31, 1
        %s452 = scalar_lea.sflag [#allocation7], %s451
        %s453 = sand.u32 %s159, 1
        %s454 = smul.addr %s453, 1024
        %s455 = scalar_lea.vmem [#allocation8], %s454
        // Predicated region
        $region69: #{model_forward.1} parent=59 // pred_check
          %p456 = pneg %p172
        $region70: #{model_forward.1} parent=59 // pred_check_branch
          %458 = sbr.rel (%p456) target = $region72
        $region71: #{model_forward.1} parent=59 // pred_region
          %459 = dma.done %s452, 16384
        $region72: #{model_forward.1} parent=59 // pred_fallthru
          _
        %s460 = sand.u32 %s31, 1
        %s461 = scalar_lea.sflag [#allocation10], %s460
        %s462 = sand.u32 %s185, 1
        %s463 = smul.addr %s462, 16
        %s464 = scalar_lea.vmem [#allocation9], %s463
        // Predicated region
        $region73: #{model_forward.1} parent=59 // pred_check
          %p465 = pneg %p198
        $region74: #{model_forward.1} parent=59 // pred_check_branch
          %467 = sbr.rel (%p465) target = $region76
        $region75: #{model_forward.1} parent=59 // pred_region
          %468 = dma.done %s461, 256
        $region76: #{model_forward.1} parent=59 // pred_fallthru
          _
        // Predicated region
        $region77: #{model_forward.1} parent=59 // pred_check
          %p469 = pneg %p245
        $region78: #{model_forward.1} parent=59 // pred_check_branch
          %471 = sbr.rel (%p469) target = $region80
        $region79: #{model_forward.1} parent=59 // pred_region
          %472 = dma.done [#allocation10], 1024
        $region80: #{model_forward.1} parent=59 // pred_fallthru
          _
        %p473 = pneg %p47
        %p474 = pneg %p44
        %p475 = pneg %p68
        %p476 = pneg %p65
        %s477 = sand.u32 %s81, 1
        %s478 = scalar_lea.sflag [#allocation4], %s477
        %s479 = sand.u32 %s81, 1
        %s480 = smul.addr %s479, 192
        %s481 = scalar_lea.vmem [#allocation3], %s480
        %p482 = pneg %p94
        %p483 = pneg %p91
        %p484 = scmp.lt.s32.totalorder %s31, 1
        %s485 = scalar_select %p484, %s31, 1
        %s486 = smul.addr %s485, 16
        %s487 = smul.addr %s486, 4
        %s488 = scalar_lea.vmem %s3, %s487
        %p489 = pneg %p120
        %p490 = pneg %p117
        %s491 = sand.u32 %s31, 1
        %s492 = scalar_lea.sflag [#allocation7], %s491
        %s493 = sand.u32 %s133, 1
        %s494 = smul.addr %s493, 1024
        %s495 = scalar_lea.vmem [#allocation6], %s494
        %p496 = pneg %p146
        %p497 = pneg %p143
        %s498 = sand.u32 %s31, 1
        %s499 = scalar_lea.sflag [#allocation7], %s498
        %s500 = sand.u32 %s159, 1
        %s501 = smul.addr %s500, 1024
        %s502 = scalar_lea.vmem [#allocation8], %s501
        %p503 = pneg %p172
        %p504 = pneg %p169
        %s505 = sand.u32 %s31, 1
        %s506 = scalar_lea.sflag [#allocation10], %s505
        %s507 = sand.u32 %s185, 1
        %s508 = smul.addr %s507, 16
        %s509 = scalar_lea.vmem [#allocation9], %s508
        %p510 = pneg %p198
        %p511 = pneg %p195
        %p512 = scmp.lt.s32.totalorder %s31, 1
        %s513 = scalar_select %p512, %s31, 1
        %s514 = smul.addr %s513, 2
        %s515 = smul.addr %s514, 8
        %s516 = scalar_lea.vmem %s7, %s515
        %p517 = pneg %p224
        %p518 = pneg %p221
        %p519 = pneg %p245
        %p520 = pneg %p242
        %p521 = pneg %p266
        %p522 = pneg %p263
        %p523 = pneg %p287
        %p524 = pneg %p284
        %p525 = scmp.lt.s32.totalorder %s31, 1
        %s526 = scalar_select %p525, %s31, 1
        %s527 = smul.addr %s526, 16
        %s528 = smul.addr %s527, 4
        %s529 = scalar_lea.vmem %s3, %s528
        %p530 = scmp.lt.s32.totalorder %s31, 1
        %s531 = scalar_select %p530, %s31, 1
        %s532 = smul.addr %s531, 2
        %s533 = smul.addr %s532, 8
        %s534 = scalar_lea.vmem %s7, %s533
        %v536 = vlaneseq
        %v537 = vand.u32 %v536, 127
        %vm538 = vcmp.lt.s32.totalorder %v537, 100
        %v539 = vsel %vm538, 1, 0
        %v540 = vcvt.s32.f32 %v539
        %vm541 = vcmp.lt.s32.totalorder %v537, 9
        %p542 = scmp.eq.s32.totalorder %s31, 0
        // Predicated region
        $region81: #{model_forward.1} parent=59 // pred_check
          %p543 = pneg %p542
        $region82: #{model_forward.1} parent=59 // pred_check_branch
          %545 = sbr.rel (%p543) target = $region84
        $region83: #{model_forward.1} parent=59 // pred_region
          %v546 = vld [vmem:[%s0] sm:$0xff]
          %v547 = vld [vmem:[%s0 + $0x8] sm:$0xff]
          %v548 = vmul.f32 %v546, 10.0
          %v549 = vmul.f32 %v547, 10.0
          %v550 = vld [vmem:[%s1] sm:$0xff]
          %v551 = vld [vmem:[%s1 + $0x8] sm:$0xff]
          %v552 = vadd.f32 %v548, %v550
          %v553 = vadd.f32 %v549, %v551
          %554 = vst [vmem:[#allocation2] sm:$0xff] %v552
          %555 = vst [vmem:[#allocation2 + $0x8] sm:$0xff] %v553
          %vm556 = vcmask 0
          %557 = vst.msk [vmem:[#allocation12] sm:$0x1] %vm556, 0.0
        $region84: #{model_forward.1} parent=59 // pred_fallthru
          _
        %v558 = vld [vmem:[#allocation2] sm:$0xff]
        %v559 = vld [vmem:[#allocation2 + $0x8] sm:$0xff]
        %v560 = vld [vmem:[%s534] sm:$0xff]
        %v561 = vld [vmem:[%s534 + $0x8] sm:$0x1]
        %v562 = vpack.c.bf16 %v559, %v558
        %v563 = vld [vmem:[%s437] sm:$0xff]
        %v564 = vld [vmem:[%s437 + $0x8] sm:$0xf]
        %v565 = vld [vmem:[%s437 + $0xc] sm:$0xff]
        %v566 = vld [vmem:[%s437 + $0x14] sm:$0xf]
        %v567 = vld [vmem:[%s437 + $0x18] sm:$0xff]
        %v568 = vld [vmem:[%s437 + $0x20] sm:$0xf]
        %v569 = vld [vmem:[%s437 + $0x24] sm:$0xff]
        %v570 = vld [vmem:[%s437 + $0x2c] sm:$0xf]
        %v571 = vld [vmem:[%s437 + $0x30] sm:$0xff]
        %v572 = vld [vmem:[%s437 + $0x38] sm:$0xf]
        %v573 = vld [vmem:[%s437 + $0x3c] sm:$0xff]
        %v574 = vld [vmem:[%s437 + $0x44] sm:$0xf]
        %v575 = vld [vmem:[%s437 + $0x48] sm:$0xff]
        %v576 = vld [vmem:[%s437 + $0x50] sm:$0xf]
        %v577 = vld [vmem:[%s437 + $0x54] sm:$0xff]
        %v578 = vld [vmem:[%s437 + $0x5c] sm:$0xf]
        %v579 = vld [vmem:[%s437 + $0x60] sm:$0xff]
        %v580 = vld [vmem:[%s437 + $0x68] sm:$0xf]
        %v581 = vld [vmem:[%s437 + $0x6c] sm:$0xff]
        %v582 = vld [vmem:[%s437 + $0x74] sm:$0xf]
        %v583 = vld [vmem:[%s437 + $0x78] sm:$0xff]
        %v584 = vld [vmem:[%s437 + $0x80] sm:$0xf]
        %v585 = vld [vmem:[%s437 + $0x84] sm:$0xff]
        %v586 = vld [vmem:[%s437 + $0x8c] sm:$0xf]
        %v587 = vld [vmem:[%s437 + $0x90] sm:$0xff]
        %v588 = vld [vmem:[%s437 + $0x98] sm:$0xf]
        %v589 = vld [vmem:[%s437 + $0x9c] sm:$0xff]
        %v590 = vld [vmem:[%s437 + $0xa4] sm:$0xf]
        %v591 = vld [vmem:[%s437 + $0xa8] sm:$0xff]
        %v592 = vld [vmem:[%s437 + $0xb0] sm:$0xf]
        %v593 = vld [vmem:[%s437 + $0xb4] sm:$0xff]
        %v594 = vld [vmem:[%s437 + $0xbc] sm:$0xf]
        %v627 = vunpack.c.l.b16 %v563
        %v628 = vunpack.c.h.b16 %v563
        %v629 = vunpack.c.l.b16 %v564
        %v630 = vunpack.c.l.b16 %v565
        %v631 = vunpack.c.h.b16 %v565
        %v632 = vunpack.c.l.b16 %v566
        %v633 = vunpack.c.l.b16 %v567
        %v634 = vunpack.c.h.b16 %v567
        %v635 = vunpack.c.l.b16 %v568
        %v636 = vunpack.c.l.b16 %v569
        %v637 = vunpack.c.h.b16 %v569
        %v638 = vunpack.c.l.b16 %v570
        %v639 = vunpack.c.l.b16 %v571
        %v640 = vunpack.c.h.b16 %v571
        %v641 = vunpack.c.l.b16 %v572
        %v642 = vunpack.c.l.b16 %v573
        %v643 = vunpack.c.h.b16 %v573
        %v644 = vunpack.c.l.b16 %v574
        %v645 = vunpack.c.l.b16 %v575
        %v646 = vunpack.c.h.b16 %v575
        %v647 = vunpack.c.l.b16 %v576
        %v648 = vunpack.c.l.b16 %v577
        %v649 = vunpack.c.h.b16 %v577
        %v650 = vunpack.c.l.b16 %v578
        %v651 = vunpack.c.l.b16 %v579
        %v652 = vunpack.c.h.b16 %v579
        %v653 = vunpack.c.l.b16 %v580
        %v654 = vunpack.c.l.b16 %v581
        %v655 = vunpack.c.h.b16 %v581
        %v656 = vunpack.c.l.b16 %v582
        %v657 = vunpack.c.l.b16 %v583
        %v658 = vunpack.c.h.b16 %v583
        %v659 = vunpack.c.l.b16 %v584
        %v660 = vunpack.c.l.b16 %v585
        %v661 = vunpack.c.h.b16 %v585
        %v662 = vunpack.c.l.b16 %v586
        %v663 = vunpack.c.l.b16 %v587
        %v664 = vunpack.c.h.b16 %v587
        %v665 = vunpack.c.l.b16 %v588
        %v666 = vunpack.c.l.b16 %v589
        %v667 = vunpack.c.h.b16 %v589
        %v668 = vunpack.c.l.b16 %v590
        %v669 = vunpack.c.l.b16 %v591
        %v670 = vunpack.c.h.b16 %v591
        %v671 = vunpack.c.l.b16 %v592
        %v672 = vunpack.c.l.b16 %v593
        %v673 = vunpack.c.h.b16 %v593
        %v674 = vunpack.c.l.b16 %v594
        %v675 = vpack.c.b16 %v630, %v627
        %v676 = vpack.c.b16 %v631, %v628
        %v677 = vpack.c.b16 %v632, %v629
        %v678 = vpack.c.b16 %v636, %v633
        %v679 = vpack.c.b16 %v637, %v634
        %v680 = vpack.c.b16 %v638, %v635
        %v681 = vpack.c.b16 %v642, %v639
        %v682 = vpack.c.b16 %v643, %v640
        %v683 = vpack.c.b16 %v644, %v641
        %v684 = vpack.c.b16 %v648, %v645
        %v685 = vpack.c.b16 %v649, %v646
        %v686 = vpack.c.b16 %v650, %v647
        %v687 = vpack.c.b16 %v654, %v651
        %v688 = vpack.c.b16 %v655, %v652
        %v689 = vpack.c.b16 %v656, %v653
        %v690 = vpack.c.b16 %v660, %v657
        %v691 = vpack.c.b16 %v661, %v658
        %v692 = vpack.c.b16 %v662, %v659
        %v693 = vpack.c.b16 %v666, %v663
        %v694 = vpack.c.b16 %v667, %v664
        %v695 = vpack.c.b16 %v668, %v665
        %v696 = vpack.c.b16 %v672, %v669
        %v697 = vpack.c.b16 %v673, %v670
        %v698 = vpack.c.b16 %v674, %v671
        %723 = vmatprep.subr.bf16.mxu0 %v676
        %724 = vmatpush1.bf16.msra.mxu0 %v675
        %725 = vmatprep.subr.bf16.mxu0 %v679
        %726 = vmatpush1.bf16.msra.mxu0 %v678
        %727 = vmatprep.subr.bf16.mxu0 %v682
        %728 = vmatpush1.bf16.msra.mxu0 %v681
        %729 = vmatprep.subr.bf16.mxu0 %v685
        %730 = vmatpush1.bf16.msra.mxu0 %v684
        %731 = vmatprep.subr.bf16.mxu0 %v688
        %732 = vmatpush1.bf16.msra.mxu0 %v687
        %733 = vmatprep.subr.bf16.mxu0 %v691
        %734 = vmatpush1.bf16.msra.mxu0 %v690
        %735 = vmatprep.subr.bf16.mxu0 %v694
        %736 = vmatpush1.bf16.msra.mxu0 %v693
        %737 = vmatprep.subr.bf16.mxu0 %v697
        %738 = vmatpush1.bf16.msra.mxu0 %v696
        %739 = vmatprep.subr.bf16.mxu0 0
        %740 = vmatpush1.bf16.msra.mxu0 0
        %741 = vmatprep.subr.bf16.mxu0 0
        %742 = vmatpush1.bf16.msra.mxu0 0
        %743 = vmatprep.subr.bf16.mxu0 0
        %744 = vmatpush1.bf16.msra.mxu0 0
        %745 = vmatprep.subr.bf16.mxu0 0
        %746 = vmatpush1.bf16.msra.mxu0 0
        %747 = vmatprep.subr.bf16.mxu0 0
        %748 = vmatpush1.bf16.msra.mxu0 0
        %749 = vmatprep.subr.bf16.mxu0 0
        %750 = vmatpush1.bf16.msra.mxu0 0
        %751 = vmatprep.subr.bf16.mxu0 0
        %752 = vmatpush1.bf16.msra.mxu0 0
        %753 = vmatprep.subr.bf16.mxu0 0
        %754 = vmatpush1.bf16.msra.mxu0 0
        %755 = vmatprep.mubr.bf16.mxu0 0
        %756 = vmatmul.mubr.bf16.gmra.mrb[0].mxu0 %v562
        %v757 = vpop.f32.mrb[0].mxu0
        %v758 = vadd.f32 0.0, %v757
        %v759 = vpop.f32.mrb[0].mxu0
        %v760 = vadd.f32 0.0, %v759
        %v761 = vpop.f32.mrb[0].mxu0
        %v762 = vadd.f32 0.0, %v761
        %v763 = vpop.f32.mrb[0].mxu0
        %v764 = vadd.f32 0.0, %v763
        %765 = vdwg.mxu0
        %766 = vmatprep.subr.bf16.mxu0 0
        %767 = vmatpush1.bf16.msra.mxu0 %v677
        %768 = vmatprep.subr.bf16.mxu0 0
        %769 = vmatpush1.bf16.msra.mxu0 %v680
        %770 = vmatprep.subr.bf16.mxu0 0
        %771 = vmatpush1.bf16.msra.mxu0 %v683
        %772 = vmatprep.subr.bf16.mxu0 0
        %773 = vmatpush1.bf16.msra.mxu0 %v686
        %774 = vmatprep.subr.bf16.mxu0 0
        %775 = vmatpush1.bf16.msra.mxu0 %v689
        %776 = vmatprep.subr.bf16.mxu0 0
        %777 = vmatpush1.bf16.msra.mxu0 %v692
        %778 = vmatprep.subr.bf16.mxu0 0
        %779 = vmatpush1.bf16.msra.mxu0 %v695
        %780 = vmatprep.subr.bf16.mxu0 0
        %781 = vmatpush1.bf16.msra.mxu0 %v698
        %782 = vmatprep.subr.bf16.mxu0 0
        %783 = vmatpush1.bf16.msra.mxu0 0
        %784 = vmatprep.subr.bf16.mxu0 0
        %785 = vmatpush1.bf16.msra.mxu0 0
        %786 = vmatprep.subr.bf16.mxu0 0
        %787 = vmatpush1.bf16.msra.mxu0 0
        %788 = vmatprep.subr.bf16.mxu0 0
        %789 = vmatpush1.bf16.msra.mxu0 0
        %790 = vmatprep.subr.bf16.mxu0 0
        %791 = vmatpush1.bf16.msra.mxu0 0
        %792 = vmatprep.subr.bf16.mxu0 0
        %793 = vmatpush1.bf16.msra.mxu0 0
        %794 = vmatprep.subr.bf16.mxu0 0
        %795 = vmatpush1.bf16.msra.mxu0 0
        %796 = vmatprep.subr.bf16.mxu0 0
        %797 = vmatpush1.bf16.msra.mxu0 0
        %798 = vmatprep.mubr.bf16.mxu0 0
        %799 = vmatmul.mubr.bf16.gmra.mrb[0].mxu0 %v562
        %v800 = vpop.f32.mrb[0].mxu0
        %v801 = vadd.f32 0.0, %v800
        %v802 = vpop.f32.mrb[0].mxu0
        %v803 = vpop.f32.mrb[0].mxu0
        %v804 = vadd.f32 0.0, %v803
        %v805 = vpop.f32.mrb[0].mxu0
        %806 = vdwg.mxu0
        %v807 = vlaneseq
        %v808 = vshrl.u32 %v807, 7
        %v809 = vsub.s32 0, %v808
        %v810 = vrot.slane %v560, %v809
        %v811 = vadd.f32 %v758, %v810
        %v812 = vadd.f32 %v762, %v810
        %v813 = vlaneseq
        %v814 = vshrl.u32 %v813, 7
        %v815 = vsub.s32 1, %v814
        %v816 = vrot.slane %v560, %v815
        %v817 = vadd.f32 %v760, %v816
        %v818 = vadd.f32 %v764, %v816
        %v819 = vlaneseq
        %v820 = vshrl.u32 %v819, 7
        %v821 = vsub.s32 2, %v820
        %v822 = vrot.slane %v560, %v821
        %v823 = vadd.f32 %v801, %v822
        %v824 = vadd.f32 %v804, %v822
        %vm825 = vcmask 261120
        %v827 = vsel %vm825, %v811, 0
        %v830 = vsel %vm825, %v812, 0
        %v833 = vsel %vm825, %v817, 0
        %v836 = vsel %vm825, %v818, 0
        %838 = vmatprep.subr.mxu0 0.0
        %839 = vmatpush1.xpose.msra.mxu0 %v833
        %840 = vmatprep.subr.mxu0 0.0
        %841 = vmatpush1.xpose.msra.mxu0 %v836
        %842 = vmatprep.subr.mxu0 0.0
        %843 = vmatpush1.xpose.msra.mxu0 0.0
        %844 = vmatprep.subr.mxu0 0.0
        %845 = vmatpush1.xpose.msra.mxu0 0.0
        %846 = vmatprep.subr.mxu0 0.0
        %847 = vmatpush1.xpose.msra.mxu0 0.0
        %848 = vmatprep.subr.mxu0 0.0
        %849 = vmatpush1.xpose.msra.mxu0 0.0
        %850 = vmatprep.subr.mxu0 0.0
        %851 = vmatpush1.xpose.msra.mxu0 0.0
        %852 = vmatprep.subr.mxu0 0.0
        %853 = vmatpush1.xpose.msra.mxu0 0.0
        %854 = vmatprep.subr.mxu0 0.0
        %855 = vmatpush1.xpose.msra.mxu0 0.0
        %856 = vmatprep.subr.mxu0 0.0
        %857 = vmatpush1.xpose.msra.mxu0 0.0
        %858 = vmatprep.subr.mxu0 0.0
        %859 = vmatpush1.xpose.msra.mxu0 0.0
        %860 = vmatprep.subr.mxu0 0.0
        %861 = vmatpush1.xpose.msra.mxu0 0.0
        %862 = vmatprep.subr.mxu0 0.0
        %863 = vmatpush1.xpose.msra.mxu0 0.0
        %864 = vmatprep.subr.mxu0 0.0
        %865 = vmatpush1.xpose.msra.mxu0 0.0
        %866 = vmatprep.subr.mxu0 0.0
        %867 = vmatpush1.xpose.msra.mxu0 0.0
        %868 = vmatprep.subr.mxu0 0.0
        %869 = vmatpush1.xpose.msra.mxu0 0.0
        %870 = vmatprep.subr.mxu0 0.0
        %871 = vmatpush1.xpose.msra.mxu0 0.0
        %872 = vmatprep.subr.mxu0 0.0
        %873 = vmatpush1.xpose.msra.mxu0 0.0
        %874 = vmatprep.subr.mxu0 0.0
        %875 = vmatpush1.xpose.msra.mxu0 0.0
        %876 = vmatprep.subr.mxu0 0.0
        %877 = vmatpush1.xpose.msra.mxu0 0.0
        %878 = vmatprep.subr.mxu0 0.0
        %879 = vmatpush1.xpose.msra.mxu0 0.0
        %880 = vmatprep.subr.mxu0 0.0
        %881 = vmatpush1.xpose.msra.mxu0 0.0
        %882 = vmatprep.subr.mxu0 0.0
        %883 = vmatpush1.xpose.msra.mxu0 0.0
        %884 = vmatprep.subr.mxu0 0.0
        %885 = vmatpush1.xpose.msra.mxu0 0.0
        %886 = vmatprep.subr.mxu0 0.0
        %887 = vmatpush1.xpose.msra.mxu0 0.0
        %888 = vmatprep.subr.mxu0 0.0
        %889 = vmatpush1.xpose.msra.mxu0 0.0
        %890 = vmatprep.subr.mxu0 0.0
        %891 = vmatpush1.xpose.msra.mxu0 0.0
        %892 = vmatprep.subr.mxu0 0.0
        %893 = vmatpush1.xpose.msra.mxu0 0.0
        %894 = vmatprep.subr.mxu0 0.0
        %895 = vmatpush1.xpose.msra.mxu0 0.0
        %896 = vmatprep.subr.mxu0 0.0
        %897 = vmatpush1.xpose.msra.mxu0 0.0
        %898 = vmatprep.subr.mxu0 0.0
        %899 = vmatpush1.xpose.msra.mxu0 0.0
        %900 = vmatprep.subr.mxu0 0.0
        %901 = vmatpush1.xpose.msra.mxu0 0.0
        %902 = vmatprep.mubr.f32.mxu0 0.0
        %903 = vmatmul.mubr.f32.gmra.mrb[0].mxu0 %v827
        %v904 = vpop.f32.mrb[0].mxu0
        %v905 = vadd.f32 0.0, %v904
        %v906 = vpop.f32.mrb[0].mxu0
        %907 = vmatprep.mubr.f32.mxu0 0.0
        %908 = vmatmul.mubr.f32.gmra.mrb[0].mxu0 %v830
        %v909 = vpop.f32.mrb[0].mxu0
        %v910 = vadd.f32 0.0, %v909
        %v911 = vpop.f32.mrb[0].mxu0
        %912 = vdwg.mxu0
        %v913 = vmul.f32 %v905, 0.2
        %v914 = vmul.f32 %v910, 0.2
        %v915 = vsel %vm541, 1, 0
        %vm916 = vcmp.eq.s32.totalorder %v915, 1
        %v917 = vsel %vm916, %v913, -1e+30
        %v918 = vsel %vm916, %v914, -1e+30
        %vm919 = vcmask 130048
        %v920 = vsel %vm919, %v917, -inf
        %921 = vmax.xlane.f32.xlu0 %v920
        %v922 = vpop.xlane.xlu0 %921
        %v923 = vsel %vm919, %v918, -inf
        %924 = vmax.xlane.f32.xlu0 %v923
        %v925 = vpop.xlane.xlu0 %924
        %v926 = vsub.f32 %v917, %v922
        %v927 = vsub.f32 %v918, %v925
        %v928 = vmul.f32 %v926, 1.442695
        %v929 = vpow.pop %v928
        %v930 = vmul.f32 %v927, 1.442695
        %v931 = vpow.pop %v930
        %v932 = vsel %vm919, %v929, 0.0
        %933 = vadd.xlane.f32.xlu0 %v932
        %v934 = vpop.xlane.xlu0 %933
        %v935 = vsel %vm919, %v931, 0.0
        %936 = vadd.xlane.f32.xlu0 %v935
        %v937 = vpop.xlane.xlu0 %936
        %v938 = vrcp.pop %v934
        %v939 = vrcp.pop %v937
        %v940 = vmul.f32 %v929, %v938
        %v941 = vmul.f32 %v931, %v939
        %v943 = vsel %vm919, %v940, 0
        %v946 = vsel %vm919, %v941, 0
        %948 = vmatprep.subr.mxu0 0.0
        %949 = vmatpush1.msra.mxu0 %v823
        %950 = vmatprep.subr.mxu0 0.0
        %951 = vmatpush1.msra.mxu0 %v824
        %952 = vmatprep.subr.mxu0 0.0
        %953 = vmatpush1.msra.mxu0 0.0
        %954 = vmatprep.subr.mxu0 0.0
        %955 = vmatpush1.msra.mxu0 0.0
        %956 = vmatprep.subr.mxu0 0.0
        %957 = vmatpush1.msra.mxu0 0.0
        %958 = vmatprep.subr.mxu0 0.0
        %959 = vmatpush1.msra.mxu0 0.0
        %960 = vmatprep.subr.mxu0 0.0
        %961 = vmatpush1.msra.mxu0 0.0
        %962 = vmatprep.subr.mxu0 0.0
        %963 = vmatpush1.msra.mxu0 0.0
        %964 = vmatprep.subr.mxu0 0.0
        %965 = vmatpush1.msra.mxu0 0.0
        %966 = vmatprep.subr.mxu0 0.0
        %967 = vmatpush1.msra.mxu0 0.0
        %968 = vmatprep.subr.mxu0 0.0
        %969 = vmatpush1.msra.mxu0 0.0
        %970 = vmatprep.subr.mxu0 0.0
        %971 = vmatpush1.msra.mxu0 0.0
        %972 = vmatprep.subr.mxu0 0.0
        %973 = vmatpush1.msra.mxu0 0.0
        %974 = vmatprep.subr.mxu0 0.0
        %975 = vmatpush1.msra.mxu0 0.0
        %976 = vmatprep.subr.mxu0 0.0
        %977 = vmatpush1.msra.mxu0 0.0
        %978 = vmatprep.subr.mxu0 0.0
        %979 = vmatpush1.msra.mxu0 0.0
        %980 = vmatprep.subr.mxu0 0.0
        %981 = vmatpush1.msra.mxu0 0.0
        %982 = vmatprep.subr.mxu0 0.0
        %983 = vmatpush1.msra.mxu0 0.0
        %984 = vmatprep.subr.mxu0 0.0
        %985 = vmatpush1.msra.mxu0 0.0
        %986 = vmatprep.subr.mxu0 0.0
        %987 = vmatpush1.msra.mxu0 0.0
        %988 = vmatprep.subr.mxu0 0.0
        %989 = vmatpush1.msra.mxu0 0.0
        %990 = vmatprep.subr.mxu0 0.0
        %991 = vmatpush1.msra.mxu0 0.0
        %992 = vmatprep.subr.mxu0 0.0
        %993 = vmatpush1.msra.mxu0 0.0
        %994 = vmatprep.subr.mxu0 0.0
        %995 = vmatpush1.msra.mxu0 0.0
        %996 = vmatprep.subr.mxu0 0.0
        %997 = vmatpush1.msra.mxu0 0.0
        %998 = vmatprep.subr.mxu0 0.0
        %999 = vmatpush1.msra.mxu0 0.0
        %1000 = vmatprep.subr.mxu0 0.0
        %1001 = vmatpush1.msra.mxu0 0.0
        %1002 = vmatprep.subr.mxu0 0.0
        %1003 = vmatpush1.msra.mxu0 0.0
        %1004 = vmatprep.subr.mxu0 0.0
        %1005 = vmatpush1.msra.mxu0 0.0
        %1006 = vmatprep.subr.mxu0 0.0
        %1007 = vmatpush1.msra.mxu0 0.0
        %1008 = vmatprep.subr.mxu0 0.0
        %1009 = vmatpush1.msra.mxu0 0.0
        %1010 = vmatprep.subr.mxu0 0.0
        %1011 = vmatpush1.msra.mxu0 0.0
        %1012 = vmatprep.mubr.f32.mxu0 0.0
        %1013 = vmatmul.mubr.f32.gmra.mrb[0].mxu0 %v943
        %v1014 = vpop.f32.mrb[0].mxu0
        %v1015 = vadd.f32 0.0, %v1014
        %v1016 = vpop.f32.mrb[0].mxu0
        %1017 = vmatprep.mubr.f32.mxu0 0.0
        %1018 = vmatmul.mubr.f32.gmra.mrb[0].mxu0 %v946
        %v1019 = vpop.f32.mrb[0].mxu0
        %v1020 = vadd.f32 0.0, %v1019
        %v1021 = vpop.f32.mrb[0].mxu0
        %1022 = vdwg.mxu0
        %1023 = vrot.lane.b32.xlu0 %v811, 96
        %v1024 = vpop.permute.xlu0 %1023
        %1025 = vrot.lane.b32.xlu0 %v812, 96
        %v1026 = vpop.permute.xlu0 %1025
        %1027 = vrot.lane.b32.xlu0 %v817, 96
        %v1028 = vpop.permute.xlu0 %1027
        %1029 = vrot.lane.b32.xlu0 %v818, 96
        %v1030 = vpop.permute.xlu0 %1029
        %v1031 = vsel %vm825, %v1024, 0
        %v1033 = vsel %vm825, %v1026, 0
        %v1035 = vsel %vm825, %v1028, 0
        %v1037 = vsel %vm825, %v1030, 0
        %1039 = vmatprep.subr.mxu0 0.0
        %1040 = vmatpush1.xpose.msra.mxu0 %v1035
        %1041 = vmatprep.subr.mxu0 0.0
        %1042 = vmatpush1.xpose.msra.mxu0 %v1037
        %1043 = vmatprep.subr.mxu0 0.0
        %1044 = vmatpush1.xpose.msra.mxu0 0.0
        %1045 = vmatprep.subr.mxu0 0.0
        %1046 = vmatpush1.xpose.msra.mxu0 0.0
        %1047 = vmatprep.subr.mxu0 0.0
        %1048 = vmatpush1.xpose.msra.mxu0 0.0
        %1049 = vmatprep.subr.mxu0 0.0
        %1050 = vmatpush1.xpose.msra.mxu0 0.0
        %1051 = vmatprep.subr.mxu0 0.0
        %1052 = vmatpush1.xpose.msra.mxu0 0.0
        %1053 = vmatprep.subr.mxu0 0.0
        %1054 = vmatpush1.xpose.msra.mxu0 0.0
        %1055 = vmatprep.subr.mxu0 0.0
        %1056 = vmatpush1.xpose.msra.mxu0 0.0
        %1057 = vmatprep.subr.mxu0 0.0
        %1058 = vmatpush1.xpose.msra.mxu0 0.0
        %1059 = vmatprep.subr.mxu0 0.0
        %1060 = vmatpush1.xpose.msra.mxu0 0.0
        %1061 = vmatprep.subr.mxu0 0.0
        %1062 = vmatpush1.xpose.msra.mxu0 0.0
        %1063 = vmatprep.subr.mxu0 0.0
        %1064 = vmatpush1.xpose.msra.mxu0 0.0
        %1065 = vmatprep.subr.mxu0 0.0
        %1066 = vmatpush1.xpose.msra.mxu0 0.0
        %1067 = vmatprep.subr.mxu0 0.0
        %1068 = vmatpush1.xpose.msra.mxu0 0.0
        %1069 = vmatprep.subr.mxu0 0.0
        %1070 = vmatpush1.xpose.msra.mxu0 0.0
        %1071 = vmatprep.subr.mxu0 0.0
        %1072 = vmatpush1.xpose.msra.mxu0 0.0
        %1073 = vmatprep.subr.mxu0 0.0
        %1074 = vmatpush1.xpose.msra.mxu0 0.0
        %1075 = vmatprep.subr.mxu0 0.0
        %1076 = vmatpush1.xpose.msra.mxu0 0.0
        %1077 = vmatprep.subr.mxu0 0.0
        %1078 = vmatpush1.xpose.msra.mxu0 0.0
        %1079 = vmatprep.subr.mxu0 0.0
        %1080 = vmatpush1.xpose.msra.mxu0 0.0
        %1081 = vmatprep.subr.mxu0 0.0
        %1082 = vmatpush1.xpose.msra.mxu0 0.0
        %1083 = vmatprep.subr.mxu0 0.0
        %1084 = vmatpush1.xpose.msra.mxu0 0.0
        %1085 = vmatprep.subr.mxu0 0.0
        %1086 = vmatpush1.xpose.msra.mxu0 0.0
        %1087 = vmatprep.subr.mxu0 0.0
        %1088 = vmatpush1.xpose.msra.mxu0 0.0
        %1089 = vmatprep.subr.mxu0 0.0
        %1090 = vmatpush1.xpose.msra.mxu0 0.0
        %1091 = vmatprep.subr.mxu0 0.0
        %1092 = vmatpush1.xpose.msra.mxu0 0.0
        %1093 = vmatprep.subr.mxu0 0.0
        %1094 = vmatpush1.xpose.msra.mxu0 0.0
        %1095 = vmatprep.subr.mxu0 0.0
        %1096 = vmatpush1.xpose.msra.mxu0 0.0
        %1097 = vmatprep.subr.mxu0 0.0
        %1098 = vmatpush1.xpose.msra.mxu0 0.0
        %1099 = vmatprep.subr.mxu0 0.0
        %1100 = vmatpush1.xpose.msra.mxu0 0.0
        %1101 = vmatprep.subr.mxu0 0.0
        %1102 = vmatpush1.xpose.msra.mxu0 0.0
        %1103 = vmatprep.mubr.f32.mxu0 0.0
        %1104 = vmatmul.mubr.f32.gmra.mrb[0].mxu0 %v1031
        %v1105 = vpop.f32.mrb[0].mxu0
        %v1106 = vadd.f32 0.0, %v1105
        %v1107 = vpop.f32.mrb[0].mxu0
        %1108 = vmatprep.mubr.f32.mxu0 0.0
        %1109 = vmatmul.mubr.f32.gmra.mrb[0].mxu0 %v1033
        %v1110 = vpop.f32.mrb[0].mxu0
        %v1111 = vadd.f32 0.0, %v1110
        %v1112 = vpop.f32.mrb[0].mxu0
        %1113 = vdwg.mxu0
        %v1114 = vmul.f32 %v1106, 0.2
        %v1115 = vmul.f32 %v1111, 0.2
        %v1116 = vsel %vm916, %v1114, -1e+30
        %v1117 = vsel %vm916, %v1115, -1e+30
        %v1118 = vsel %vm919, %v1116, -inf
        %1119 = vmax.xlane.f32.xlu0 %v1118
        %v1120 = vpop.xlane.xlu0 %1119
        %v1121 = vsel %vm919, %v1117, -inf
        %1122 = vmax.xlane.f32.xlu0 %v1121
        %v1123 = vpop.xlane.xlu0 %1122
        %v1124 = vsub.f32 %v1116, %v1120
        %v1125 = vsub.f32 %v1117, %v1123
        %v1126 = vmul.f32 %v1124, 1.442695
        %v1127 = vpow.pop %v1126
        %v1128 = vmul.f32 %v1125, 1.442695
        %v1129 = vpow.pop %v1128
        %v1130 = vsel %vm919, %v1127, 0.0
        %1131 = vadd.xlane.f32.xlu0 %v1130
        %v1132 = vpop.xlane.xlu0 %1131
        %v1133 = vsel %vm919, %v1129, 0.0
        %1134 = vadd.xlane.f32.xlu0 %v1133
        %v1135 = vpop.xlane.xlu0 %1134
        %v1136 = vrcp.pop %v1132
        %v1137 = vrcp.pop %v1135
        %v1138 = vmul.f32 %v1127, %v1136
        %v1139 = vmul.f32 %v1129, %v1137
        %1142 = vrot.lane.b32.xlu0 %v823, 96
        %v1143 = vpop.permute.xlu0 %1142
        %1144 = vrot.lane.b32.xlu0 %v824, 96
        %v1145 = vpop.permute.xlu0 %1144
        %v1149 = vsel %vm919, %v1138, 0
        %v1152 = vsel %vm919, %v1139, 0
        %1154 = vmatprep.subr.mxu0 0.0
        %1155 = vmatpush1.msra.mxu0 %v1143
        %1156 = vmatprep.subr.mxu0 0.0
        %1157 = vmatpush1.msra.mxu0 %v1145
        %1158 = vmatprep.subr.mxu0 0.0
        %1159 = vmatpush1.msra.mxu0 0.0
        %1160 = vmatprep.subr.mxu0 0.0
        %1161 = vmatpush1.msra.mxu0 0.0
        %1162 = vmatprep.subr.mxu0 0.0
        %1163 = vmatpush1.msra.mxu0 0.0
        %1164 = vmatprep.subr.mxu0 0.0
        %1165 = vmatpush1.msra.mxu0 0.0
        %1166 = vmatprep.subr.mxu0 0.0
        %1167 = vmatpush1.msra.mxu0 0.0
        %1168 = vmatprep.subr.mxu0 0.0
        %1169 = vmatpush1.msra.mxu0 0.0
        %1170 = vmatprep.subr.mxu0 0.0
        %1171 = vmatpush1.msra.mxu0 0.0
        %1172 = vmatprep.subr.mxu0 0.0
        %1173 = vmatpush1.msra.mxu0 0.0
        %1174 = vmatprep.subr.mxu0 0.0
        %1175 = vmatpush1.msra.mxu0 0.0
        %1176 = vmatprep.subr.mxu0 0.0
        %1177 = vmatpush1.msra.mxu0 0.0
        %1178 = vmatprep.subr.mxu0 0.0
        %1179 = vmatpush1.msra.mxu0 0.0
        %1180 = vmatprep.subr.mxu0 0.0
        %1181 = vmatpush1.msra.mxu0 0.0
        %1182 = vmatprep.subr.mxu0 0.0
        %1183 = vmatpush1.msra.mxu0 0.0
        %1184 = vmatprep.subr.mxu0 0.0
        %1185 = vmatpush1.msra.mxu0 0.0
        %1186 = vmatprep.subr.mxu0 0.0
        %1187 = vmatpush1.msra.mxu0 0.0
        %1188 = vmatprep.subr.mxu0 0.0
        %1189 = vmatpush1.msra.mxu0 0.0
        %1190 = vmatprep.subr.mxu0 0.0
        %1191 = vmatpush1.msra.mxu0 0.0
        %1192 = vmatprep.subr.mxu0 0.0
        %1193 = vmatpush1.msra.mxu0 0.0
        %1194 = vmatprep.subr.mxu0 0.0
        %1195 = vmatpush1.msra.mxu0 0.0
        %1196 = vmatprep.subr.mxu0 0.0
        %1197 = vmatpush1.msra.mxu0 0.0
        %1198 = vmatprep.subr.mxu0 0.0
        %1199 = vmatpush1.msra.mxu0 0.0
        %1200 = vmatprep.subr.mxu0 0.0
        %1201 = vmatpush1.msra.mxu0 0.0
        %1202 = vmatprep.subr.mxu0 0.0
        %1203 = vmatpush1.msra.mxu0 0.0
        %1204 = vmatprep.subr.mxu0 0.0
        %1205 = vmatpush1.msra.mxu0 0.0
        %1206 = vmatprep.subr.mxu0 0.0
        %1207 = vmatpush1.msra.mxu0 0.0
        %1208 = vmatprep.subr.mxu0 0.0
        %1209 = vmatpush1.msra.mxu0 0.0
        %1210 = vmatprep.subr.mxu0 0.0
        %1211 = vmatpush1.msra.mxu0 0.0
        %1212 = vmatprep.subr.mxu0 0.0
        %1213 = vmatpush1.msra.mxu0 0.0
        %1214 = vmatprep.subr.mxu0 0.0
        %1215 = vmatpush1.msra.mxu0 0.0
        %1216 = vmatprep.subr.mxu0 0.0
        %1217 = vmatpush1.msra.mxu0 0.0
        %1218 = vmatprep.mubr.f32.mxu0 0.0
        %1219 = vmatmul.mubr.f32.gmra.mrb[0].mxu0 %v1149
        %v1220 = vpop.f32.mrb[0].mxu0
        %v1221 = vadd.f32 0.0, %v1220
        %v1222 = vpop.f32.mrb[0].mxu0
        %1223 = vmatprep.mubr.f32.mxu0 0.0
        %1224 = vmatmul.mubr.f32.gmra.mrb[0].mxu0 %v1152
        %v1225 = vpop.f32.mrb[0].mxu0
        %v1226 = vadd.f32 0.0, %v1225
        %v1227 = vpop.f32.mrb[0].mxu0
        %1228 = vdwg.mxu0
        %1229 = vrot.lane.b32.xlu0 %v811, 64
        %v1230 = vpop.permute.xlu0 %1229
        %1231 = vrot.lane.b32.xlu0 %v812, 64
        %v1232 = vpop.permute.xlu0 %1231
        %1233 = vrot.lane.b32.xlu0 %v817, 64
        %v1234 = vpop.permute.xlu0 %1233
        %1235 = vrot.lane.b32.xlu0 %v818, 64
        %v1236 = vpop.permute.xlu0 %1235
        %v1237 = vsel %vm825, %v1230, 0
        %v1239 = vsel %vm825, %v1232, 0
        %v1241 = vsel %vm825, %v1234, 0
        %v1243 = vsel %vm825, %v1236, 0
        %1245 = vmatprep.subr.mxu0 0.0
        %1246 = vmatpush1.xpose.msra.mxu0 %v1241
        %1247 = vmatprep.subr.mxu0 0.0
        %1248 = vmatpush1.xpose.msra.mxu0 %v1243
        %1249 = vmatprep.subr.mxu0 0.0
        %1250 = vmatpush1.xpose.msra.mxu0 0.0
        %1251 = vmatprep.subr.mxu0 0.0
        %1252 = vmatpush1.xpose.msra.mxu0 0.0
        %1253 = vmatprep.subr.mxu0 0.0
        %1254 = vmatpush1.xpose.msra.mxu0 0.0
        %1255 = vmatprep.subr.mxu0 0.0
        %1256 = vmatpush1.xpose.msra.mxu0 0.0
        %1257 = vmatprep.subr.mxu0 0.0
        %1258 = vmatpush1.xpose.msra.mxu0 0.0
        %1259 = vmatprep.subr.mxu0 0.0
        %1260 = vmatpush1.xpose.msra.mxu0 0.0
        %1261 = vmatprep.subr.mxu0 0.0
        %1262 = vmatpush1.xpose.msra.mxu0 0.0
        %1263 = vmatprep.subr.mxu0 0.0
        %1264 = vmatpush1.xpose.msra.mxu0 0.0
        %1265 = vmatprep.subr.mxu0 0.0
        %1266 = vmatpush1.xpose.msra.mxu0 0.0
        %1267 = vmatprep.subr.mxu0 0.0
        %1268 = vmatpush1.xpose.msra.mxu0 0.0
        %1269 = vmatprep.subr.mxu0 0.0
        %1270 = vmatpush1.xpose.msra.mxu0 0.0
        %1271 = vmatprep.subr.mxu0 0.0
        %1272 = vmatpush1.xpose.msra.mxu0 0.0
        %1273 = vmatprep.subr.mxu0 0.0
        %1274 = vmatpush1.xpose.msra.mxu0 0.0
        %1275 = vmatprep.subr.mxu0 0.0
        %1276 = vmatpush1.xpose.msra.mxu0 0.0
        %1277 = vmatprep.subr.mxu0 0.0
        %1278 = vmatpush1.xpose.msra.mxu0 0.0
        %1279 = vmatprep.subr.mxu0 0.0
        %1280 = vmatpush1.xpose.msra.mxu0 0.0
        %1281 = vmatprep.subr.mxu0 0.0
        %1282 = vmatpush1.xpose.msra.mxu0 0.0
        %1283 = vmatprep.subr.mxu0 0.0
        %1284 = vmatpush1.xpose.msra.mxu0 0.0
        %1285 = vmatprep.subr.mxu0 0.0
        %1286 = vmatpush1.xpose.msra.mxu0 0.0
        %1287 = vmatprep.subr.mxu0 0.0
        %1288 = vmatpush1.xpose.msra.mxu0 0.0
        %1289 = vmatprep.subr.mxu0 0.0
        %1290 = vmatpush1.xpose.msra.mxu0 0.0
        %1291 = vmatprep.subr.mxu0 0.0
        %1292 = vmatpush1.xpose.msra.mxu0 0.0
        %1293 = vmatprep.subr.mxu0 0.0
        %1294 = vmatpush1.xpose.msra.mxu0 0.0
        %1295 = vmatprep.subr.mxu0 0.0
        %1296 = vmatpush1.xpose.msra.mxu0 0.0
        %1297 = vmatprep.subr.mxu0 0.0
        %1298 = vmatpush1.xpose.msra.mxu0 0.0
        %1299 = vmatprep.subr.mxu0 0.0
        %1300 = vmatpush1.xpose.msra.mxu0 0.0
        %1301 = vmatprep.subr.mxu0 0.0
        %1302 = vmatpush1.xpose.msra.mxu0 0.0
        %1303 = vmatprep.subr.mxu0 0.0
        %1304 = vmatpush1.xpose.msra.mxu0 0.0
        %1305 = vmatprep.subr.mxu0 0.0
        %1306 = vmatpush1.xpose.msra.mxu0 0.0
        %1307 = vmatprep.subr.mxu0 0.0
        %1308 = vmatpush1.xpose.msra.mxu0 0.0
        %1309 = vmatprep.mubr.f32.mxu0 0.0
        %1310 = vmatmul.mubr.f32.gmra.mrb[0].mxu0 %v1237
        %v1311 = vpop.f32.mrb[0].mxu0
        %v1312 = vadd.f32 0.0, %v1311
        %v1313 = vpop.f32.mrb[0].mxu0
        %1314 = vmatprep.mubr.f32.mxu0 0.0
        %1315 = vmatmul.mubr.f32.gmra.mrb[0].mxu0 %v1239
        %v1316 = vpop.f32.mrb[0].mxu0
        %v1317 = vadd.f32 0.0, %v1316
        %v1318 = vpop.f32.mrb[0].mxu0
        %1319 = vdwg.mxu0
        %v1320 = vmul.f32 %v1312, 0.2
        %v1321 = vmul.f32 %v1317, 0.2
        %v1322 = vsel %vm916, %v1320, -1e+30
        %v1323 = vsel %vm916, %v1321, -1e+30
        %v1324 = vsel %vm919, %v1322, -inf
        %1325 = vmax.xlane.f32.xlu0 %v1324
        %v1326 = vpop.xlane.xlu0 %1325
        %v1327 = vsel %vm919, %v1323, -inf
        %1328 = vmax.xlane.f32.xlu0 %v1327
        %v1329 = vpop.xlane.xlu0 %1328
        %v1330 = vsub.f32 %v1322, %v1326
        %v1331 = vsub.f32 %v1323, %v1329
        %v1332 = vmul.f32 %v1330, 1.442695
        %v1333 = vpow.pop %v1332
        %v1334 = vmul.f32 %v1331, 1.442695
        %v1335 = vpow.pop %v1334
        %v1336 = vsel %vm919, %v1333, 0.0
        %1337 = vadd.xlane.f32.xlu0 %v1336
        %v1338 = vpop.xlane.xlu0 %1337
        %v1339 = vsel %vm919, %v1335, 0.0
        %1340 = vadd.xlane.f32.xlu0 %v1339
        %v1341 = vpop.xlane.xlu0 %1340
        %v1342 = vrcp.pop %v1338
        %v1343 = vrcp.pop %v1341
        %v1344 = vmul.f32 %v1333, %v1342
        %v1345 = vmul.f32 %v1335, %v1343
        %1346 = vrot.lane.b32.xlu0 %v823, 64
        %v1347 = vpop.permute.xlu0 %1346
        %1348 = vrot.lane.b32.xlu0 %v824, 64
        %v1349 = vpop.permute.xlu0 %1348
        %v1353 = vsel %vm919, %v1344, 0
        %v1356 = vsel %vm919, %v1345, 0
        %1358 = vmatprep.subr.mxu0 0.0
        %1359 = vmatpush1.msra.mxu0 %v1347
        %1360 = vmatprep.subr.mxu0 0.0
        %1361 = vmatpush1.msra.mxu0 %v1349
        %1362 = vmatprep.subr.mxu0 0.0
        %1363 = vmatpush1.msra.mxu0 0.0
        %1364 = vmatprep.subr.mxu0 0.0
        %1365 = vmatpush1.msra.mxu0 0.0
        %1366 = vmatprep.subr.mxu0 0.0
        %1367 = vmatpush1.msra.mxu0 0.0
        %1368 = vmatprep.subr.mxu0 0.0
        %1369 = vmatpush1.msra.mxu0 0.0
        %1370 = vmatprep.subr.mxu0 0.0
        %1371 = vmatpush1.msra.mxu0 0.0
        %1372 = vmatprep.subr.mxu0 0.0
        %1373 = vmatpush1.msra.mxu0 0.0
        %1374 = vmatprep.subr.mxu0 0.0
        %1375 = vmatpush1.msra.mxu0 0.0
        %1376 = vmatprep.subr.mxu0 0.0
        %1377 = vmatpush1.msra.mxu0 0.0
        %1378 = vmatprep.subr.mxu0 0.0
        %1379 = vmatpush1.msra.mxu0 0.0
        %1380 = vmatprep.subr.mxu0 0.0
        %1381 = vmatpush1.msra.mxu0 0.0
        %1382 = vmatprep.subr.mxu0 0.0
        %1383 = vmatpush1.msra.mxu0 0.0
        %1384 = vmatprep.subr.mxu0 0.0
        %1385 = vmatpush1.msra.mxu0 0.0
        %1386 = vmatprep.subr.mxu0 0.0
        %1387 = vmatpush1.msra.mxu0 0.0
        %1388 = vmatprep.subr.mxu0 0.0
        %1389 = vmatpush1.msra.mxu0 0.0
        %1390 = vmatprep.subr.mxu0 0.0
        %1391 = vmatpush1.msra.mxu0 0.0
        %1392 = vmatprep.subr.mxu0 0.0
        %1393 = vmatpush1.msra.mxu0 0.0
        %1394 = vmatprep.subr.mxu0 0.0
        %1395 = vmatpush1.msra.mxu0 0.0
        %1396 = vmatprep.subr.mxu0 0.0
        %1397 = vmatpush1.msra.mxu0 0.0
        %1398 = vmatprep.subr.mxu0 0.0
        %1399 = vmatpush1.msra.mxu0 0.0
        %1400 = vmatprep.subr.mxu0 0.0
        %1401 = vmatpush1.msra.mxu0 0.0
        %1402 = vmatprep.subr.mxu0 0.0
        %1403 = vmatpush1.msra.mxu0 0.0
        %1404 = vmatprep.subr.mxu0 0.0
        %1405 = vmatpush1.msra.mxu0 0.0
        %1406 = vmatprep.subr.mxu0 0.0
        %1407 = vmatpush1.msra.mxu0 0.0
        %1408 = vmatprep.subr.mxu0 0.0
        %1409 = vmatpush1.msra.mxu0 0.0
        %1410 = vmatprep.subr.mxu0 0.0
        %1411 = vmatpush1.msra.mxu0 0.0
        %1412 = vmatprep.subr.mxu0 0.0
        %1413 = vmatpush1.msra.mxu0 0.0
        %1414 = vmatprep.subr.mxu0 0.0
        %1415 = vmatpush1.msra.mxu0 0.0
        %1416 = vmatprep.subr.mxu0 0.0
        %1417 = vmatpush1.msra.mxu0 0.0
        %1418 = vmatprep.subr.mxu0 0.0
        %1419 = vmatpush1.msra.mxu0 0.0
        %1420 = vmatprep.subr.mxu0 0.0
        %1421 = vmatpush1.msra.mxu0 0.0
        %1422 = vmatprep.mubr.f32.mxu0 0.0
        %1423 = vmatmul.mubr.f32.gmra.mrb[0].mxu0 %v1353
        %v1424 = vpop.f32.mrb[0].mxu0
        %v1425 = vadd.f32 0.0, %v1424
        %v1426 = vpop.f32.mrb[0].mxu0
        %1427 = vmatprep.mubr.f32.mxu0 0.0
        %1428 = vmatmul.mubr.f32.gmra.mrb[0].mxu0 %v1356
        %v1429 = vpop.f32.mrb[0].mxu0
        %v1430 = vadd.f32 0.0, %v1429
        %v1431 = vpop.f32.mrb[0].mxu0
        %1432 = vdwg.mxu0
        %1433 = vrot.lane.b32.xlu0 %v811, 32
        %v1434 = vpop.permute.xlu0 %1433
        %1435 = vrot.lane.b32.xlu0 %v812, 32
        %v1436 = vpop.permute.xlu0 %1435
        %1437 = vrot.lane.b32.xlu0 %v817, 32
        %v1438 = vpop.permute.xlu0 %1437
        %1439 = vrot.lane.b32.xlu0 %v818, 32
        %v1440 = vpop.permute.xlu0 %1439
        %v1441 = vsel %vm825, %v1434, 0
        %v1443 = vsel %vm825, %v1436, 0
        %v1445 = vsel %vm825, %v1438, 0
        %v1447 = vsel %vm825, %v1440, 0
        %1449 = vmatprep.subr.mxu0 0.0
        %1450 = vmatpush1.xpose.msra.mxu0 %v1445
        %1451 = vmatprep.subr.mxu0 0.0
        %1452 = vmatpush1.xpose.msra.mxu0 %v1447
        %1453 = vmatprep.subr.mxu0 0.0
        %1454 = vmatpush1.xpose.msra.mxu0 0.0
        %1455 = vmatprep.subr.mxu0 0.0
        %1456 = vmatpush1.xpose.msra.mxu0 0.0
        %1457 = vmatprep.subr.mxu0 0.0
        %1458 = vmatpush1.xpose.msra.mxu0 0.0
        %1459 = vmatprep.subr.mxu0 0.0
        %1460 = vmatpush1.xpose.msra.mxu0 0.0
        %1461 = vmatprep.subr.mxu0 0.0
        %1462 = vmatpush1.xpose.msra.mxu0 0.0
        %1463 = vmatprep.subr.mxu0 0.0
        %1464 = vmatpush1.xpose.msra.mxu0 0.0
        %1465 = vmatprep.subr.mxu0 0.0
        %1466 = vmatpush1.xpose.msra.mxu0 0.0
        %1467 = vmatprep.subr.mxu0 0.0
        %1468 = vmatpush1.xpose.msra.mxu0 0.0
        %1469 = vmatprep.subr.mxu0 0.0
        %1470 = vmatpush1.xpose.msra.mxu0 0.0
        %1471 = vmatprep.subr.mxu0 0.0
        %1472 = vmatpush1.xpose.msra.mxu0 0.0
        %1473 = vmatprep.subr.mxu0 0.0
        %1474 = vmatpush1.xpose.msra.mxu0 0.0
        %1475 = vmatprep.subr.mxu0 0.0
        %1476 = vmatpush1.xpose.msra.mxu0 0.0
        %1477 = vmatprep.subr.mxu0 0.0
        %1478 = vmatpush1.xpose.msra.mxu0 0.0
        %1479 = vmatprep.subr.mxu0 0.0
        %1480 = vmatpush1.xpose.msra.mxu0 0.0
        %1481 = vmatprep.subr.mxu0 0.0
        %1482 = vmatpush1.xpose.msra.mxu0 0.0
        %1483 = vmatprep.subr.mxu0 0.0
        %1484 = vmatpush1.xpose.msra.mxu0 0.0
        %1485 = vmatprep.subr.mxu0 0.0
        %1486 = vmatpush1.xpose.msra.mxu0 0.0
        %1487 = vmatprep.subr.mxu0 0.0
        %1488 = vmatpush1.xpose.msra.mxu0 0.0
        %1489 = vmatprep.subr.mxu0 0.0
        %1490 = vmatpush1.xpose.msra.mxu0 0.0
        %1491 = vmatprep.subr.mxu0 0.0
        %1492 = vmatpush1.xpose.msra.mxu0 0.0
        %1493 = vmatprep.subr.mxu0 0.0
        %1494 = vmatpush1.xpose.msra.mxu0 0.0
        %1495 = vmatprep.subr.mxu0 0.0
        %1496 = vmatpush1.xpose.msra.mxu0 0.0
        %1497 = vmatprep.subr.mxu0 0.0
        %1498 = vmatpush1.xpose.msra.mxu0 0.0
        %1499 = vmatprep.subr.mxu0 0.0
        %1500 = vmatpush1.xpose.msra.mxu0 0.0
        %1501 = vmatprep.subr.mxu0 0.0
        %1502 = vmatpush1.xpose.msra.mxu0 0.0
        %1503 = vmatprep.subr.mxu0 0.0
        %1504 = vmatpush1.xpose.msra.mxu0 0.0
        %1505 = vmatprep.subr.mxu0 0.0
        %1506 = vmatpush1.xpose.msra.mxu0 0.0
        %1507 = vmatprep.subr.mxu0 0.0
        %1508 = vmatpush1.xpose.msra.mxu0 0.0
        %1509 = vmatprep.subr.mxu0 0.0
        %1510 = vmatpush1.xpose.msra.mxu0 0.0
        %1511 = vmatprep.subr.mxu0 0.0
        %1512 = vmatpush1.xpose.msra.mxu0 0.0
        %1513 = vmatprep.mubr.f32.mxu0 0.0
        %1514 = vmatmul.mubr.f32.gmra.mrb[0].mxu0 %v1441
        %v1515 = vpop.f32.mrb[0].mxu0
        %v1516 = vadd.f32 0.0, %v1515
        %v1517 = vpop.f32.mrb[0].mxu0
        %1518 = vmatprep.mubr.f32.mxu0 0.0
        %1519 = vmatmul.mubr.f32.gmra.mrb[0].mxu0 %v1443
        %v1520 = vpop.f32.mrb[0].mxu0
        %v1521 = vadd.f32 0.0, %v1520
        %v1522 = vpop.f32.mrb[0].mxu0
        %1523 = vdwg.mxu0
        %v1524 = vmul.f32 %v1516, 0.2
        %v1525 = vmul.f32 %v1521, 0.2
        %v1526 = vsel %vm916, %v1524, -1e+30
        %v1527 = vsel %vm916, %v1525, -1e+30
        %v1528 = vsel %vm919, %v1526, -inf
        %1529 = vmax.xlane.f32.xlu0 %v1528
        %v1530 = vpop.xlane.xlu0 %1529
        %v1531 = vsel %vm919, %v1527, -inf
        %1532 = vmax.xlane.f32.xlu0 %v1531
        %v1533 = vpop.xlane.xlu0 %1532
        %v1534 = vsub.f32 %v1526, %v1530
        %v1535 = vsub.f32 %v1527, %v1533
        %v1536 = vmul.f32 %v1534, 1.442695
        %v1537 = vpow.pop %v1536
        %v1538 = vmul.f32 %v1535, 1.442695
        %v1539 = vpow.pop %v1538
        %v1540 = vsel %vm919, %v1537, 0.0
        %1541 = vadd.xlane.f32.xlu0 %v1540
        %v1542 = vpop.xlane.xlu0 %1541
        %v1543 = vsel %vm919, %v1539, 0.0
        %1544 = vadd.xlane.f32.xlu0 %v1543
        %v1545 = vpop.xlane.xlu0 %1544
        %v1546 = vrcp.pop %v1542
        %v1547 = vrcp.pop %v1545
        %v1548 = vmul.f32 %v1537, %v1546
        %v1549 = vmul.f32 %v1539, %v1547
        %1550 = vrot.lane.b32.xlu0 %v823, 32
        %v1551 = vpop.permute.xlu0 %1550
        %1552 = vrot.lane.b32.xlu0 %v824, 32
        %v1553 = vpop.permute.xlu0 %1552
        %v1557 = vsel %vm919, %v1548, 0
        %v1560 = vsel %vm919, %v1549, 0
        %1562 = vmatprep.subr.mxu0 0.0
        %1563 = vmatpush1.msra.mxu0 %v1551
        %1564 = vmatprep.subr.mxu0 0.0
        %1565 = vmatpush1.msra.mxu0 %v1553
        %1566 = vmatprep.subr.mxu0 0.0
        %1567 = vmatpush1.msra.mxu0 0.0
        %1568 = vmatprep.subr.mxu0 0.0
        %1569 = vmatpush1.msra.mxu0 0.0
        %1570 = vmatprep.subr.mxu0 0.0
        %1571 = vmatpush1.msra.mxu0 0.0
        %1572 = vmatprep.subr.mxu0 0.0
        %1573 = vmatpush1.msra.mxu0 0.0
        %1574 = vmatprep.subr.mxu0 0.0
        %1575 = vmatpush1.msra.mxu0 0.0
        %1576 = vmatprep.subr.mxu0 0.0
        %1577 = vmatpush1.msra.mxu0 0.0
        %1578 = vmatprep.subr.mxu0 0.0
        %1579 = vmatpush1.msra.mxu0 0.0
        %1580 = vmatprep.subr.mxu0 0.0
        %1581 = vmatpush1.msra.mxu0 0.0
        %1582 = vmatprep.subr.mxu0 0.0
        %1583 = vmatpush1.msra.mxu0 0.0
        %1584 = vmatprep.subr.mxu0 0.0
        %1585 = vmatpush1.msra.mxu0 0.0
        %1586 = vmatprep.subr.mxu0 0.0
        %1587 = vmatpush1.msra.mxu0 0.0
        %1588 = vmatprep.subr.mxu0 0.0
        %1589 = vmatpush1.msra.mxu0 0.0
        %1590 = vmatprep.subr.mxu0 0.0
        %1591 = vmatpush1.msra.mxu0 0.0
        %1592 = vmatprep.subr.mxu0 0.0
        %1593 = vmatpush1.msra.mxu0 0.0
        %1594 = vmatprep.subr.mxu0 0.0
        %1595 = vmatpush1.msra.mxu0 0.0
        %1596 = vmatprep.subr.mxu0 0.0
        %1597 = vmatpush1.msra.mxu0 0.0
        %1598 = vmatprep.subr.mxu0 0.0
        %1599 = vmatpush1.msra.mxu0 0.0
        %1600 = vmatprep.subr.mxu0 0.0
        %1601 = vmatpush1.msra.mxu0 0.0
        %1602 = vmatprep.subr.mxu0 0.0
        %1603 = vmatpush1.msra.mxu0 0.0
        %1604 = vmatprep.subr.mxu0 0.0
        %1605 = vmatpush1.msra.mxu0 0.0
        %1606 = vmatprep.subr.mxu0 0.0
        %1607 = vmatpush1.msra.mxu0 0.0
        %1608 = vmatprep.subr.mxu0 0.0
        %1609 = vmatpush1.msra.mxu0 0.0
        %1610 = vmatprep.subr.mxu0 0.0
        %1611 = vmatpush1.msra.mxu0 0.0
        %1612 = vmatprep.subr.mxu0 0.0
        %1613 = vmatpush1.msra.mxu0 0.0
        %1614 = vmatprep.subr.mxu0 0.0
        %1615 = vmatpush1.msra.mxu0 0.0
        %1616 = vmatprep.subr.mxu0 0.0
        %1617 = vmatpush1.msra.mxu0 0.0
        %1618 = vmatprep.subr.mxu0 0.0
        %1619 = vmatpush1.msra.mxu0 0.0
        %1620 = vmatprep.subr.mxu0 0.0
        %1621 = vmatpush1.msra.mxu0 0.0
        %1622 = vmatprep.subr.mxu0 0.0
        %1623 = vmatpush1.msra.mxu0 0.0
        %1624 = vmatprep.subr.mxu0 0.0
        %1625 = vmatpush1.msra.mxu0 0.0
        %1626 = vmatprep.mubr.f32.mxu0 0.0
        %1627 = vmatmul.mubr.f32.gmra.mrb[0].mxu0 %v1557
        %v1628 = vpop.f32.mrb[0].mxu0
        %v1629 = vadd.f32 0.0, %v1628
        %v1630 = vpop.f32.mrb[0].mxu0
        %1631 = vmatprep.mubr.f32.mxu0 0.0
        %1632 = vmatmul.mubr.f32.gmra.mrb[0].mxu0 %v1560
        %v1633 = vpop.f32.mrb[0].mxu0
        %v1634 = vadd.f32 0.0, %v1633
        %v1635 = vpop.f32.mrb[0].mxu0
        %1636 = vdwg.mxu0
        %1639 = vrot.lane.b32.xlu0 %v1221, 32
        %v1640 = vpop.permute.xlu0 %1639
        %1641 = vrot.lane.b32.xlu0 %v1226, 32
        %v1642 = vpop.permute.xlu0 %1641
        %1647 = vrot.lane.b32.xlu0 %v1425, 64
        %v1648 = vpop.permute.xlu0 %1647
        %1649 = vrot.lane.b32.xlu0 %v1430, 64
        %v1650 = vpop.permute.xlu0 %1649
        %1655 = vrot.lane.b32.xlu0 %v1629, 96
        %v1656 = vpop.permute.xlu0 %1655
        %1657 = vrot.lane.b32.xlu0 %v1634, 96
        %v1658 = vpop.permute.xlu0 %1657
        %v1661 = vsel %vm825, %v1015, %v1640
        %v1662 = vsel %vm825, %v1020, %v1642
        %vm1663 = vcmask 523264
        %v1664 = vsel %vm1663, %v1661, %v1648
        %v1665 = vsel %vm1663, %v1662, %v1650
        %vm1666 = vcmask 785408
        %v1667 = vsel %vm1666, %v1664, %v1656
        %v1668 = vsel %vm1666, %v1665, %v1658
        %v1669 = vpack.c.bf16 %v1668, %v1667
        %v1670 = vld [vmem:[%s529] sm:$0xf]
        %v1671 = vld [vmem:[%s529 + $0x4] sm:$0xf]
        %v1672 = vld [vmem:[%s529 + $0x8] sm:$0xf]
        %v1673 = vld [vmem:[%s529 + $0xc] sm:$0xf]
        %v1674 = vld [vmem:[%s529 + $0x10] sm:$0xf]
        %v1675 = vld [vmem:[%s529 + $0x14] sm:$0xf]
        %v1676 = vld [vmem:[%s529 + $0x18] sm:$0xf]
        %v1677 = vld [vmem:[%s529 + $0x1c] sm:$0xf]
        %v1678 = vld [vmem:[%s529 + $0x20] sm:$0xf]
        %v1679 = vld [vmem:[%s529 + $0x24] sm:$0xf]
        %v1680 = vld [vmem:[%s529 + $0x28] sm:$0xf]
        %v1681 = vld [vmem:[%s529 + $0x2c] sm:$0xf]
        %v1682 = vld [vmem:[%s529 + $0x30] sm:$0xf]
        %v1683 = vld [vmem:[%s529 + $0x34] sm:$0xf]
        %v1684 = vld [vmem:[%s529 + $0x38] sm:$0xf]
        %v1685 = vld [vmem:[%s529 + $0x3c] sm:$0xf]
        %v1686 = vlaneseq
        %v1687 = vshrl.u32 %v1686, 7
        %v1688 = vsub.s32 3, %v1687
        %v1689 = vrot.slane %v560, %v1688
        %v1706 = vunpack.c.l.b16 %v1670
        %v1707 = vunpack.c.l.b16 %v1671
        %v1708 = vunpack.c.l.b16 %v1672
        %v1709 = vunpack.c.l.b16 %v1673
        %v1710 = vunpack.c.l.b16 %v1674
        %v1711 = vunpack.c.l.b16 %v1675
        %v1712 = vunpack.c.l.b16 %v1676
        %v1713 = vunpack.c.l.b16 %v1677
        %v1714 = vunpack.c.l.b16 %v1678
        %v1715 = vunpack.c.l.b16 %v1679
        %v1716 = vunpack.c.l.b16 %v1680
        %v1717 = vunpack.c.l.b16 %v1681
        %v1718 = vunpack.c.l.b16 %v1682
        %v1719 = vunpack.c.l.b16 %v1683
        %v1720 = vunpack.c.l.b16 %v1684
        %v1721 = vunpack.c.l.b16 %v1685
        %v1722 = vpack.c.b16 %v1707, %v1706
        %v1723 = vpack.c.b16 %v1709, %v1708
        %v1724 = vpack.c.b16 %v1711, %v1710
        %v1725 = vpack.c.b16 %v1713, %v1712
        %v1726 = vpack.c.b16 %v1715, %v1714
        %v1727 = vpack.c.b16 %v1717, %v1716
        %v1728 = vpack.c.b16 %v1719, %v1718
        %v1729 = vpack.c.b16 %v1721, %v1720
        %1738 = vmatprep.subr.bf16.mxu0 0
        %1739 = vmatpush1.bf16.msra.mxu0 %v1722
        %1740 = vmatprep.subr.bf16.mxu0 0
        %1741 = vmatpush1.bf16.msra.mxu0 %v1723
        %1742 = vmatprep.subr.bf16.mxu0 0
        %1743 = vmatpush1.bf16.msra.mxu0 %v1724
        %1744 = vmatprep.subr.bf16.mxu0 0
        %1745 = vmatpush1.bf16.msra.mxu0 %v1725
        %1746 = vmatprep.subr.bf16.mxu0 0
        %1747 = vmatpush1.bf16.msra.mxu0 %v1726
        %1748 = vmatprep.subr.bf16.mxu0 0
        %1749 = vmatpush1.bf16.msra.mxu0 %v1727
        %1750 = vmatprep.subr.bf16.mxu0 0
        %1751 = vmatpush1.bf16.msra.mxu0 %v1728
        %1752 = vmatprep.subr.bf16.mxu0 0
        %1753 = vmatpush1.bf16.msra.mxu0 %v1729
        %1754 = vmatprep.subr.bf16.mxu0 0
        %1755 = vmatpush1.bf16.msra.mxu0 0
        %1756 = vmatprep.subr.bf16.mxu0 0
        %1757 = vmatpush1.bf16.msra.mxu0 0
        %1758 = vmatprep.subr.bf16.mxu0 0
        %1759 = vmatpush1.bf16.msra.mxu0 0
        %1760 = vmatprep.subr.bf16.mxu0 0
        %1761 = vmatpush1.bf16.msra.mxu0 0
        %1762 = vmatprep.subr.bf16.mxu0 0
        %1763 = vmatpush1.bf16.msra.mxu0 0
        %1764 = vmatprep.subr.bf16.mxu0 0
        %1765 = vmatpush1.bf16.msra.mxu0 0
        %1766 = vmatprep.subr.bf16.mxu0 0
        %1767 = vmatpush1.bf16.msra.mxu0 0
        %1768 = vmatprep.subr.bf16.mxu0 0
        %1769 = vmatpush1.bf16.msra.mxu0 0
        %1770 = vmatprep.mubr.bf16.mxu0 0
        %1771 = vmatmul.mubr.bf16.gmra.mrb[0].mxu0 %v1669
        %v1772 = vpop.f32.mrb[0].mxu0
        %v1773 = vadd.f32 %v1689, %v1772
        %v1774 = vpop.f32.mrb[0].mxu0
        %v1775 = vpop.f32.mrb[0].mxu0
        %v1776 = vadd.f32 %v1689, %v1775
        %v1777 = vpop.f32.mrb[0].mxu0
        %1778 = vdwg.mxu0
        %v1779 = vadd.f32 %v558, %v1773
        %v1780 = vadd.f32 %v559, %v1776
        %1781 = vadd.xlane.f32.xlu0 %v1779
        %v1782 = vpop.xlane.xlu0 %1781
        %1783 = vadd.xlane.f32.xlu0 %v1780
        %v1784 = vpop.xlane.xlu0 %1783
        %v1785 = vmul.f32 %v1782, 0.01
        %v1786 = vmul.f32 %v1784, 0.01
        %v1787 = vsub.f32 %v1779, %v1785
        %v1788 = vsub.f32 %v1780, %v1786
        %v1789 = vmul.f32 %v1787, %v540
        %v1790 = vmul.f32 %v1788, %v540
        %v1791 = vmul.f32 %v1789, %v1789
        %v1792 = vmul.f32 %v1790, %v1790
        %1793 = vadd.xlane.f32.xlu0 %v1791
        %v1794 = vpop.xlane.xlu0 %1793
        %1795 = vadd.xlane.f32.xlu0 %v1792
        %v1796 = vpop.xlane.xlu0 %1795
        %v1797 = vmul.f32 %v1794, 0.01
        %v1798 = vmul.f32 %v1796, 0.01
        %v1799 = vadd.f32 %v1797, 1e-05
        %v1800 = vadd.f32 %v1798, 1e-05
        %v1801 = vrsqrt.pop %v1799
        %v1802 = vrsqrt.pop %v1800
        %v1803 = vmul.f32 %v1789, %v1801
        %v1804 = vmul.f32 %v1790, %v1802
        %v1805 = vlaneseq
        %v1806 = vshrl.u32 %v1805, 7
        %v1807 = vsub.s32 4, %v1806
        %v1808 = vrot.slane %v560, %v1807
        %v1809 = vmul.f32 %v1803, %v1808
        %v1810 = vmul.f32 %v1804, %v1808
        %v1811 = vlaneseq
        %v1812 = vshrl.u32 %v1811, 7
        %v1813 = vsub.s32 5, %v1812
        %v1814 = vrot.slane %v560, %v1813
        %v1815 = vadd.f32 %v1809, %v1814
        %v1816 = vadd.f32 %v1810, %v1814
        %v1817 = vpack.c.bf16 %v1816, %v1815
        %v1818 = vld [vmem:[%s446] sm:$0xff]
        %v1819 = vld [vmem:[%s446 + $0x8] sm:$0xff]
        %v1820 = vld [vmem:[%s446 + $0x40] sm:$0xff]
        %v1821 = vld [vmem:[%s446 + $0x48] sm:$0xff]
        %v1822 = vld [vmem:[%s446 + $0x80] sm:$0xff]
        %v1823 = vld [vmem:[%s446 + $0x88] sm:$0xff]
        %v1824 = vld [vmem:[%s446 + $0xc0] sm:$0xff]
        %v1825 = vld [vmem:[%s446 + $0xc8] sm:$0xff]
        %v1826 = vld [vmem:[%s446 + $0x100] sm:$0xff]
        %v1827 = vld [vmem:[%s446 + $0x108] sm:$0xff]
        %v1828 = vld [vmem:[%s446 + $0x140] sm:$0xff]
        %v1829 = vld [vmem:[%s446 + $0x148] sm:$0xff]
        %v1830 = vld [vmem:[%s446 + $0x180] sm:$0xff]
        %v1831 = vld [vmem:[%s446 + $0x188] sm:$0xff]
        %v1832 = vld [vmem:[%s446 + $0x1c0] sm:$0xff]
        %v1833 = vld [vmem:[%s446 + $0x1c8] sm:$0xff]
        %v1834 = vld [vmem:[%s446 + $0x200] sm:$0xff]
        %v1835 = vld [vmem:[%s446 + $0x208] sm:$0xff]
        %v1836 = vld [vmem:[%s446 + $0x240] sm:$0xff]
        %v1837 = vld [vmem:[%s446 + $0x248] sm:$0xff]
        %v1838 = vld [vmem:[%s446 + $0x280] sm:$0xff]
        %v1839 = vld [vmem:[%s446 + $0x288] sm:$0xff]
        %v1840 = vld [vmem:[%s446 + $0x2c0] sm:$0xff]
        %v1841 = vld [vmem:[%s446 + $0x2c8] sm:$0xff]
        %v1842 = vld [vmem:[%s446 + $0x300] sm:$0xff]
        %v1843 = vld [vmem:[%s446 + $0x308] sm:$0xff]
        %v1844 = vld [vmem:[%s446 + $0x340] sm:$0xff]
        %v1845 = vld [vmem:[%s446 + $0x348] sm:$0xff]
        %v1846 = vld [vmem:[%s446 + $0x380] sm:$0xff]
        %v1847 = vld [vmem:[%s446 + $0x388] sm:$0xff]
        %v1848 = vld [vmem:[%s446 + $0x3c0] sm:$0xff]
        %v1849 = vld [vmem:[%s446 + $0x3c8] sm:$0xff]
        %v1850 = vld [vmem:[%s464] sm:$0xf]
        %v1851 = vld [vmem:[%s455] sm:$0xf]
        %v1852 = vld [vmem:[%s455 + $0x4] sm:$0xf]
        %v1853 = vld [vmem:[%s455 + $0x8] sm:$0xf]
        %v1854 = vld [vmem:[%s455 + $0xc] sm:$0xf]
        %v1855 = vld [vmem:[%s455 + $0x10] sm:$0xf]
        %v1856 = vld [vmem:[%s455 + $0x14] sm:$0xf]
        %v1857 = vld [vmem:[%s455 + $0x18] sm:$0xf]
        %v1858 = vld [vmem:[%s455 + $0x1c] sm:$0xf]
        %v1859 = vld [vmem:[%s455 + $0x20] sm:$0xf]
        %v1860 = vld [vmem:[%s455 + $0x24] sm:$0xf]
        %v1861 = vld [vmem:[%s455 + $0x28] sm:$0xf]
        %v1862 = vld [vmem:[%s455 + $0x2c] sm:$0xf]
        %v1863 = vld [vmem:[%s455 + $0x30] sm:$0xf]
        %v1864 = vld [vmem:[%s455 + $0x34] sm:$0xf]
        %v1865 = vld [vmem:[%s455 + $0x38] sm:$0xf]
        %v1866 = vld [vmem:[%s455 + $0x3c] sm:$0xf]
        %v1867 = vld [vmem:[%s455 + $0x40] sm:$0xf]
        %v1868 = vld [vmem:[%s455 + $0x44] sm:$0xf]
        %v1869 = vld [vmem:[%s455 + $0x48] sm:$0xf]
        %v1870 = vld [vmem:[%s455 + $0x4c] sm:$0xf]
        %v1871 = vld [vmem:[%s455 + $0x50] sm:$0xf]
        %v1872 = vld [vmem:[%s455 + $0x54] sm:$0xf]
        %v1873 = vld [vmem:[%s455 + $0x58] sm:$0xf]
        %v1874 = vld [vmem:[%s455 + $0x5c] sm:$0xf]
        %v1875 = vld [vmem:[%s455 + $0x60] sm:$0xf]
        %v1876 = vld [vmem:[%s455 + $0x64] sm:$0xf]
        %v1877 = vld [vmem:[%s455 + $0x68] sm:$0xf]
        %v1878 = vld [vmem:[%s455 + $0x6c] sm:$0xf]
        %v1879 = vld [vmem:[%s455 + $0x70] sm:$0xf]
        %v1880 = vld [vmem:[%s455 + $0x74] sm:$0xf]
        %v1881 = vld [vmem:[%s455 + $0x78] sm:$0xf]
        %v1882 = vld [vmem:[%s455 + $0x7c] sm:$0xf]
        %v1883 = vld [vmem:[%s455 + $0x80] sm:$0xf]
        %v1884 = vld [vmem:[%s455 + $0x84] sm:$0xf]
        %v1885 = vld [vmem:[%s455 + $0x88] sm:$0xf]
        %v1886 = vld [vmem:[%s455 + $0x8c] sm:$0xf]
        %v1887 = vld [vmem:[%s455 + $0x90] sm:$0xf]
        %v1888 = vld [vmem:[%s455 + $0x94] sm:$0xf]
        %v1889 = vld [vmem:[%s455 + $0x98] sm:$0xf]
        %v1890 = vld [vmem:[%s455 + $0x9c] sm:$0xf]
        %v1891 = vld [vmem:[%s455 + $0xa0] sm:$0xf]
        %v1892 = vld [vmem:[%s455 + $0xa4] sm:$0xf]
        %v1893 = vld [vmem:[%s455 + $0xa8] sm:$0xf]
        %v1894 = vld [vmem:[%s455 + $0xac] sm:$0xf]
        %v1895 = vld [vmem:[%s455 + $0xb0] sm:$0xf]
        %v1896 = vld [vmem:[%s455 + $0xb4] sm:$0xf]
        %v1897 = vld [vmem:[%s455 + $0xb8] sm:$0xf]
        %v1898 = vld [vmem:[%s455 + $0xbc] sm:$0xf]
        %v1899 = vld [vmem:[%s455 + $0xc0] sm:$0xf]
        %v1900 = vld [vmem:[%s455 + $0xc4] sm:$0xf]
        %v1901 = vld [vmem:[%s455 + $0xc8] sm:$0xf]
        %v1902 = vld [vmem:[%s455 + $0xcc] sm:$0xf]
        %v1903 = vld [vmem:[%s455 + $0xd0] sm:$0xf]
        %v1904 = vld [vmem:[%s455 + $0xd4] sm:$0xf]
        %v1905 = vld [vmem:[%s455 + $0xd8] sm:$0xf]
        %v1906 = vld [vmem:[%s455 + $0xdc] sm:$0xf]
        %v1907 = vld [vmem:[%s455 + $0xe0] sm:$0xf]
        %v1908 = vld [vmem:[%s455 + $0xe4] sm:$0xf]
        %v1909 = vld [vmem:[%s455 + $0xe8] sm:$0xf]
        %v1910 = vld [vmem:[%s455 + $0xec] sm:$0xf]
        %v1911 = vld [vmem:[%s455 + $0xf0] sm:$0xf]
        %v1912 = vld [vmem:[%s455 + $0xf4] sm:$0xf]
        %v1913 = vld [vmem:[%s455 + $0xf8] sm:$0xf]
        %v1914 = vld [vmem:[%s455 + $0xfc] sm:$0xf]
        %v1916 = vlaneseq
        %v1917 = vshrl.u32 %v1916, 7
        %v1918 = vsub.s32 0, %v1917
        %v1919 = vrot.slane %v1850, %v1918
        %v1920 = vlaneseq
        %v1921 = vshrl.u32 %v1920, 7
        %v1922 = vsub.s32 1, %v1921
        %v1923 = vrot.slane %v1850, %v1922
        %v1924 = vlaneseq
        %v1925 = vshrl.u32 %v1924, 7
        %v1926 = vsub.s32 2, %v1925
        %v1927 = vrot.slane %v1850, %v1926
        %v1928 = vlaneseq
        %v1929 = vshrl.u32 %v1928, 7
        %v1930 = vsub.s32 3, %v1929
        %v1931 = vrot.slane %v1850, %v1930
        %v1968 = vunpack.c.l.b16 %v1818
        %v1969 = vunpack.c.h.b16 %v1818
        %v1970 = vunpack.c.l.b16 %v1819
        %v1971 = vunpack.c.h.b16 %v1819
        %v1972 = vunpack.c.l.b16 %v1820
        %v1973 = vunpack.c.h.b16 %v1820
        %v1974 = vunpack.c.l.b16 %v1821
        %v1975 = vunpack.c.h.b16 %v1821
        %v1976 = vunpack.c.l.b16 %v1822
        %v1977 = vunpack.c.h.b16 %v1822
        %v1978 = vunpack.c.l.b16 %v1823
        %v1979 = vunpack.c.h.b16 %v1823
        %v1980 = vunpack.c.l.b16 %v1824
        %v1981 = vunpack.c.h.b16 %v1824
        %v1982 = vunpack.c.l.b16 %v1825
        %v1983 = vunpack.c.h.b16 %v1825
        %v1984 = vunpack.c.l.b16 %v1826
        %v1985 = vunpack.c.h.b16 %v1826
        %v1986 = vunpack.c.l.b16 %v1827
        %v1987 = vunpack.c.h.b16 %v1827
        %v1988 = vunpack.c.l.b16 %v1828
        %v1989 = vunpack.c.h.b16 %v1828
        %v1990 = vunpack.c.l.b16 %v1829
        %v1991 = vunpack.c.h.b16 %v1829
        %v1992 = vunpack.c.l.b16 %v1830
        %v1993 = vunpack.c.h.b16 %v1830
        %v1994 = vunpack.c.l.b16 %v1831
        %v1995 = vunpack.c.h.b16 %v1831
        %v1996 = vunpack.c.l.b16 %v1832
        %v1997 = vunpack.c.h.b16 %v1832
        %v1998 = vunpack.c.l.b16 %v1833
        %v1999 = vunpack.c.h.b16 %v1833
        %v2000 = vunpack.c.l.b16 %v1834
        %v2001 = vunpack.c.h.b16 %v1834
        %v2002 = vunpack.c.l.b16 %v1835
        %v2003 = vunpack.c.h.b16 %v1835
        %v2004 = vunpack.c.l.b16 %v1836
        %v2005 = vunpack.c.h.b16 %v1836
        %v2006 = vunpack.c.l.b16 %v1837
        %v2007 = vunpack.c.h.b16 %v1837
        %v2008 = vunpack.c.l.b16 %v1838
        %v2009 = vunpack.c.h.b16 %v1838
        %v2010 = vunpack.c.l.b16 %v1839
        %v2011 = vunpack.c.h.b16 %v1839
        %v2012 = vunpack.c.l.b16 %v1840
        %v2013 = vunpack.c.h.b16 %v1840
        %v2014 = vunpack.c.l.b16 %v1841
        %v2015 = vunpack.c.h.b16 %v1841
        %v2016 = vunpack.c.l.b16 %v1842
        %v2017 = vunpack.c.h.b16 %v1842
        %v2018 = vunpack.c.l.b16 %v1843
        %v2019 = vunpack.c.h.b16 %v1843
        %v2020 = vunpack.c.l.b16 %v1844
        %v2021 = vunpack.c.h.b16 %v1844
        %v2022 = vunpack.c.l.b16 %v1845
        %v2023 = vunpack.c.h.b16 %v1845
        %v2024 = vunpack.c.l.b16 %v1846
        %v2025 = vunpack.c.h.b16 %v1846
        %v2026 = vunpack.c.l.b16 %v1847
        %v2027 = vunpack.c.h.b16 %v1847
        %v2028 = vunpack.c.l.b16 %v1848
        %v2029 = vunpack.c.h.b16 %v1848
        %v2030 = vunpack.c.l.b16 %v1849
        %v2031 = vunpack.c.h.b16 %v1849
        %v2032 = vpack.c.b16 %v1972, %v1968
        %v2033 = vpack.c.b16 %v1973, %v1969
        %v2034 = vpack.c.b16 %v1974, %v1970
        %v2035 = vpack.c.b16 %v1975, %v1971
        %v2036 = vpack.c.b16 %v1980, %v1976
        %v2037 = vpack.c.b16 %v1981, %v1977
        %v2038 = vpack.c.b16 %v1982, %v1978
        %v2039 = vpack.c.b16 %v1983, %v1979
        %v2040 = vpack.c.b16 %v1988, %v1984
        %v2041 = vpack.c.b16 %v1989, %v1985
        %v2042 = vpack.c.b16 %v1990, %v1986
        %v2043 = vpack.c.b16 %v1991, %v1987
        %v2044 = vpack.c.b16 %v1996, %v1992
        %v2045 = vpack.c.b16 %v1997, %v1993
        %v2046 = vpack.c.b16 %v1998, %v1994
        %v2047 = vpack.c.b16 %v1999, %v1995
        %v2048 = vpack.c.b16 %v2004, %v2000
        %v2049 = vpack.c.b16 %v2005, %v2001
        %v2050 = vpack.c.b16 %v2006, %v2002
        %v2051 = vpack.c.b16 %v2007, %v2003
        %v2052 = vpack.c.b16 %v2012, %v2008
        %v2053 = vpack.c.b16 %v2013, %v2009
        %v2054 = vpack.c.b16 %v2014, %v2010
        %v2055 = vpack.c.b16 %v2015, %v2011
        %v2056 = vpack.c.b16 %v2020, %v2016
        %v2057 = vpack.c.b16 %v2021, %v2017
        %v2058 = vpack.c.b16 %v2022, %v2018
        %v2059 = vpack.c.b16 %v2023, %v2019
        %v2060 = vpack.c.b16 %v2028, %v2024
        %v2061 = vpack.c.b16 %v2029, %v2025
        %v2062 = vpack.c.b16 %v2030, %v2026
        %v2063 = vpack.c.b16 %v2031, %v2027
        %2096 = vmatprep.subr.bf16.mxu0 %v2033
        %2097 = vmatpush1.bf16.msra.mxu0 %v2032
        %2098 = vmatprep.subr.bf16.mxu0 %v2037
        %2099 = vmatpush1.bf16.msra.mxu0 %v2036
        %2100 = vmatprep.subr.bf16.mxu0 %v2041
        %2101 = vmatpush1.bf16.msra.mxu0 %v2040
        %2102 = vmatprep.subr.bf16.mxu0 %v2045
        %2103 = vmatpush1.bf16.msra.mxu0 %v2044
        %2104 = vmatprep.subr.bf16.mxu0 %v2049
        %2105 = vmatpush1.bf16.msra.mxu0 %v2048
        %2106 = vmatprep.subr.bf16.mxu0 %v2053
        %2107 = vmatpush1.bf16.msra.mxu0 %v2052
        %2108 = vmatprep.subr.bf16.mxu0 %v2057
        %2109 = vmatpush1.bf16.msra.mxu0 %v2056
        %2110 = vmatprep.subr.bf16.mxu0 %v2061
        %2111 = vmatpush1.bf16.msra.mxu0 %v2060
        %2112 = vmatprep.subr.bf16.mxu0 0
        %2113 = vmatpush1.bf16.msra.mxu0 0
        %2114 = vmatprep.subr.bf16.mxu0 0
        %2115 = vmatpush1.bf16.msra.mxu0 0
        %2116 = vmatprep.subr.bf16.mxu0 0
        %2117 = vmatpush1.bf16.msra.mxu0 0
        %2118 = vmatprep.subr.bf16.mxu0 0
        %2119 = vmatpush1.bf16.msra.mxu0 0
        %2120 = vmatprep.subr.bf16.mxu0 0
        %2121 = vmatpush1.bf16.msra.mxu0 0
        %2122 = vmatprep.subr.bf16.mxu0 0
        %2123 = vmatpush1.bf16.msra.mxu0 0
        %2124 = vmatprep.subr.bf16.mxu0 0
        %2125 = vmatpush1.bf16.msra.mxu0 0
        %2126 = vmatprep.subr.bf16.mxu0 0
        %2127 = vmatpush1.bf16.msra.mxu0 0
        %2128 = vmatprep.mubr.bf16.mxu0 0
        %2129 = vmatmul.mubr.bf16.gmra.mrb[0].mxu0 %v1817
        %v2130 = vpop.f32.mrb[0].mxu0
        %v2131 = vadd.f32 %v1919, %v2130
        %v2132 = vpop.f32.mrb[0].mxu0
        %v2133 = vadd.f32 %v1923, %v2132
        %v2134 = vpop.f32.mrb[0].mxu0
        %v2135 = vadd.f32 %v1919, %v2134
        %v2136 = vpop.f32.mrb[0].mxu0
        %v2137 = vadd.f32 %v1923, %v2136
        %2138 = vdwg.mxu0
        %2139 = vmatprep.subr.bf16.mxu0 %v2035
        %2140 = vmatpush1.bf16.msra.mxu0 %v2034
        %2141 = vmatprep.subr.bf16.mxu0 %v2039
        %2142 = vmatpush1.bf16.msra.mxu0 %v2038
        %2143 = vmatprep.subr.bf16.mxu0 %v2043
        %2144 = vmatpush1.bf16.msra.mxu0 %v2042
        %2145 = vmatprep.subr.bf16.mxu0 %v2047
        %2146 = vmatpush1.bf16.msra.mxu0 %v2046
        %2147 = vmatprep.subr.bf16.mxu0 %v2051
        %2148 = vmatpush1.bf16.msra.mxu0 %v2050
        %2149 = vmatprep.subr.bf16.mxu0 %v2055
        %2150 = vmatpush1.bf16.msra.mxu0 %v2054
        %2151 = vmatprep.subr.bf16.mxu0 %v2059
        %2152 = vmatpush1.bf16.msra.mxu0 %v2058
        %2153 = vmatprep.subr.bf16.mxu0 %v2063
        %2154 = vmatpush1.bf16.msra.mxu0 %v2062
        %2155 = vmatprep.subr.bf16.mxu0 0
        %2156 = vmatpush1.bf16.msra.mxu0 0
        %2157 = vmatprep.subr.bf16.mxu0 0
        %2158 = vmatpush1.bf16.msra.mxu0 0
        %2159 = vmatprep.subr.bf16.mxu0 0
        %2160 = vmatpush1.bf16.msra.mxu0 0
        %2161 = vmatprep.subr.bf16.mxu0 0
        %2162 = vmatpush1.bf16.msra.mxu0 0
        %2163 = vmatprep.subr.bf16.mxu0 0
        %2164 = vmatpush1.bf16.msra.mxu0 0
        %2165 = vmatprep.subr.bf16.mxu0 0
        %2166 = vmatpush1.bf16.msra.mxu0 0
        %2167 = vmatprep.subr.bf16.mxu0 0
        %2168 = vmatpush1.bf16.msra.mxu0 0
        %2169 = vmatprep.subr.bf16.mxu0 0
        %2170 = vmatpush1.bf16.msra.mxu0 0
        %2171 = vmatprep.mubr.bf16.mxu0 0
        %2172 = vmatmul.mubr.bf16.gmra.mrb[0].mxu0 %v1817
        %v2173 = vpop.f32.mrb[0].mxu0
        %v2174 = vadd.f32 %v1927, %v2173
        %v2175 = vpop.f32.mrb[0].mxu0
        %v2176 = vadd.f32 %v1931, %v2175
        %v2177 = vpop.f32.mrb[0].mxu0
        %v2178 = vadd.f32 %v1927, %v2177
        %v2179 = vpop.f32.mrb[0].mxu0
        %v2180 = vadd.f32 %v1931, %v2179
        %2181 = vdwg.mxu0
        %v2182 = vmax.f32 %v2131, 0.0
        %v2183 = vmax.f32 %v2133, 0.0
        %v2184 = vmax.f32 %v2174, 0.0
        %v2185 = vmax.f32 %v2176, 0.0
        %v2186 = vmax.f32 %v2135, 0.0
        %v2187 = vmax.f32 %v2137, 0.0
        %v2188 = vmax.f32 %v2178, 0.0
        %v2189 = vmax.f32 %v2180, 0.0
        %v2190 = vpack.c.bf16 %v2186, %v2182
        %v2191 = vpack.c.bf16 %v2187, %v2183
        %v2192 = vpack.c.bf16 %v2188, %v2184
        %v2193 = vpack.c.bf16 %v2189, %v2185
        %v2194 = vld [vmem:[%s446 + $0x10] sm:$0xff]
        %v2195 = vld [vmem:[%s446 + $0x18] sm:$0xff]
        %v2196 = vld [vmem:[%s446 + $0x50] sm:$0xff]
        %v2197 = vld [vmem:[%s446 + $0x58] sm:$0xff]
        %v2198 = vld [vmem:[%s446 + $0x90] sm:$0xff]
        %v2199 = vld [vmem:[%s446 + $0x98] sm:$0xff]
        %v2200 = vld [vmem:[%s446 + $0xd0] sm:$0xff]
        %v2201 = vld [vmem:[%s446 + $0xd8] sm:$0xff]
        %v2202 = vld [vmem:[%s446 + $0x110] sm:$0xff]
        %v2203 = vld [vmem:[%s446 + $0x118] sm:$0xff]
        %v2204 = vld [vmem:[%s446 + $0x150] sm:$0xff]
        %v2205 = vld [vmem:[%s446 + $0x158] sm:$0xff]
        %v2206 = vld [vmem:[%s446 + $0x190] sm:$0xff]
        %v2207 = vld [vmem:[%s446 + $0x198] sm:$0xff]
        %v2208 = vld [vmem:[%s446 + $0x1d0] sm:$0xff]
        %v2209 = vld [vmem:[%s446 + $0x1d8] sm:$0xff]
        %v2210 = vld [vmem:[%s446 + $0x210] sm:$0xff]
        %v2211 = vld [vmem:[%s446 + $0x218] sm:$0xff]
        %v2212 = vld [vmem:[%s446 + $0x250] sm:$0xff]
        %v2213 = vld [vmem:[%s446 + $0x258] sm:$0xff]
        %v2214 = vld [vmem:[%s446 + $0x290] sm:$0xff]
        %v2215 = vld [vmem:[%s446 + $0x298] sm:$0xff]
        %v2216 = vld [vmem:[%s446 + $0x2d0] sm:$0xff]
        %v2217 = vld [vmem:[%s446 + $0x2d8] sm:$0xff]
        %v2218 = vld [vmem:[%s446 + $0x310] sm:$0xff]
        %v2219 = vld [vmem:[%s446 + $0x318] sm:$0xff]
        %v2220 = vld [vmem:[%s446 + $0x350] sm:$0xff]
        %v2221 = vld [vmem:[%s446 + $0x358] sm:$0xff]
        %v2222 = vld [vmem:[%s446 + $0x390] sm:$0xff]
        %v2223 = vld [vmem:[%s446 + $0x398] sm:$0xff]
        %v2224 = vld [vmem:[%s446 + $0x3d0] sm:$0xff]
        %v2225 = vld [vmem:[%s446 + $0x3d8] sm:$0xff]
        %v2226 = vld [vmem:[%s464 + $0x4] sm:$0xf]
        %v2227 = vld [vmem:[%s455 + $0x100] sm:$0xf]
        %v2228 = vld [vmem:[%s455 + $0x104] sm:$0xf]
        %v2229 = vld [vmem:[%s455 + $0x108] sm:$0xf]
        %v2230 = vld [vmem:[%s455 + $0x10c] sm:$0xf]
        %v2231 = vld [vmem:[%s455 + $0x110] sm:$0xf]
        %v2232 = vld [vmem:[%s455 + $0x114] sm:$0xf]
        %v2233 = vld [vmem:[%s455 + $0x118] sm:$0xf]
        %v2234 = vld [vmem:[%s455 + $0x11c] sm:$0xf]
        %v2235 = vld [vmem:[%s455 + $0x120] sm:$0xf]
        %v2236 = vld [vmem:[%s455 + $0x124] sm:$0xf]
        %v2237 = vld [vmem:[%s455 + $0x128] sm:$0xf]
        %v2238 = vld [vmem:[%s455 + $0x12c] sm:$0xf]
        %v2239 = vld [vmem:[%s455 + $0x130] sm:$0xf]
        %v2240 = vld [vmem:[%s455 + $0x134] sm:$0xf]
        %v2241 = vld [vmem:[%s455 + $0x138] sm:$0xf]
        %v2242 = vld [vmem:[%s455 + $0x13c] sm:$0xf]
        %v2243 = vld [vmem:[%s455 + $0x140] sm:$0xf]
        %v2244 = vld [vmem:[%s455 + $0x144] sm:$0xf]
        %v2245 = vld [vmem:[%s455 + $0x148] sm:$0xf]
        %v2246 = vld [vmem:[%s455 + $0x14c] sm:$0xf]
        %v2247 = vld [vmem:[%s455 + $0x150] sm:$0xf]
        %v2248 = vld [vmem:[%s455 + $0x154] sm:$0xf]
        %v2249 = vld [vmem:[%s455 + $0x158] sm:$0xf]
        %v2250 = vld [vmem:[%s455 + $0x15c] sm:$0xf]
        %v2251 = vld [vmem:[%s455 + $0x160] sm:$0xf]
        %v2252 = vld [vmem:[%s455 + $0x164] sm:$0xf]
        %v2253 = vld [vmem:[%s455 + $0x168] sm:$0xf]
        %v2254 = vld [vmem:[%s455 + $0x16c] sm:$0xf]
        %v2255 = vld [vmem:[%s455 + $0x170] sm:$0xf]
        %v2256 = vld [vmem:[%s455 + $0x174] sm:$0xf]
        %v2257 = vld [vmem:[%s455 + $0x178] sm:$0xf]
        %v2258 = vld [vmem:[%s455 + $0x17c] sm:$0xf]
        %v2259 = vld [vmem:[%s455 + $0x180] sm:$0xf]
        %v2260 = vld [vmem:[%s455 + $0x184] sm:$0xf]
        %v2261 = vld [vmem:[%s455 + $0x188] sm:$0xf]
        %v2262 = vld [vmem:[%s455 + $0x18c] sm:$0xf]
        %v2263 = vld [vmem:[%s455 + $0x190] sm:$0xf]
        %v2264 = vld [vmem:[%s455 + $0x194] sm:$0xf]
        %v2265 = vld [vmem:[%s455 + $0x198] sm:$0xf]
        %v2266 = vld [vmem:[%s455 + $0x19c] sm:$0xf]
        %v2267 = vld [vmem:[%s455 + $0x1a0] sm:$0xf]
        %v2268 = vld [vmem:[%s455 + $0x1a4] sm:$0xf]
        %v2269 = vld [vmem:[%s455 + $0x1a8] sm:$0xf]
        %v2270 = vld [vmem:[%s455 + $0x1ac] sm:$0xf]
        %v2271 = vld [vmem:[%s455 + $0x1b0] sm:$0xf]
        %v2272 = vld [vmem:[%s455 + $0x1b4] sm:$0xf]
        %v2273 = vld [vmem:[%s455 + $0x1b8] sm:$0xf]
        %v2274 = vld [vmem:[%s455 + $0x1bc] sm:$0xf]
        %v2275 = vld [vmem:[%s455 + $0x1c0] sm:$0xf]
        %v2276 = vld [vmem:[%s455 + $0x1c4] sm:$0xf]
        %v2277 = vld [vmem:[%s455 + $0x1c8] sm:$0xf]
        %v2278 = vld [vmem:[%s455 + $0x1cc] sm:$0xf]
        %v2279 = vld [vmem:[%s455 + $0x1d0] sm:$0xf]
        %v2280 = vld [vmem:[%s455 + $0x1d4] sm:$0xf]
        %v2281 = vld [vmem:[%s455 + $0x1d8] sm:$0xf]
        %v2282 = vld [vmem:[%s455 + $0x1dc] sm:$0xf]
        %v2283 = vld [vmem:[%s455 + $0x1e0] sm:$0xf]
        %v2284 = vld [vmem:[%s455 + $0x1e4] sm:$0xf]
        %v2285 = vld [vmem:[%s455 + $0x1e8] sm:$0xf]
        %v2286 = vld [vmem:[%s455 + $0x1ec] sm:$0xf]
        %v2287 = vld [vmem:[%s455 + $0x1f0] sm:$0xf]
        %v2288 = vld [vmem:[%s455 + $0x1f4] sm:$0xf]
        %v2289 = vld [vmem:[%s455 + $0x1f8] sm:$0xf]
        %v2290 = vld [vmem:[%s455 + $0x1fc] sm:$0xf]
        %v2292 = vlaneseq
        %v2293 = vshrl.u32 %v2292, 7
        %v2294 = vsub.s32 0, %v2293
        %v2295 = vrot.slane %v2226, %v2294
        %v2296 = vlaneseq
        %v2297 = vshrl.u32 %v2296, 7
        %v2298 = vsub.s32 1, %v2297
        %v2299 = vrot.slane %v2226, %v2298
        %v2300 = vlaneseq
        %v2301 = vshrl.u32 %v2300, 7
        %v2302 = vsub.s32 2, %v2301
        %v2303 = vrot.slane %v2226, %v2302
        %v2304 = vlaneseq
        %v2305 = vshrl.u32 %v2304, 7
        %v2306 = vsub.s32 3, %v2305
        %v2307 = vrot.slane %v2226, %v2306
        %v2344 = vunpack.c.l.b16 %v2194
        %v2345 = vunpack.c.h.b16 %v2194
        %v2346 = vunpack.c.l.b16 %v2195
        %v2347 = vunpack.c.h.b16 %v2195
        %v2348 = vunpack.c.l.b16 %v2196
        %v2349 = vunpack.c.h.b16 %v2196
        %v2350 = vunpack.c.l.b16 %v2197
        %v2351 = vunpack.c.h.b16 %v2197
        %v2352 = vunpack.c.l.b16 %v2198
        %v2353 = vunpack.c.h.b16 %v2198
        %v2354 = vunpack.c.l.b16 %v2199
        %v2355 = vunpack.c.h.b16 %v2199
        %v2356 = vunpack.c.l.b16 %v2200
        %v2357 = vunpack.c.h.b16 %v2200
        %v2358 = vunpack.c.l.b16 %v2201
        %v2359 = vunpack.c.h.b16 %v2201
        %v2360 = vunpack.c.l.b16 %v2202
        %v2361 = vunpack.c.h.b16 %v2202
        %v2362 = vunpack.c.l.b16 %v2203
        %v2363 = vunpack.c.h.b16 %v2203
        %v2364 = vunpack.c.l.b16 %v2204
        %v2365 = vunpack.c.h.b16 %v2204
        %v2366 = vunpack.c.l.b16 %v2205
        %v2367 = vunpack.c.h.b16 %v2205
        %v2368 = vunpack.c.l.b16 %v2206
        %v2369 = vunpack.c.h.b16 %v2206
        %v2370 = vunpack.c.l.b16 %v2207
        %v2371 = vunpack.c.h.b16 %v2207
        %v2372 = vunpack.c.l.b16 %v2208
        %v2373 = vunpack.c.h.b16 %v2208
        %v2374 = vunpack.c.l.b16 %v2209
        %v2375 = vunpack.c.h.b16 %v2209
        %v2376 = vunpack.c.l.b16 %v2210
        %v2377 = vunpack.c.h.b16 %v2210
        %v2378 = vunpack.c.l.b16 %v2211
        %v2379 = vunpack.c.h.b16 %v2211
        %v2380 = vunpack.c.l.b16 %v2212
        %v2381 = vunpack.c.h.b16 %v2212
        %v2382 = vunpack.c.l.b16 %v2213
        %v2383 = vunpack.c.h.b16 %v2213
        %v2384 = vunpack.c.l.b16 %v2214
        %v2385 = vunpack.c.h.b16 %v2214
        %v2386 = vunpack.c.l.b16 %v2215
        %v2387 = vunpack.c.h.b16 %v2215
        %v2388 = vunpack.c.l.b16 %v2216
        %v2389 = vunpack.c.h.b16 %v2216
        %v2390 = vunpack.c.l.b16 %v2217
        %v2391 = vunpack.c.h.b16 %v2217
        %v2392 = vunpack.c.l.b16 %v2218
        %v2393 = vunpack.c.h.b16 %v2218
        %v2394 = vunpack.c.l.b16 %v2219
        %v2395 = vunpack.c.h.b16 %v2219
        %v2396 = vunpack.c.l.b16 %v2220
        %v2397 = vunpack.c.h.b16 %v2220
        %v2398 = vunpack.c.l.b16 %v2221
        %v2399 = vunpack.c.h.b16 %v2221
        %v2400 = vunpack.c.l.b16 %v2222
        %v2401 = vunpack.c.h.b16 %v2222
        %v2402 = vunpack.c.l.b16 %v2223
        %v2403 = vunpack.c.h.b16 %v2223
        %v2404 = vunpack.c.l.b16 %v2224
        %v2405 = vunpack.c.h.b16 %v2224
        %v2406 = vunpack.c.l.b16 %v2225
        %v2407 = vunpack.c.h.b16 %v2225
        %v2408 = vpack.c.b16 %v2348, %v2344
        %v2409 = vpack.c.b16 %v2349, %v2345
        %v2410 = vpack.c.b16 %v2350, %v2346
        %v2411 = vpack.c.b16 %v2351, %v2347
        %v2412 = vpack.c.b16 %v2356, %v2352
        %v2413 = vpack.c.b16 %v2357, %v2353
        %v2414 = vpack.c.b16 %v2358, %v2354
        %v2415 = vpack.c.b16 %v2359, %v2355
        %v2416 = vpack.c.b16 %v2364, %v2360
        %v2417 = vpack.c.b16 %v2365, %v2361
        %v2418 = vpack.c.b16 %v2366, %v2362
        %v2419 = vpack.c.b16 %v2367, %v2363
        %v2420 = vpack.c.b16 %v2372, %v2368
        %v2421 = vpack.c.b16 %v2373, %v2369
        %v2422 = vpack.c.b16 %v2374, %v2370
        %v2423 = vpack.c.b16 %v2375, %v2371
        %v2424 = vpack.c.b16 %v2380, %v2376
        %v2425 = vpack.c.b16 %v2381, %v2377
        %v2426 = vpack.c.b16 %v2382, %v2378
        %v2427 = vpack.c.b16 %v2383, %v2379
        %v2428 = vpack.c.b16 %v2388, %v2384
        %v2429 = vpack.c.b16 %v2389, %v2385
        %v2430 = vpack.c.b16 %v2390, %v2386
        %v2431 = vpack.c.b16 %v2391, %v2387
        %v2432 = vpack.c.b16 %v2396, %v2392
        %v2433 = vpack.c.b16 %v2397, %v2393
        %v2434 = vpack.c.b16 %v2398, %v2394
        %v2435 = vpack.c.b16 %v2399, %v2395
        %v2436 = vpack.c.b16 %v2404, %v2400
        %v2437 = vpack.c.b16 %v2405, %v2401
        %v2438 = vpack.c.b16 %v2406, %v2402
        %v2439 = vpack.c.b16 %v2407, %v2403
        %2472 = vmatprep.subr.bf16.mxu0 %v2409
        %2473 = vmatpush1.bf16.msra.mxu0 %v2408
        %2474 = vmatprep.subr.bf16.mxu0 %v2413
        %2475 = vmatpush1.bf16.msra.mxu0 %v2412
        %2476 = vmatprep.subr.bf16.mxu0 %v2417
        %2477 = vmatpush1.bf16.msra.mxu0 %v2416
        %2478 = vmatprep.subr.bf16.mxu0 %v2421
        %2479 = vmatpush1.bf16.msra.mxu0 %v2420
        %2480 = vmatprep.subr.bf16.mxu0 %v2425
        %2481 = vmatpush1.bf16.msra.mxu0 %v2424
        %2482 = vmatprep.subr.bf16.mxu0 %v2429
        %2483 = vmatpush1.bf16.msra.mxu0 %v2428
        %2484 = vmatprep.subr.bf16.mxu0 %v2433
        %2485 = vmatpush1.bf16.msra.mxu0 %v2432
        %2486 = vmatprep.subr.bf16.mxu0 %v2437
        %2487 = vmatpush1.bf16.msra.mxu0 %v2436
        %2488 = vmatprep.subr.bf16.mxu0 0
        %2489 = vmatpush1.bf16.msra.mxu0 0
        %2490 = vmatprep.subr.bf16.mxu0 0
        %2491 = vmatpush1.bf16.msra.mxu0 0
        %2492 = vmatprep.subr.bf16.mxu0 0
        %2493 = vmatpush1.bf16.msra.mxu0 0
        %2494 = vmatprep.subr.bf16.mxu0 0
        %2495 = vmatpush1.bf16.msra.mxu0 0
        %2496 = vmatprep.subr.bf16.mxu0 0
        %2497 = vmatpush1.bf16.msra.mxu0 0
        %2498 = vmatprep.subr.bf16.mxu0 0
        %2499 = vmatpush1.bf16.msra.mxu0 0
        %2500 = vmatprep.subr.bf16.mxu0 0
        %2501 = vmatpush1.bf16.msra.mxu0 0
        %2502 = vmatprep.subr.bf16.mxu0 0
        %2503 = vmatpush1.bf16.msra.mxu0 0
        %2504 = vmatprep.mubr.bf16.mxu0 0
        %2505 = vmatmul.mubr.bf16.gmra.mrb[0].mxu0 %v1817
        %v2506 = vpop.f32.mrb[0].mxu0
        %v2507 = vadd.f32 %v2295, %v2506
        %v2508 = vpop.f32.mrb[0].mxu0
        %v2509 = vadd.f32 %v2299, %v2508
        %v2510 = vpop.f32.mrb[0].mxu0
        %v2511 = vadd.f32 %v2295, %v2510
        %v2512 = vpop.f32.mrb[0].mxu0
        %v2513 = vadd.f32 %v2299, %v2512
        %2514 = vdwg.mxu0
        %2515 = vmatprep.subr.bf16.mxu0 %v2411
        %2516 = vmatpush1.bf16.msra.mxu0 %v2410
        %2517 = vmatprep.subr.bf16.mxu0 %v2415
        %2518 = vmatpush1.bf16.msra.mxu0 %v2414
        %2519 = vmatprep.subr.bf16.mxu0 %v2419
        %2520 = vmatpush1.bf16.msra.mxu0 %v2418
        %2521 = vmatprep.subr.bf16.mxu0 %v2423
        %2522 = vmatpush1.bf16.msra.mxu0 %v2422
        %2523 = vmatprep.subr.bf16.mxu0 %v2427
        %2524 = vmatpush1.bf16.msra.mxu0 %v2426
        %2525 = vmatprep.subr.bf16.mxu0 %v2431
        %2526 = vmatpush1.bf16.msra.mxu0 %v2430
        %2527 = vmatprep.subr.bf16.mxu0 %v2435
        %2528 = vmatpush1.bf16.msra.mxu0 %v2434
        %2529 = vmatprep.subr.bf16.mxu0 %v2439
        %2530 = vmatpush1.bf16.msra.mxu0 %v2438
        %2531 = vmatprep.subr.bf16.mxu0 0
        %2532 = vmatpush1.bf16.msra.mxu0 0
        %2533 = vmatprep.subr.bf16.mxu0 0
        %2534 = vmatpush1.bf16.msra.mxu0 0
        %2535 = vmatprep.subr.bf16.mxu0 0
        %2536 = vmatpush1.bf16.msra.mxu0 0
        %2537 = vmatprep.subr.bf16.mxu0 0
        %2538 = vmatpush1.bf16.msra.mxu0 0
        %2539 = vmatprep.subr.bf16.mxu0 0
        %2540 = vmatpush1.bf16.msra.mxu0 0
        %2541 = vmatprep.subr.bf16.mxu0 0
        %2542 = vmatpush1.bf16.msra.mxu0 0
        %2543 = vmatprep.subr.bf16.mxu0 0
        %2544 = vmatpush1.bf16.msra.mxu0 0
        %2545 = vmatprep.subr.bf16.mxu0 0
        %2546 = vmatpush1.bf16.msra.mxu0 0
        %2547 = vmatprep.mubr.bf16.mxu0 0
        %2548 = vmatmul.mubr.bf16.gmra.mrb[0].mxu0 %v1817
        %v2549 = vpop.f32.mrb[0].mxu0
        %v2550 = vadd.f32 %v2303, %v2549
        %v2551 = vpop.f32.mrb[0].mxu0
        %v2552 = vadd.f32 %v2307, %v2551
        %v2553 = vpop.f32.mrb[0].mxu0
        %v2554 = vadd.f32 %v2303, %v2553
        %v2555 = vpop.f32.mrb[0].mxu0
        %v2556 = vadd.f32 %v2307, %v2555
        %2557 = vdwg.mxu0
        %v2558 = vmax.f32 %v2507, 0.0
        %v2559 = vmax.f32 %v2509, 0.0
        %v2560 = vmax.f32 %v2550, 0.0
        %v2561 = vmax.f32 %v2552, 0.0
        %v2562 = vmax.f32 %v2511, 0.0
        %v2563 = vmax.f32 %v2513, 0.0
        %v2564 = vmax.f32 %v2554, 0.0
        %v2565 = vmax.f32 %v2556, 0.0
        %v2566 = vpack.c.bf16 %v2562, %v2558
        %v2567 = vpack.c.bf16 %v2563, %v2559
        %v2568 = vpack.c.bf16 %v2564, %v2560
        %v2569 = vpack.c.bf16 %v2565, %v2561
        %v2634 = vunpack.c.l.b16 %v2227
        %v2635 = vunpack.c.l.b16 %v2228
        %v2636 = vunpack.c.l.b16 %v2229
        %v2637 = vunpack.c.l.b16 %v2230
        %v2638 = vunpack.c.l.b16 %v2231
        %v2639 = vunpack.c.l.b16 %v2232
        %v2640 = vunpack.c.l.b16 %v2233
        %v2641 = vunpack.c.l.b16 %v2234
        %v2642 = vunpack.c.l.b16 %v2235
        %v2643 = vunpack.c.l.b16 %v2236
        %v2644 = vunpack.c.l.b16 %v2237
        %v2645 = vunpack.c.l.b16 %v2238
        %v2646 = vunpack.c.l.b16 %v2239
        %v2647 = vunpack.c.l.b16 %v2240
        %v2648 = vunpack.c.l.b16 %v2241
        %v2649 = vunpack.c.l.b16 %v2242
        %v2650 = vunpack.c.l.b16 %v2243
        %v2651 = vunpack.c.l.b16 %v2244
        %v2652 = vunpack.c.l.b16 %v2245
        %v2653 = vunpack.c.l.b16 %v2246
        %v2654 = vunpack.c.l.b16 %v2247
        %v2655 = vunpack.c.l.b16 %v2248
        %v2656 = vunpack.c.l.b16 %v2249
        %v2657 = vunpack.c.l.b16 %v2250
        %v2658 = vunpack.c.l.b16 %v2251
        %v2659 = vunpack.c.l.b16 %v2252
        %v2660 = vunpack.c.l.b16 %v2253
        %v2661 = vunpack.c.l.b16 %v2254
        %v2662 = vunpack.c.l.b16 %v2255
        %v2663 = vunpack.c.l.b16 %v2256
        %v2664 = vunpack.c.l.b16 %v2257
        %v2665 = vunpack.c.l.b16 %v2258
        %v2666 = vunpack.c.l.b16 %v2259
        %v2667 = vunpack.c.l.b16 %v2260
        %v2668 = vunpack.c.l.b16 %v2261
        %v2669 = vunpack.c.l.b16 %v2262
        %v2670 = vunpack.c.l.b16 %v2263
        %v2671 = vunpack.c.l.b16 %v2264
        %v2672 = vunpack.c.l.b16 %v2265
        %v2673 = vunpack.c.l.b16 %v2266
        %v2674 = vunpack.c.l.b16 %v2267
        %v2675 = vunpack.c.l.b16 %v2268
        %v2676 = vunpack.c.l.b16 %v2269
        %v2677 = vunpack.c.l.b16 %v2270
        %v2678 = vunpack.c.l.b16 %v2271
        %v2679 = vunpack.c.l.b16 %v2272
        %v2680 = vunpack.c.l.b16 %v2273
        %v2681 = vunpack.c.l.b16 %v2274
        %v2682 = vunpack.c.l.b16 %v2275
        %v2683 = vunpack.c.l.b16 %v2276
        %v2684 = vunpack.c.l.b16 %v2277
        %v2685 = vunpack.c.l.b16 %v2278
        %v2686 = vunpack.c.l.b16 %v2279
        %v2687 = vunpack.c.l.b16 %v2280
        %v2688 = vunpack.c.l.b16 %v2281
        %v2689 = vunpack.c.l.b16 %v2282
        %v2690 = vunpack.c.l.b16 %v2283
        %v2691 = vunpack.c.l.b16 %v2284
        %v2692 = vunpack.c.l.b16 %v2285
        %v2693 = vunpack.c.l.b16 %v2286
        %v2694 = vunpack.c.l.b16 %v2287
        %v2695 = vunpack.c.l.b16 %v2288
        %v2696 = vunpack.c.l.b16 %v2289
        %v2697 = vunpack.c.l.b16 %v2290
        %v2698 = vpack.c.b16 %v2635, %v2634
        %v2699 = vpack.c.b16 %v2637, %v2636
        %v2700 = vpack.c.b16 %v2639, %v2638
        %v2701 = vpack.c.b16 %v2641, %v2640
        %v2702 = vpack.c.b16 %v2643, %v2642
        %v2703 = vpack.c.b16 %v2645, %v2644
        %v2704 = vpack.c.b16 %v2647, %v2646
        %v2705 = vpack.c.b16 %v2649, %v2648
        %v2706 = vpack.c.b16 %v2651, %v2650
        %v2707 = vpack.c.b16 %v2653, %v2652
        %v2708 = vpack.c.b16 %v2655, %v2654
        %v2709 = vpack.c.b16 %v2657, %v2656
        %v2710 = vpack.c.b16 %v2659, %v2658
        %v2711 = vpack.c.b16 %v2661, %v2660
        %v2712 = vpack.c.b16 %v2663, %v2662
        %v2713 = vpack.c.b16 %v2665, %v2664
        %v2714 = vpack.c.b16 %v2667, %v2666
        %v2715 = vpack.c.b16 %v2669, %v2668
        %v2716 = vpack.c.b16 %v2671, %v2670
        %v2717 = vpack.c.b16 %v2673, %v2672
        %v2718 = vpack.c.b16 %v2675, %v2674
        %v2719 = vpack.c.b16 %v2677, %v2676
        %v2720 = vpack.c.b16 %v2679, %v2678
        %v2721 = vpack.c.b16 %v2681, %v2680
        %v2722 = vpack.c.b16 %v2683, %v2682
        %v2723 = vpack.c.b16 %v2685, %v2684
        %v2724 = vpack.c.b16 %v2687, %v2686
        %v2725 = vpack.c.b16 %v2689, %v2688
        %v2726 = vpack.c.b16 %v2691, %v2690
        %v2727 = vpack.c.b16 %v2693, %v2692
        %v2728 = vpack.c.b16 %v2695, %v2694
        %v2729 = vpack.c.b16 %v2697, %v2696
        %2762 = vmatprep.subr.bf16.mxu0 0
        %2763 = vmatpush1.bf16.msra.mxu0 %v2698
        %2764 = vmatprep.subr.bf16.mxu0 0
        %2765 = vmatpush1.bf16.msra.mxu0 %v2699
        %2766 = vmatprep.subr.bf16.mxu0 0
        %2767 = vmatpush1.bf16.msra.mxu0 %v2700
        %2768 = vmatprep.subr.bf16.mxu0 0
        %2769 = vmatpush1.bf16.msra.mxu0 %v2701
        %2770 = vmatprep.subr.bf16.mxu0 0
        %2771 = vmatpush1.bf16.msra.mxu0 %v2702
        %2772 = vmatprep.subr.bf16.mxu0 0
        %2773 = vmatpush1.bf16.msra.mxu0 %v2703
        %2774 = vmatprep.subr.bf16.mxu0 0
        %2775 = vmatpush1.bf16.msra.mxu0 %v2704
        %2776 = vmatprep.subr.bf16.mxu0 0
        %2777 = vmatpush1.bf16.msra.mxu0 %v2705
        %2778 = vmatprep.subr.bf16.mxu0 0
        %2779 = vmatpush1.bf16.msra.mxu0 %v2706
        %2780 = vmatprep.subr.bf16.mxu0 0
        %2781 = vmatpush1.bf16.msra.mxu0 %v2707
        %2782 = vmatprep.subr.bf16.mxu0 0
        %2783 = vmatpush1.bf16.msra.mxu0 %v2708
        %2784 = vmatprep.subr.bf16.mxu0 0
        %2785 = vmatpush1.bf16.msra.mxu0 %v2709
        %2786 = vmatprep.subr.bf16.mxu0 0
        %2787 = vmatpush1.bf16.msra.mxu0 %v2710
        %2788 = vmatprep.subr.bf16.mxu0 0
        %2789 = vmatpush1.bf16.msra.mxu0 %v2711
        %2790 = vmatprep.subr.bf16.mxu0 0
        %2791 = vmatpush1.bf16.msra.mxu0 %v2712
        %2792 = vmatprep.subr.bf16.mxu0 0
        %2793 = vmatpush1.bf16.msra.mxu0 %v2713
        %2794 = vmatprep.mubr.bf16.mxu0 %v2567
        %2795 = vmatmul.mubr.bf16.gmra.mrb[0].mxu0 %v2566
        %v2796 = vpop.f32.mrb[0].mxu0
        %v2797 = vadd.f32 0.0, %v2796
        %v2798 = vpop.f32.mrb[0].mxu0
        %v2799 = vpop.f32.mrb[0].mxu0
        %v2800 = vadd.f32 0.0, %v2799
        %v2801 = vpop.f32.mrb[0].mxu0
        %2802 = vdwg.mxu0
        %2803 = vmatprep.subr.bf16.mxu0 0
        %2804 = vmatpush1.bf16.msra.mxu0 %v2714
        %2805 = vmatprep.subr.bf16.mxu0 0
        %2806 = vmatpush1.bf16.msra.mxu0 %v2715
        %2807 = vmatprep.subr.bf16.mxu0 0
        %2808 = vmatpush1.bf16.msra.mxu0 %v2716
        %2809 = vmatprep.subr.bf16.mxu0 0
        %2810 = vmatpush1.bf16.msra.mxu0 %v2717
        %2811 = vmatprep.subr.bf16.mxu0 0
        %2812 = vmatpush1.bf16.msra.mxu0 %v2718
        %2813 = vmatprep.subr.bf16.mxu0 0
        %2814 = vmatpush1.bf16.msra.mxu0 %v2719
        %2815 = vmatprep.subr.bf16.mxu0 0
        %2816 = vmatpush1.bf16.msra.mxu0 %v2720
        %2817 = vmatprep.subr.bf16.mxu0 0
        %2818 = vmatpush1.bf16.msra.mxu0 %v2721
        %2819 = vmatprep.subr.bf16.mxu0 0
        %2820 = vmatpush1.bf16.msra.mxu0 %v2722
        %2821 = vmatprep.subr.bf16.mxu0 0
        %2822 = vmatpush1.bf16.msra.mxu0 %v2723
        %2823 = vmatprep.subr.bf16.mxu0 0
        %2824 = vmatpush1.bf16.msra.mxu0 %v2724
        %2825 = vmatprep.subr.bf16.mxu0 0
        %2826 = vmatpush1.bf16.msra.mxu0 %v2725
        %2827 = vmatprep.subr.bf16.mxu0 0
        %2828 = vmatpush1.bf16.msra.mxu0 %v2726
        %2829 = vmatprep.subr.bf16.mxu0 0
        %2830 = vmatpush1.bf16.msra.mxu0 %v2727
        %2831 = vmatprep.subr.bf16.mxu0 0
        %2832 = vmatpush1.bf16.msra.mxu0 %v2728
        %2833 = vmatprep.subr.bf16.mxu0 0
        %2834 = vmatpush1.bf16.msra.mxu0 %v2729
        %2835 = vmatprep.mubr.bf16.mxu0 %v2569
        %2836 = vmatmul.mubr.bf16.gmra.mrb[0].mxu0 %v2568
        %v2837 = vpop.f32.mrb[0].mxu0
        %v2838 = vadd.f32 %v2797, %v2837
        %v2839 = vpop.f32.mrb[0].mxu0
        %v2840 = vpop.f32.mrb[0].mxu0
        %v2841 = vadd.f32 %v2800, %v2840
        %v2842 = vpop.f32.mrb[0].mxu0
        %2843 = vdwg.mxu0
        %v2908 = vunpack.c.l.b16 %v1851
        %v2909 = vunpack.c.l.b16 %v1852
        %v2910 = vunpack.c.l.b16 %v1853
        %v2911 = vunpack.c.l.b16 %v1854
        %v2912 = vunpack.c.l.b16 %v1855
        %v2913 = vunpack.c.l.b16 %v1856
        %v2914 = vunpack.c.l.b16 %v1857
        %v2915 = vunpack.c.l.b16 %v1858
        %v2916 = vunpack.c.l.b16 %v1859
        %v2917 = vunpack.c.l.b16 %v1860
        %v2918 = vunpack.c.l.b16 %v1861
        %v2919 = vunpack.c.l.b16 %v1862
        %v2920 = vunpack.c.l.b16 %v1863
        %v2921 = vunpack.c.l.b16 %v1864
        %v2922 = vunpack.c.l.b16 %v1865
        %v2923 = vunpack.c.l.b16 %v1866
        %v2924 = vunpack.c.l.b16 %v1867
        %v2925 = vunpack.c.l.b16 %v1868
        %v2926 = vunpack.c.l.b16 %v1869
        %v2927 = vunpack.c.l.b16 %v1870
        %v2928 = vunpack.c.l.b16 %v1871
        %v2929 = vunpack.c.l.b16 %v1872
        %v2930 = vunpack.c.l.b16 %v1873
        %v2931 = vunpack.c.l.b16 %v1874
        %v2932 = vunpack.c.l.b16 %v1875
        %v2933 = vunpack.c.l.b16 %v1876
        %v2934 = vunpack.c.l.b16 %v1877
        %v2935 = vunpack.c.l.b16 %v1878
        %v2936 = vunpack.c.l.b16 %v1879
        %v2937 = vunpack.c.l.b16 %v1880
        %v2938 = vunpack.c.l.b16 %v1881
        %v2939 = vunpack.c.l.b16 %v1882
        %v2940 = vunpack.c.l.b16 %v1883
        %v2941 = vunpack.c.l.b16 %v1884
        %v2942 = vunpack.c.l.b16 %v1885
        %v2943 = vunpack.c.l.b16 %v1886
        %v2944 = vunpack.c.l.b16 %v1887
        %v2945 = vunpack.c.l.b16 %v1888
        %v2946 = vunpack.c.l.b16 %v1889
        %v2947 = vunpack.c.l.b16 %v1890
        %v2948 = vunpack.c.l.b16 %v1891
        %v2949 = vunpack.c.l.b16 %v1892
        %v2950 = vunpack.c.l.b16 %v1893
        %v2951 = vunpack.c.l.b16 %v1894
        %v2952 = vunpack.c.l.b16 %v1895
        %v2953 = vunpack.c.l.b16 %v1896
        %v2954 = vunpack.c.l.b16 %v1897
        %v2955 = vunpack.c.l.b16 %v1898
        %v2956 = vunpack.c.l.b16 %v1899
        %v2957 = vunpack.c.l.b16 %v1900
        %v2958 = vunpack.c.l.b16 %v1901
        %v2959 = vunpack.c.l.b16 %v1902
        %v2960 = vunpack.c.l.b16 %v1903
        %v2961 = vunpack.c.l.b16 %v1904
        %v2962 = vunpack.c.l.b16 %v1905
        %v2963 = vunpack.c.l.b16 %v1906
        %v2964 = vunpack.c.l.b16 %v1907
        %v2965 = vunpack.c.l.b16 %v1908
        %v2966 = vunpack.c.l.b16 %v1909
        %v2967 = vunpack.c.l.b16 %v1910
        %v2968 = vunpack.c.l.b16 %v1911
        %v2969 = vunpack.c.l.b16 %v1912
        %v2970 = vunpack.c.l.b16 %v1913
        %v2971 = vunpack.c.l.b16 %v1914
        %v2972 = vpack.c.b16 %v2909, %v2908
        %v2973 = vpack.c.b16 %v2911, %v2910
        %v2974 = vpack.c.b16 %v2913, %v2912
        %v2975 = vpack.c.b16 %v2915, %v2914
        %v2976 = vpack.c.b16 %v2917, %v2916
        %v2977 = vpack.c.b16 %v2919, %v2918
        %v2978 = vpack.c.b16 %v2921, %v2920
        %v2979 = vpack.c.b16 %v2923, %v2922
        %v2980 = vpack.c.b16 %v2925, %v2924
        %v2981 = vpack.c.b16 %v2927, %v2926
        %v2982 = vpack.c.b16 %v2929, %v2928
        %v2983 = vpack.c.b16 %v2931, %v2930
        %v2984 = vpack.c.b16 %v2933, %v2932
        %v2985 = vpack.c.b16 %v2935, %v2934
        %v2986 = vpack.c.b16 %v2937, %v2936
        %v2987 = vpack.c.b16 %v2939, %v2938
        %v2988 = vpack.c.b16 %v2941, %v2940
        %v2989 = vpack.c.b16 %v2943, %v2942
        %v2990 = vpack.c.b16 %v2945, %v2944
        %v2991 = vpack.c.b16 %v2947, %v2946
        %v2992 = vpack.c.b16 %v2949, %v2948
        %v2993 = vpack.c.b16 %v2951, %v2950
        %v2994 = vpack.c.b16 %v2953, %v2952
        %v2995 = vpack.c.b16 %v2955, %v2954
        %v2996 = vpack.c.b16 %v2957, %v2956
        %v2997 = vpack.c.b16 %v2959, %v2958
        %v2998 = vpack.c.b16 %v2961, %v2960
        %v2999 = vpack.c.b16 %v2963, %v2962
        %v3000 = vpack.c.b16 %v2965, %v2964
        %v3001 = vpack.c.b16 %v2967, %v2966
        %v3002 = vpack.c.b16 %v2969, %v2968
        %v3003 = vpack.c.b16 %v2971, %v2970
        %3036 = vmatprep.subr.bf16.mxu0 0
        %3037 = vmatpush1.bf16.msra.mxu0 %v2972
        %3038 = vmatprep.subr.bf16.mxu0 0
        %3039 = vmatpush1.bf16.msra.mxu0 %v2973
        %3040 = vmatprep.subr.bf16.mxu0 0
        %3041 = vmatpush1.bf16.msra.mxu0 %v2974
        %3042 = vmatprep.subr.bf16.mxu0 0
        %3043 = vmatpush1.bf16.msra.mxu0 %v2975
        %3044 = vmatprep.subr.bf16.mxu0 0
        %3045 = vmatpush1.bf16.msra.mxu0 %v2976
        %3046 = vmatprep.subr.bf16.mxu0 0
        %3047 = vmatpush1.bf16.msra.mxu0 %v2977
        %3048 = vmatprep.subr.bf16.mxu0 0
        %3049 = vmatpush1.bf16.msra.mxu0 %v2978
        %3050 = vmatprep.subr.bf16.mxu0 0
        %3051 = vmatpush1.bf16.msra.mxu0 %v2979
        %3052 = vmatprep.subr.bf16.mxu0 0
        %3053 = vmatpush1.bf16.msra.mxu0 %v2980
        %3054 = vmatprep.subr.bf16.mxu0 0
        %3055 = vmatpush1.bf16.msra.mxu0 %v2981
        %3056 = vmatprep.subr.bf16.mxu0 0
        %3057 = vmatpush1.bf16.msra.mxu0 %v2982
        %3058 = vmatprep.subr.bf16.mxu0 0
        %3059 = vmatpush1.bf16.msra.mxu0 %v2983
        %3060 = vmatprep.subr.bf16.mxu0 0
        %3061 = vmatpush1.bf16.msra.mxu0 %v2984
        %3062 = vmatprep.subr.bf16.mxu0 0
        %3063 = vmatpush1.bf16.msra.mxu0 %v2985
        %3064 = vmatprep.subr.bf16.mxu0 0
        %3065 = vmatpush1.bf16.msra.mxu0 %v2986
        %3066 = vmatprep.subr.bf16.mxu0 0
        %3067 = vmatpush1.bf16.msra.mxu0 %v2987
        %3068 = vmatprep.mubr.bf16.mxu0 %v2191
        %3069 = vmatmul.mubr.bf16.gmra.mrb[0].mxu0 %v2190
        %v3070 = vpop.f32.mrb[0].mxu0
        %v3071 = vadd.f32 %v2838, %v3070
        %v3072 = vpop.f32.mrb[0].mxu0
        %v3073 = vpop.f32.mrb[0].mxu0
        %v3074 = vadd.f32 %v2841, %v3073
        %v3075 = vpop.f32.mrb[0].mxu0
        %3076 = vdwg.mxu0
        %3077 = vmatprep.subr.bf16.mxu0 0
        %3078 = vmatpush1.bf16.msra.mxu0 %v2988
        %3079 = vmatprep.subr.bf16.mxu0 0
        %3080 = vmatpush1.bf16.msra.mxu0 %v2989
        %3081 = vmatprep.subr.bf16.mxu0 0
        %3082 = vmatpush1.bf16.msra.mxu0 %v2990
        %3083 = vmatprep.subr.bf16.mxu0 0
        %3084 = vmatpush1.bf16.msra.mxu0 %v2991
        %3085 = vmatprep.subr.bf16.mxu0 0
        %3086 = vmatpush1.bf16.msra.mxu0 %v2992
        %3087 = vmatprep.subr.bf16.mxu0 0
        %3088 = vmatpush1.bf16.msra.mxu0 %v2993
        %3089 = vmatprep.subr.bf16.mxu0 0
        %3090 = vmatpush1.bf16.msra.mxu0 %v2994
        %3091 = vmatprep.subr.bf16.mxu0 0
        %3092 = vmatpush1.bf16.msra.mxu0 %v2995
        %3093 = vmatprep.subr.bf16.mxu0 0
        %3094 = vmatpush1.bf16.msra.mxu0 %v2996
        %3095 = vmatprep.subr.bf16.mxu0 0
        %3096 = vmatpush1.bf16.msra.mxu0 %v2997
        %3097 = vmatprep.subr.bf16.mxu0 0
        %3098 = vmatpush1.bf16.msra.mxu0 %v2998
        %3099 = vmatprep.subr.bf16.mxu0 0
        %3100 = vmatpush1.bf16.msra.mxu0 %v2999
        %3101 = vmatprep.subr.bf16.mxu0 0
        %3102 = vmatpush1.bf16.msra.mxu0 %v3000
        %3103 = vmatprep.subr.bf16.mxu0 0
        %3104 = vmatpush1.bf16.msra.mxu0 %v3001
        %3105 = vmatprep.subr.bf16.mxu0 0
        %3106 = vmatpush1.bf16.msra.mxu0 %v3002
        %3107 = vmatprep.subr.bf16.mxu0 0
        %3108 = vmatpush1.bf16.msra.mxu0 %v3003
        %3109 = vmatprep.mubr.bf16.mxu0 %v2193
        %3110 = vmatmul.mubr.bf16.gmra.mrb[0].mxu0 %v2192
        %v3111 = vpop.f32.mrb[0].mxu0
        %v3112 = vadd.f32 %v3071, %v3111
        %v3113 = vpop.f32.mrb[0].mxu0
        %v3114 = vpop.f32.mrb[0].mxu0
        %v3115 = vadd.f32 %v3074, %v3114
        %v3116 = vpop.f32.mrb[0].mxu0
        %3117 = vdwg.mxu0
        %v3118 = vld [vmem:[%s446 + $0x20] sm:$0xff]
        %v3119 = vld [vmem:[%s446 + $0x28] sm:$0xff]
        %v3120 = vld [vmem:[%s446 + $0x60] sm:$0xff]
        %v3121 = vld [vmem:[%s446 + $0x68] sm:$0xff]
        %v3122 = vld [vmem:[%s446 + $0xa0] sm:$0xff]
        %v3123 = vld [vmem:[%s446 + $0xa8] sm:$0xff]
        %v3124 = vld [vmem:[%s446 + $0xe0] sm:$0xff]
        %v3125 = vld [vmem:[%s446 + $0xe8] sm:$0xff]
        %v3126 = vld [vmem:[%s446 + $0x120] sm:$0xff]
        %v3127 = vld [vmem:[%s446 + $0x128] sm:$0xff]
        %v3128 = vld [vmem:[%s446 + $0x160] sm:$0xff]
        %v3129 = vld [vmem:[%s446 + $0x168] sm:$0xff]
        %v3130 = vld [vmem:[%s446 + $0x1a0] sm:$0xff]
        %v3131 = vld [vmem:[%s446 + $0x1a8] sm:$0xff]
        %v3132 = vld [vmem:[%s446 + $0x1e0] sm:$0xff]
        %v3133 = vld [vmem:[%s446 + $0x1e8] sm:$0xff]
        %v3134 = vld [vmem:[%s446 + $0x220] sm:$0xff]
        %v3135 = vld [vmem:[%s446 + $0x228] sm:$0xff]
        %v3136 = vld [vmem:[%s446 + $0x260] sm:$0xff]
        %v3137 = vld [vmem:[%s446 + $0x268] sm:$0xff]
        %v3138 = vld [vmem:[%s446 + $0x2a0] sm:$0xff]
        %v3139 = vld [vmem:[%s446 + $0x2a8] sm:$0xff]
        %v3140 = vld [vmem:[%s446 + $0x2e0] sm:$0xff]
        %v3141 = vld [vmem:[%s446 + $0x2e8] sm:$0xff]
        %v3142 = vld [vmem:[%s446 + $0x320] sm:$0xff]
        %v3143 = vld [vmem:[%s446 + $0x328] sm:$0xff]
        %v3144 = vld [vmem:[%s446 + $0x360] sm:$0xff]
        %v3145 = vld [vmem:[%s446 + $0x368] sm:$0xff]
        %v3146 = vld [vmem:[%s446 + $0x3a0] sm:$0xff]
        %v3147 = vld [vmem:[%s446 + $0x3a8] sm:$0xff]
        %v3148 = vld [vmem:[%s446 + $0x3e0] sm:$0xff]
        %v3149 = vld [vmem:[%s446 + $0x3e8] sm:$0xff]
        %v3150 = vld [vmem:[%s464 + $0x8] sm:$0xf]
        %v3151 = vld [vmem:[%s455 + $0x200] sm:$0xf]
        %v3152 = vld [vmem:[%s455 + $0x204] sm:$0xf]
        %v3153 = vld [vmem:[%s455 + $0x208] sm:$0xf]
        %v3154 = vld [vmem:[%s455 + $0x20c] sm:$0xf]
        %v3155 = vld [vmem:[%s455 + $0x210] sm:$0xf]
        %v3156 = vld [vmem:[%s455 + $0x214] sm:$0xf]
        %v3157 = vld [vmem:[%s455 + $0x218] sm:$0xf]
        %v3158 = vld [vmem:[%s455 + $0x21c] sm:$0xf]
        %v3159 = vld [vmem:[%s455 + $0x220] sm:$0xf]
        %v3160 = vld [vmem:[%s455 + $0x224] sm:$0xf]
        %v3161 = vld [vmem:[%s455 + $0x228] sm:$0xf]
        %v3162 = vld [vmem:[%s455 + $0x22c] sm:$0xf]
        %v3163 = vld [vmem:[%s455 + $0x230] sm:$0xf]
        %v3164 = vld [vmem:[%s455 + $0x234] sm:$0xf]
        %v3165 = vld [vmem:[%s455 + $0x238] sm:$0xf]
        %v3166 = vld [vmem:[%s455 + $0x23c] sm:$0xf]
        %v3167 = vld [vmem:[%s455 + $0x240] sm:$0xf]
        %v3168 = vld [vmem:[%s455 + $0x244] sm:$0xf]
        %v3169 = vld [vmem:[%s455 + $0x248] sm:$0xf]
        %v3170 = vld [vmem:[%s455 + $0x24c] sm:$0xf]
        %v3171 = vld [vmem:[%s455 + $0x250] sm:$0xf]
        %v3172 = vld [vmem:[%s455 + $0x254] sm:$0xf]
        %v3173 = vld [vmem:[%s455 + $0x258] sm:$0xf]
        %v3174 = vld [vmem:[%s455 + $0x25c] sm:$0xf]
        %v3175 = vld [vmem:[%s455 + $0x260] sm:$0xf]
        %v3176 = vld [vmem:[%s455 + $0x264] sm:$0xf]
        %v3177 = vld [vmem:[%s455 + $0x268] sm:$0xf]
        %v3178 = vld [vmem:[%s455 + $0x26c] sm:$0xf]
        %v3179 = vld [vmem:[%s455 + $0x270] sm:$0xf]
        %v3180 = vld [vmem:[%s455 + $0x274] sm:$0xf]
        %v3181 = vld [vmem:[%s455 + $0x278] sm:$0xf]
        %v3182 = vld [vmem:[%s455 + $0x27c] sm:$0xf]
        %v3183 = vld [vmem:[%s455 + $0x280] sm:$0xf]
        %v3184 = vld [vmem:[%s455 + $0x284] sm:$0xf]
        %v3185 = vld [vmem:[%s455 + $0x288] sm:$0xf]
        %v3186 = vld [vmem:[%s455 + $0x28c] sm:$0xf]
        %v3187 = vld [vmem:[%s455 + $0x290] sm:$0xf]
        %v3188 = vld [vmem:[%s455 + $0x294] sm:$0xf]
        %v3189 = vld [vmem:[%s455 + $0x298] sm:$0xf]
        %v3190 = vld [vmem:[%s455 + $0x29c] sm:$0xf]
        %v3191 = vld [vmem:[%s455 + $0x2a0] sm:$0xf]
        %v3192 = vld [vmem:[%s455 + $0x2a4] sm:$0xf]
        %v3193 = vld [vmem:[%s455 + $0x2a8] sm:$0xf]
        %v3194 = vld [vmem:[%s455 + $0x2ac] sm:$0xf]
        %v3195 = vld [vmem:[%s455 + $0x2b0] sm:$0xf]
        %v3196 = vld [vmem:[%s455 + $0x2b4] sm:$0xf]
        %v3197 = vld [vmem:[%s455 + $0x2b8] sm:$0xf]
        %v3198 = vld [vmem:[%s455 + $0x2bc] sm:$0xf]
        %v3199 = vld [vmem:[%s455 + $0x2c0] sm:$0xf]
        %v3200 = vld [vmem:[%s455 + $0x2c4] sm:$0xf]
        %v3201 = vld [vmem:[%s455 + $0x2c8] sm:$0xf]
        %v3202 = vld [vmem:[%s455 + $0x2cc] sm:$0xf]
        %v3203 = vld [vmem:[%s455 + $0x2d0] sm:$0xf]
        %v3204 = vld [vmem:[%s455 + $0x2d4] sm:$0xf]
        %v3205 = vld [vmem:[%s455 + $0x2d8] sm:$0xf]
        %v3206 = vld [vmem:[%s455 + $0x2dc] sm:$0xf]
        %v3207 = vld [vmem:[%s455 + $0x2e0] sm:$0xf]
        %v3208 = vld [vmem:[%s455 + $0x2e4] sm:$0xf]
        %v3209 = vld [vmem:[%s455 + $0x2e8] sm:$0xf]
        %v3210 = vld [vmem:[%s455 + $0x2ec] sm:$0xf]
        %v3211 = vld [vmem:[%s455 + $0x2f0] sm:$0xf]
        %v3212 = vld [vmem:[%s455 + $0x2f4] sm:$0xf]
        %v3213 = vld [vmem:[%s455 + $0x2f8] sm:$0xf]
        %v3214 = vld [vmem:[%s455 + $0x2fc] sm:$0xf]
        %v3216 = vlaneseq
        %v3217 = vshrl.u32 %v3216, 7
        %v3218 = vsub.s32 0, %v3217
        %v3219 = vrot.slane %v3150, %v3218
        %v3220 = vlaneseq
        %v3221 = vshrl.u32 %v3220, 7
        %v3222 = vsub.s32 1, %v3221
        %v3223 = vrot.slane %v3150, %v3222
        %v3224 = vlaneseq
        %v3225 = vshrl.u32 %v3224, 7
        %v3226 = vsub.s32 2, %v3225
        %v3227 = vrot.slane %v3150, %v3226
        %v3228 = vlaneseq
        %v3229 = vshrl.u32 %v3228, 7
        %v3230 = vsub.s32 3, %v3229
        %v3231 = vrot.slane %v3150, %v3230
        %v3268 = vunpack.c.l.b16 %v3118
        %v3269 = vunpack.c.h.b16 %v3118
        %v3270 = vunpack.c.l.b16 %v3119
        %v3271 = vunpack.c.h.b16 %v3119
        %v3272 = vunpack.c.l.b16 %v3120
        %v3273 = vunpack.c.h.b16 %v3120
        %v3274 = vunpack.c.l.b16 %v3121
        %v3275 = vunpack.c.h.b16 %v3121
        %v3276 = vunpack.c.l.b16 %v3122
        %v3277 = vunpack.c.h.b16 %v3122
        %v3278 = vunpack.c.l.b16 %v3123
        %v3279 = vunpack.c.h.b16 %v3123
        %v3280 = vunpack.c.l.b16 %v3124
        %v3281 = vunpack.c.h.b16 %v3124
        %v3282 = vunpack.c.l.b16 %v3125
        %v3283 = vunpack.c.h.b16 %v3125
        %v3284 = vunpack.c.l.b16 %v3126
        %v3285 = vunpack.c.h.b16 %v3126
        %v3286 = vunpack.c.l.b16 %v3127
        %v3287 = vunpack.c.h.b16 %v3127
        %v3288 = vunpack.c.l.b16 %v3128
        %v3289 = vunpack.c.h.b16 %v3128
        %v3290 = vunpack.c.l.b16 %v3129
        %v3291 = vunpack.c.h.b16 %v3129
        %v3292 = vunpack.c.l.b16 %v3130
        %v3293 = vunpack.c.h.b16 %v3130
        %v3294 = vunpack.c.l.b16 %v3131
        %v3295 = vunpack.c.h.b16 %v3131
        %v3296 = vunpack.c.l.b16 %v3132
        %v3297 = vunpack.c.h.b16 %v3132
        %v3298 = vunpack.c.l.b16 %v3133
        %v3299 = vunpack.c.h.b16 %v3133
        %v3300 = vunpack.c.l.b16 %v3134
        %v3301 = vunpack.c.h.b16 %v3134
        %v3302 = vunpack.c.l.b16 %v3135
        %v3303 = vunpack.c.h.b16 %v3135
        %v3304 = vunpack.c.l.b16 %v3136
        %v3305 = vunpack.c.h.b16 %v3136
        %v3306 = vunpack.c.l.b16 %v3137
        %v3307 = vunpack.c.h.b16 %v3137
        %v3308 = vunpack.c.l.b16 %v3138
        %v3309 = vunpack.c.h.b16 %v3138
        %v3310 = vunpack.c.l.b16 %v3139
        %v3311 = vunpack.c.h.b16 %v3139
        %v3312 = vunpack.c.l.b16 %v3140
        %v3313 = vunpack.c.h.b16 %v3140
        %v3314 = vunpack.c.l.b16 %v3141
        %v3315 = vunpack.c.h.b16 %v3141
        %v3316 = vunpack.c.l.b16 %v3142
        %v3317 = vunpack.c.h.b16 %v3142
        %v3318 = vunpack.c.l.b16 %v3143
        %v3319 = vunpack.c.h.b16 %v3143
        %v3320 = vunpack.c.l.b16 %v3144
        %v3321 = vunpack.c.h.b16 %v3144
        %v3322 = vunpack.c.l.b16 %v3145
        %v3323 = vunpack.c.h.b16 %v3145
        %v3324 = vunpack.c.l.b16 %v3146
        %v3325 = vunpack.c.h.b16 %v3146
        %v3326 = vunpack.c.l.b16 %v3147
        %v3327 = vunpack.c.h.b16 %v3147
        %v3328 = vunpack.c.l.b16 %v3148
        %v3329 = vunpack.c.h.b16 %v3148
        %v3330 = vunpack.c.l.b16 %v3149
        %v3331 = vunpack.c.h.b16 %v3149
        %v3332 = vpack.c.b16 %v3272, %v3268
        %v3333 = vpack.c.b16 %v3273, %v3269
        %v3334 = vpack.c.b16 %v3274, %v3270
        %v3335 = vpack.c.b16 %v3275, %v3271
        %v3336 = vpack.c.b16 %v3280, %v3276
        %v3337 = vpack.c.b16 %v3281, %v3277
        %v3338 = vpack.c.b16 %v3282, %v3278
        %v3339 = vpack.c.b16 %v3283, %v3279
        %v3340 = vpack.c.b16 %v3288, %v3284
        %v3341 = vpack.c.b16 %v3289, %v3285
        %v3342 = vpack.c.b16 %v3290, %v3286
        %v3343 = vpack.c.b16 %v3291, %v3287
        %v3344 = vpack.c.b16 %v3296, %v3292
        %v3345 = vpack.c.b16 %v3297, %v3293
        %v3346 = vpack.c.b16 %v3298, %v3294
        %v3347 = vpack.c.b16 %v3299, %v3295
        %v3348 = vpack.c.b16 %v3304, %v3300
        %v3349 = vpack.c.b16 %v3305, %v3301
        %v3350 = vpack.c.b16 %v3306, %v3302
        %v3351 = vpack.c.b16 %v3307, %v3303
        %v3352 = vpack.c.b16 %v3312, %v3308
        %v3353 = vpack.c.b16 %v3313, %v3309
        %v3354 = vpack.c.b16 %v3314, %v3310
        %v3355 = vpack.c.b16 %v3315, %v3311
        %v3356 = vpack.c.b16 %v3320, %v3316
        %v3357 = vpack.c.b16 %v3321, %v3317
        %v3358 = vpack.c.b16 %v3322, %v3318
        %v3359 = vpack.c.b16 %v3323, %v3319
        %v3360 = vpack.c.b16 %v3328, %v3324
        %v3361 = vpack.c.b16 %v3329, %v3325
        %v3362 = vpack.c.b16 %v3330, %v3326
        %v3363 = vpack.c.b16 %v3331, %v3327
        %3396 = vmatprep.subr.bf16.mxu0 %v3333
        %3397 = vmatpush1.bf16.msra.mxu0 %v3332
        %3398 = vmatprep.subr.bf16.mxu0 %v3337
        %3399 = vmatpush1.bf16.msra.mxu0 %v3336
        %3400 = vmatprep.subr.bf16.mxu0 %v3341
        %3401 = vmatpush1.bf16.msra.mxu0 %v3340
        %3402 = vmatprep.subr.bf16.mxu0 %v3345
        %3403 = vmatpush1.bf16.msra.mxu0 %v3344
        %3404 = vmatprep.subr.bf16.mxu0 %v3349
        %3405 = vmatpush1.bf16.msra.mxu0 %v3348
        %3406 = vmatprep.subr.bf16.mxu0 %v3353
        %3407 = vmatpush1.bf16.msra.mxu0 %v3352
        %3408 = vmatprep.subr.bf16.mxu0 %v3357
        %3409 = vmatpush1.bf16.msra.mxu0 %v3356
        %3410 = vmatprep.subr.bf16.mxu0 %v3361
        %3411 = vmatpush1.bf16.msra.mxu0 %v3360
        %3412 = vmatprep.subr.bf16.mxu0 0
        %3413 = vmatpush1.bf16.msra.mxu0 0
        %3414 = vmatprep.subr.bf16.mxu0 0
        %3415 = vmatpush1.bf16.msra.mxu0 0
        %3416 = vmatprep.subr.bf16.mxu0 0
        %3417 = vmatpush1.bf16.msra.mxu0 0
        %3418 = vmatprep.subr.bf16.mxu0 0
        %3419 = vmatpush1.bf16.msra.mxu0 0
        %3420 = vmatprep.subr.bf16.mxu0 0
        %3421 = vmatpush1.bf16.msra.mxu0 0
        %3422 = vmatprep.subr.bf16.mxu0 0
        %3423 = vmatpush1.bf16.msra.mxu0 0
        %3424 = vmatprep.subr.bf16.mxu0 0
        %3425 = vmatpush1.bf16.msra.mxu0 0
        %3426 = vmatprep.subr.bf16.mxu0 0
        %3427 = vmatpush1.bf16.msra.mxu0 0
        %3428 = vmatprep.mubr.bf16.mxu0 0
        %3429 = vmatmul.mubr.bf16.gmra.mrb[0].mxu0 %v1817
        %v3430 = vpop.f32.mrb[0].mxu0
        %v3431 = vadd.f32 %v3219, %v3430
        %v3432 = vpop.f32.mrb[0].mxu0
        %v3433 = vadd.f32 %v3223, %v3432
        %v3434 = vpop.f32.mrb[0].mxu0
        %v3435 = vadd.f32 %v3219, %v3434
        %v3436 = vpop.f32.mrb[0].mxu0
        %v3437 = vadd.f32 %v3223, %v3436
        %3438 = vdwg.mxu0
        %3439 = vmatprep.subr.bf16.mxu0 %v3335
        %3440 = vmatpush1.bf16.msra.mxu0 %v3334
        %3441 = vmatprep.subr.bf16.mxu0 %v3339
        %3442 = vmatpush1.bf16.msra.mxu0 %v3338
        %3443 = vmatprep.subr.bf16.mxu0 %v3343
        %3444 = vmatpush1.bf16.msra.mxu0 %v3342
        %3445 = vmatprep.subr.bf16.mxu0 %v3347
        %3446 = vmatpush1.bf16.msra.mxu0 %v3346
        %3447 = vmatprep.subr.bf16.mxu0 %v3351
        %3448 = vmatpush1.bf16.msra.mxu0 %v3350
        %3449 = vmatprep.subr.bf16.mxu0 %v3355
        %3450 = vmatpush1.bf16.msra.mxu0 %v3354
        %3451 = vmatprep.subr.bf16.mxu0 %v3359
        %3452 = vmatpush1.bf16.msra.mxu0 %v3358
        %3453 = vmatprep.subr.bf16.mxu0 %v3363
        %3454 = vmatpush1.bf16.msra.mxu0 %v3362
        %3455 = vmatprep.subr.bf16.mxu0 0
        %3456 = vmatpush1.bf16.msra.mxu0 0
        %3457 = vmatprep.subr.bf16.mxu0 0
        %3458 = vmatpush1.bf16.msra.mxu0 0
        %3459 = vmatprep.subr.bf16.mxu0 0
        %3460 = vmatpush1.bf16.msra.mxu0 0
        %3461 = vmatprep.subr.bf16.mxu0 0
        %3462 = vmatpush1.bf16.msra.mxu0 0
        %3463 = vmatprep.subr.bf16.mxu0 0
        %3464 = vmatpush1.bf16.msra.mxu0 0
        %3465 = vmatprep.subr.bf16.mxu0 0
        %3466 = vmatpush1.bf16.msra.mxu0 0
        %3467 = vmatprep.subr.bf16.mxu0 0
        %3468 = vmatpush1.bf16.msra.mxu0 0
        %3469 = vmatprep.subr.bf16.mxu0 0
        %3470 = vmatpush1.bf16.msra.mxu0 0
        %3471 = vmatprep.mubr.bf16.mxu0 0
        %3472 = vmatmul.mubr.bf16.gmra.mrb[0].mxu0 %v1817
        %v3473 = vpop.f32.mrb[0].mxu0
        %v3474 = vadd.f32 %v3227, %v3473
        %v3475 = vpop.f32.mrb[0].mxu0
        %v3476 = vadd.f32 %v3231, %v3475
        %v3477 = vpop.f32.mrb[0].mxu0
        %v3478 = vadd.f32 %v3227, %v3477
        %v3479 = vpop.f32.mrb[0].mxu0
        %v3480 = vadd.f32 %v3231, %v3479
        %3481 = vdwg.mxu0
        %v3482 = vmax.f32 %v3431, 0.0
        %v3483 = vmax.f32 %v3433, 0.0
        %v3484 = vmax.f32 %v3474, 0.0
        %v3485 = vmax.f32 %v3476, 0.0
        %v3486 = vmax.f32 %v3435, 0.0
        %v3487 = vmax.f32 %v3437, 0.0
        %v3488 = vmax.f32 %v3478, 0.0
        %v3489 = vmax.f32 %v3480, 0.0
        %v3490 = vpack.c.bf16 %v3486, %v3482
        %v3491 = vpack.c.bf16 %v3487, %v3483
        %v3492 = vpack.c.bf16 %v3488, %v3484
        %v3493 = vpack.c.bf16 %v3489, %v3485
        %v3558 = vunpack.c.l.b16 %v3151
        %v3559 = vunpack.c.l.b16 %v3152
        %v3560 = vunpack.c.l.b16 %v3153
        %v3561 = vunpack.c.l.b16 %v3154
        %v3562 = vunpack.c.l.b16 %v3155
        %v3563 = vunpack.c.l.b16 %v3156
        %v3564 = vunpack.c.l.b16 %v3157
        %v3565 = vunpack.c.l.b16 %v3158
        %v3566 = vunpack.c.l.b16 %v3159
        %v3567 = vunpack.c.l.b16 %v3160
        %v3568 = vunpack.c.l.b16 %v3161
        %v3569 = vunpack.c.l.b16 %v3162
        %v3570 = vunpack.c.l.b16 %v3163
        %v3571 = vunpack.c.l.b16 %v3164
        %v3572 = vunpack.c.l.b16 %v3165
        %v3573 = vunpack.c.l.b16 %v3166
        %v3574 = vunpack.c.l.b16 %v3167
        %v3575 = vunpack.c.l.b16 %v3168
        %v3576 = vunpack.c.l.b16 %v3169
        %v3577 = vunpack.c.l.b16 %v3170
        %v3578 = vunpack.c.l.b16 %v3171
        %v3579 = vunpack.c.l.b16 %v3172
        %v3580 = vunpack.c.l.b16 %v3173
        %v3581 = vunpack.c.l.b16 %v3174
        %v3582 = vunpack.c.l.b16 %v3175
        %v3583 = vunpack.c.l.b16 %v3176
        %v3584 = vunpack.c.l.b16 %v3177
        %v3585 = vunpack.c.l.b16 %v3178
        %v3586 = vunpack.c.l.b16 %v3179
        %v3587 = vunpack.c.l.b16 %v3180
        %v3588 = vunpack.c.l.b16 %v3181
        %v3589 = vunpack.c.l.b16 %v3182
        %v3590 = vunpack.c.l.b16 %v3183
        %v3591 = vunpack.c.l.b16 %v3184
        %v3592 = vunpack.c.l.b16 %v3185
        %v3593 = vunpack.c.l.b16 %v3186
        %v3594 = vunpack.c.l.b16 %v3187
        %v3595 = vunpack.c.l.b16 %v3188
        %v3596 = vunpack.c.l.b16 %v3189
        %v3597 = vunpack.c.l.b16 %v3190
        %v3598 = vunpack.c.l.b16 %v3191
        %v3599 = vunpack.c.l.b16 %v3192
        %v3600 = vunpack.c.l.b16 %v3193
        %v3601 = vunpack.c.l.b16 %v3194
        %v3602 = vunpack.c.l.b16 %v3195
        %v3603 = vunpack.c.l.b16 %v3196
        %v3604 = vunpack.c.l.b16 %v3197
        %v3605 = vunpack.c.l.b16 %v3198
        %v3606 = vunpack.c.l.b16 %v3199
        %v3607 = vunpack.c.l.b16 %v3200
        %v3608 = vunpack.c.l.b16 %v3201
        %v3609 = vunpack.c.l.b16 %v3202
        %v3610 = vunpack.c.l.b16 %v3203
        %v3611 = vunpack.c.l.b16 %v3204
        %v3612 = vunpack.c.l.b16 %v3205
        %v3613 = vunpack.c.l.b16 %v3206
        %v3614 = vunpack.c.l.b16 %v3207
        %v3615 = vunpack.c.l.b16 %v3208
        %v3616 = vunpack.c.l.b16 %v3209
        %v3617 = vunpack.c.l.b16 %v3210
        %v3618 = vunpack.c.l.b16 %v3211
        %v3619 = vunpack.c.l.b16 %v3212
        %v3620 = vunpack.c.l.b16 %v3213
        %v3621 = vunpack.c.l.b16 %v3214
        %v3622 = vpack.c.b16 %v3559, %v3558
        %v3623 = vpack.c.b16 %v3561, %v3560
        %v3624 = vpack.c.b16 %v3563, %v3562
        %v3625 = vpack.c.b16 %v3565, %v3564
        %v3626 = vpack.c.b16 %v3567, %v3566
        %v3627 = vpack.c.b16 %v3569, %v3568
        %v3628 = vpack.c.b16 %v3571, %v3570
        %v3629 = vpack.c.b16 %v3573, %v3572
        %v3630 = vpack.c.b16 %v3575, %v3574
        %v3631 = vpack.c.b16 %v3577, %v3576
        %v3632 = vpack.c.b16 %v3579, %v3578
        %v3633 = vpack.c.b16 %v3581, %v3580
        %v3634 = vpack.c.b16 %v3583, %v3582
        %v3635 = vpack.c.b16 %v3585, %v3584
        %v3636 = vpack.c.b16 %v3587, %v3586
        %v3637 = vpack.c.b16 %v3589, %v3588
        %v3638 = vpack.c.b16 %v3591, %v3590
        %v3639 = vpack.c.b16 %v3593, %v3592
        %v3640 = vpack.c.b16 %v3595, %v3594
        %v3641 = vpack.c.b16 %v3597, %v3596
        %v3642 = vpack.c.b16 %v3599, %v3598
        %v3643 = vpack.c.b16 %v3601, %v3600
        %v3644 = vpack.c.b16 %v3603, %v3602
        %v3645 = vpack.c.b16 %v3605, %v3604
        %v3646 = vpack.c.b16 %v3607, %v3606
        %v3647 = vpack.c.b16 %v3609, %v3608
        %v3648 = vpack.c.b16 %v3611, %v3610
        %v3649 = vpack.c.b16 %v3613, %v3612
        %v3650 = vpack.c.b16 %v3615, %v3614
        %v3651 = vpack.c.b16 %v3617, %v3616
        %v3652 = vpack.c.b16 %v3619, %v3618
        %v3653 = vpack.c.b16 %v3621, %v3620
        %3686 = vmatprep.subr.bf16.mxu0 0
        %3687 = vmatpush1.bf16.msra.mxu0 %v3622
        %3688 = vmatprep.subr.bf16.mxu0 0
        %3689 = vmatpush1.bf16.msra.mxu0 %v3623
        %3690 = vmatprep.subr.bf16.mxu0 0
        %3691 = vmatpush1.bf16.msra.mxu0 %v3624
        %3692 = vmatprep.subr.bf16.mxu0 0
        %3693 = vmatpush1.bf16.msra.mxu0 %v3625
        %3694 = vmatprep.subr.bf16.mxu0 0
        %3695 = vmatpush1.bf16.msra.mxu0 %v3626
        %3696 = vmatprep.subr.bf16.mxu0 0
        %3697 = vmatpush1.bf16.msra.mxu0 %v3627
        %3698 = vmatprep.subr.bf16.mxu0 0
        %3699 = vmatpush1.bf16.msra.mxu0 %v3628
        %3700 = vmatprep.subr.bf16.mxu0 0
        %3701 = vmatpush1.bf16.msra.mxu0 %v3629
        %3702 = vmatprep.subr.bf16.mxu0 0
        %3703 = vmatpush1.bf16.msra.mxu0 %v3630
        %3704 = vmatprep.subr.bf16.mxu0 0
        %3705 = vmatpush1.bf16.msra.mxu0 %v3631
        %3706 = vmatprep.subr.bf16.mxu0 0
        %3707 = vmatpush1.bf16.msra.mxu0 %v3632
        %3708 = vmatprep.subr.bf16.mxu0 0
        %3709 = vmatpush1.bf16.msra.mxu0 %v3633
        %3710 = vmatprep.subr.bf16.mxu0 0
        %3711 = vmatpush1.bf16.msra.mxu0 %v3634
        %3712 = vmatprep.subr.bf16.mxu0 0
        %3713 = vmatpush1.bf16.msra.mxu0 %v3635
        %3714 = vmatprep.subr.bf16.mxu0 0
        %3715 = vmatpush1.bf16.msra.mxu0 %v3636
        %3716 = vmatprep.subr.bf16.mxu0 0
        %3717 = vmatpush1.bf16.msra.mxu0 %v3637
        %3718 = vmatprep.mubr.bf16.mxu0 %v3491
        %3719 = vmatmul.mubr.bf16.gmra.mrb[0].mxu0 %v3490
        %v3720 = vpop.f32.mrb[0].mxu0
        %v3721 = vadd.f32 0.0, %v3720
        %v3722 = vpop.f32.mrb[0].mxu0
        %v3723 = vpop.f32.mrb[0].mxu0
        %v3724 = vadd.f32 0.0, %v3723
        %v3725 = vpop.f32.mrb[0].mxu0
        %3726 = vdwg.mxu0
        %3727 = vmatprep.subr.bf16.mxu0 0
        %3728 = vmatpush1.bf16.msra.mxu0 %v3638
        %3729 = vmatprep.subr.bf16.mxu0 0
        %3730 = vmatpush1.bf16.msra.mxu0 %v3639
        %3731 = vmatprep.subr.bf16.mxu0 0
        %3732 = vmatpush1.bf16.msra.mxu0 %v3640
        %3733 = vmatprep.subr.bf16.mxu0 0
        %3734 = vmatpush1.bf16.msra.mxu0 %v3641
        %3735 = vmatprep.subr.bf16.mxu0 0
        %3736 = vmatpush1.bf16.msra.mxu0 %v3642
        %3737 = vmatprep.subr.bf16.mxu0 0
        %3738 = vmatpush1.bf16.msra.mxu0 %v3643
        %3739 = vmatprep.subr.bf16.mxu0 0
        %3740 = vmatpush1.bf16.msra.mxu0 %v3644
        %3741 = vmatprep.subr.bf16.mxu0 0
        %3742 = vmatpush1.bf16.msra.mxu0 %v3645
        %3743 = vmatprep.subr.bf16.mxu0 0
        %3744 = vmatpush1.bf16.msra.mxu0 %v3646
        %3745 = vmatprep.subr.bf16.mxu0 0
        %3746 = vmatpush1.bf16.msra.mxu0 %v3647
        %3747 = vmatprep.subr.bf16.mxu0 0
        %3748 = vmatpush1.bf16.msra.mxu0 %v3648
        %3749 = vmatprep.subr.bf16.mxu0 0
        %3750 = vmatpush1.bf16.msra.mxu0 %v3649
        %3751 = vmatprep.subr.bf16.mxu0 0
        %3752 = vmatpush1.bf16.msra.mxu0 %v3650
        %3753 = vmatprep.subr.bf16.mxu0 0
        %3754 = vmatpush1.bf16.msra.mxu0 %v3651
        %3755 = vmatprep.subr.bf16.mxu0 0
        %3756 = vmatpush1.bf16.msra.mxu0 %v3652
        %3757 = vmatprep.subr.bf16.mxu0 0
        %3758 = vmatpush1.bf16.msra.mxu0 %v3653
        %3759 = vmatprep.mubr.bf16.mxu0 %v3493
        %3760 = vmatmul.mubr.bf16.gmra.mrb[0].mxu0 %v3492
        %v3761 = vpop.f32.mrb[0].mxu0
        %v3762 = vadd.f32 %v3721, %v3761
        %v3763 = vpop.f32.mrb[0].mxu0
        %v3764 = vpop.f32.mrb[0].mxu0
        %v3765 = vadd.f32 %v3724, %v3764
        %v3766 = vpop.f32.mrb[0].mxu0
        %3767 = vdwg.mxu0
        %v3768 = vadd.f32 %v3112, %v3762
        %v3769 = vadd.f32 %v3115, %v3765
        %v3770 = vld [vmem:[%s446 + $0x30] sm:$0xff]
        %v3771 = vld [vmem:[%s446 + $0x38] sm:$0xff]
        %v3772 = vld [vmem:[%s446 + $0x70] sm:$0xff]
        %v3773 = vld [vmem:[%s446 + $0x78] sm:$0xff]
        %v3774 = vld [vmem:[%s446 + $0xb0] sm:$0xff]
        %v3775 = vld [vmem:[%s446 + $0xb8] sm:$0xff]
        %v3776 = vld [vmem:[%s446 + $0xf0] sm:$0xff]
        %v3777 = vld [vmem:[%s446 + $0xf8] sm:$0xff]
        %v3778 = vld [vmem:[%s446 + $0x130] sm:$0xff]
        %v3779 = vld [vmem:[%s446 + $0x138] sm:$0xff]
        %v3780 = vld [vmem:[%s446 + $0x170] sm:$0xff]
        %v3781 = vld [vmem:[%s446 + $0x178] sm:$0xff]
        %v3782 = vld [vmem:[%s446 + $0x1b0] sm:$0xff]
        %v3783 = vld [vmem:[%s446 + $0x1b8] sm:$0xff]
        %v3784 = vld [vmem:[%s446 + $0x1f0] sm:$0xff]
        %v3785 = vld [vmem:[%s446 + $0x1f8] sm:$0xff]
        %v3786 = vld [vmem:[%s446 + $0x230] sm:$0xff]
        %v3787 = vld [vmem:[%s446 + $0x238] sm:$0xff]
        %v3788 = vld [vmem:[%s446 + $0x270] sm:$0xff]
        %v3789 = vld [vmem:[%s446 + $0x278] sm:$0xff]
        %v3790 = vld [vmem:[%s446 + $0x2b0] sm:$0xff]
        %v3791 = vld [vmem:[%s446 + $0x2b8] sm:$0xff]
        %v3792 = vld [vmem:[%s446 + $0x2f0] sm:$0xff]
        %v3793 = vld [vmem:[%s446 + $0x2f8] sm:$0xff]
        %v3794 = vld [vmem:[%s446 + $0x330] sm:$0xff]
        %v3795 = vld [vmem:[%s446 + $0x338] sm:$0xff]
        %v3796 = vld [vmem:[%s446 + $0x370] sm:$0xff]
        %v3797 = vld [vmem:[%s446 + $0x378] sm:$0xff]
        %v3798 = vld [vmem:[%s446 + $0x3b0] sm:$0xff]
        %v3799 = vld [vmem:[%s446 + $0x3b8] sm:$0xff]
        %v3800 = vld [vmem:[%s446 + $0x3f0] sm:$0xff]
        %v3801 = vld [vmem:[%s446 + $0x3f8] sm:$0xff]
        %v3802 = vld [vmem:[%s464 + $0xc] sm:$0xf]
        %v3803 = vld [vmem:[%s455 + $0x300] sm:$0xf]
        %v3804 = vld [vmem:[%s455 + $0x304] sm:$0xf]
        %v3805 = vld [vmem:[%s455 + $0x308] sm:$0xf]
        %v3806 = vld [vmem:[%s455 + $0x30c] sm:$0xf]
        %v3807 = vld [vmem:[%s455 + $0x310] sm:$0xf]
        %v3808 = vld [vmem:[%s455 + $0x314] sm:$0xf]
        %v3809 = vld [vmem:[%s455 + $0x318] sm:$0xf]
        %v3810 = vld [vmem:[%s455 + $0x31c] sm:$0xf]
        %v3811 = vld [vmem:[%s455 + $0x320] sm:$0xf]
        %v3812 = vld [vmem:[%s455 + $0x324] sm:$0xf]
        %v3813 = vld [vmem:[%s455 + $0x328] sm:$0xf]
        %v3814 = vld [vmem:[%s455 + $0x32c] sm:$0xf]
        %v3815 = vld [vmem:[%s455 + $0x330] sm:$0xf]
        %v3816 = vld [vmem:[%s455 + $0x334] sm:$0xf]
        %v3817 = vld [vmem:[%s455 + $0x338] sm:$0xf]
        %v3818 = vld [vmem:[%s455 + $0x33c] sm:$0xf]
        %v3819 = vld [vmem:[%s455 + $0x340] sm:$0xf]
        %v3820 = vld [vmem:[%s455 + $0x344] sm:$0xf]
        %v3821 = vld [vmem:[%s455 + $0x348] sm:$0xf]
        %v3822 = vld [vmem:[%s455 + $0x34c] sm:$0xf]
        %v3823 = vld [vmem:[%s455 + $0x350] sm:$0xf]
        %v3824 = vld [vmem:[%s455 + $0x354] sm:$0xf]
        %v3825 = vld [vmem:[%s455 + $0x358] sm:$0xf]
        %v3826 = vld [vmem:[%s455 + $0x35c] sm:$0xf]
        %v3827 = vld [vmem:[%s455 + $0x360] sm:$0xf]
        %v3828 = vld [vmem:[%s455 + $0x364] sm:$0xf]
        %v3829 = vld [vmem:[%s455 + $0x368] sm:$0xf]
        %v3830 = vld [vmem:[%s455 + $0x36c] sm:$0xf]
        %v3831 = vld [vmem:[%s455 + $0x370] sm:$0xf]
        %v3832 = vld [vmem:[%s455 + $0x374] sm:$0xf]
        %v3833 = vld [vmem:[%s455 + $0x378] sm:$0xf]
        %v3834 = vld [vmem:[%s455 + $0x37c] sm:$0xf]
        %v3835 = vld [vmem:[%s455 + $0x380] sm:$0xf]
        %v3836 = vld [vmem:[%s455 + $0x384] sm:$0xf]
        %v3837 = vld [vmem:[%s455 + $0x388] sm:$0xf]
        %v3838 = vld [vmem:[%s455 + $0x38c] sm:$0xf]
        %v3839 = vld [vmem:[%s455 + $0x390] sm:$0xf]
        %v3840 = vld [vmem:[%s455 + $0x394] sm:$0xf]
        %v3841 = vld [vmem:[%s455 + $0x398] sm:$0xf]
        %v3842 = vld [vmem:[%s455 + $0x39c] sm:$0xf]
        %v3843 = vld [vmem:[%s455 + $0x3a0] sm:$0xf]
        %v3844 = vld [vmem:[%s455 + $0x3a4] sm:$0xf]
        %v3845 = vld [vmem:[%s455 + $0x3a8] sm:$0xf]
        %v3846 = vld [vmem:[%s455 + $0x3ac] sm:$0xf]
        %v3847 = vld [vmem:[%s455 + $0x3b0] sm:$0xf]
        %v3848 = vld [vmem:[%s455 + $0x3b4] sm:$0xf]
        %v3849 = vld [vmem:[%s455 + $0x3b8] sm:$0xf]
        %v3850 = vld [vmem:[%s455 + $0x3bc] sm:$0xf]
        %v3851 = vld [vmem:[%s455 + $0x3c0] sm:$0xf]
        %v3852 = vld [vmem:[%s455 + $0x3c4] sm:$0xf]
        %v3853 = vld [vmem:[%s455 + $0x3c8] sm:$0xf]
        %v3854 = vld [vmem:[%s455 + $0x3cc] sm:$0xf]
        %v3855 = vld [vmem:[%s455 + $0x3d0] sm:$0xf]
        %v3856 = vld [vmem:[%s455 + $0x3d4] sm:$0xf]
        %v3857 = vld [vmem:[%s455 + $0x3d8] sm:$0xf]
        %v3858 = vld [vmem:[%s455 + $0x3dc] sm:$0xf]
        %v3859 = vld [vmem:[%s455 + $0x3e0] sm:$0xf]
        %v3860 = vld [vmem:[%s455 + $0x3e4] sm:$0xf]
        %v3861 = vld [vmem:[%s455 + $0x3e8] sm:$0xf]
        %v3862 = vld [vmem:[%s455 + $0x3ec] sm:$0xf]
        %v3863 = vld [vmem:[%s455 + $0x3f0] sm:$0xf]
        %v3864 = vld [vmem:[%s455 + $0x3f4] sm:$0xf]
        %v3865 = vld [vmem:[%s455 + $0x3f8] sm:$0xf]
        %v3866 = vld [vmem:[%s455 + $0x3fc] sm:$0xf]
        %v3868 = vlaneseq
        %v3869 = vshrl.u32 %v3868, 7
        %v3870 = vsub.s32 0, %v3869
        %v3871 = vrot.slane %v3802, %v3870
        %v3872 = vlaneseq
        %v3873 = vshrl.u32 %v3872, 7
        %v3874 = vsub.s32 1, %v3873
        %v3875 = vrot.slane %v3802, %v3874
        %v3876 = vlaneseq
        %v3877 = vshrl.u32 %v3876, 7
        %v3878 = vsub.s32 2, %v3877
        %v3879 = vrot.slane %v3802, %v3878
        %v3880 = vlaneseq
        %v3881 = vshrl.u32 %v3880, 7
        %v3882 = vsub.s32 3, %v3881
        %v3883 = vrot.slane %v3802, %v3882
        %v3920 = vunpack.c.l.b16 %v3770
        %v3921 = vunpack.c.h.b16 %v3770
        %v3922 = vunpack.c.l.b16 %v3771
        %v3923 = vunpack.c.h.b16 %v3771
        %v3924 = vunpack.c.l.b16 %v3772
        %v3925 = vunpack.c.h.b16 %v3772
        %v3926 = vunpack.c.l.b16 %v3773
        %v3927 = vunpack.c.h.b16 %v3773
        %v3928 = vunpack.c.l.b16 %v3774
        %v3929 = vunpack.c.h.b16 %v3774
        %v3930 = vunpack.c.l.b16 %v3775
        %v3931 = vunpack.c.h.b16 %v3775
        %v3932 = vunpack.c.l.b16 %v3776
        %v3933 = vunpack.c.h.b16 %v3776
        %v3934 = vunpack.c.l.b16 %v3777
        %v3935 = vunpack.c.h.b16 %v3777
        %v3936 = vunpack.c.l.b16 %v3778
        %v3937 = vunpack.c.h.b16 %v3778
        %v3938 = vunpack.c.l.b16 %v3779
        %v3939 = vunpack.c.h.b16 %v3779
        %v3940 = vunpack.c.l.b16 %v3780
        %v3941 = vunpack.c.h.b16 %v3780
        %v3942 = vunpack.c.l.b16 %v3781
        %v3943 = vunpack.c.h.b16 %v3781
        %v3944 = vunpack.c.l.b16 %v3782
        %v3945 = vunpack.c.h.b16 %v3782
        %v3946 = vunpack.c.l.b16 %v3783
        %v3947 = vunpack.c.h.b16 %v3783
        %v3948 = vunpack.c.l.b16 %v3784
        %v3949 = vunpack.c.h.b16 %v3784
        %v3950 = vunpack.c.l.b16 %v3785
        %v3951 = vunpack.c.h.b16 %v3785
        %v3952 = vunpack.c.l.b16 %v3786
        %v3953 = vunpack.c.h.b16 %v3786
        %v3954 = vunpack.c.l.b16 %v3787
        %v3955 = vunpack.c.h.b16 %v3787
        %v3956 = vunpack.c.l.b16 %v3788
        %v3957 = vunpack.c.h.b16 %v3788
        %v3958 = vunpack.c.l.b16 %v3789
        %v3959 = vunpack.c.h.b16 %v3789
        %v3960 = vunpack.c.l.b16 %v3790
        %v3961 = vunpack.c.h.b16 %v3790
        %v3962 = vunpack.c.l.b16 %v3791
        %v3963 = vunpack.c.h.b16 %v3791
        %v3964 = vunpack.c.l.b16 %v3792
        %v3965 = vunpack.c.h.b16 %v3792
        %v3966 = vunpack.c.l.b16 %v3793
        %v3967 = vunpack.c.h.b16 %v3793
        %v3968 = vunpack.c.l.b16 %v3794
        %v3969 = vunpack.c.h.b16 %v3794
        %v3970 = vunpack.c.l.b16 %v3795
        %v3971 = vunpack.c.h.b16 %v3795
        %v3972 = vunpack.c.l.b16 %v3796
        %v3973 = vunpack.c.h.b16 %v3796
        %v3974 = vunpack.c.l.b16 %v3797
        %v3975 = vunpack.c.h.b16 %v3797
        %v3976 = vunpack.c.l.b16 %v3798
        %v3977 = vunpack.c.h.b16 %v3798
        %v3978 = vunpack.c.l.b16 %v3799
        %v3979 = vunpack.c.h.b16 %v3799
        %v3980 = vunpack.c.l.b16 %v3800
        %v3981 = vunpack.c.h.b16 %v3800
        %v3982 = vunpack.c.l.b16 %v3801
        %v3983 = vunpack.c.h.b16 %v3801
        %v3984 = vpack.c.b16 %v3924, %v3920
        %v3985 = vpack.c.b16 %v3925, %v3921
        %v3986 = vpack.c.b16 %v3926, %v3922
        %v3987 = vpack.c.b16 %v3927, %v3923
        %v3988 = vpack.c.b16 %v3932, %v3928
        %v3989 = vpack.c.b16 %v3933, %v3929
        %v3990 = vpack.c.b16 %v3934, %v3930
        %v3991 = vpack.c.b16 %v3935, %v3931
        %v3992 = vpack.c.b16 %v3940, %v3936
        %v3993 = vpack.c.b16 %v3941, %v3937
        %v3994 = vpack.c.b16 %v3942, %v3938
        %v3995 = vpack.c.b16 %v3943, %v3939
        %v3996 = vpack.c.b16 %v3948, %v3944
        %v3997 = vpack.c.b16 %v3949, %v3945
        %v3998 = vpack.c.b16 %v3950, %v3946
        %v3999 = vpack.c.b16 %v3951, %v3947
        %v4000 = vpack.c.b16 %v3956, %v3952
        %v4001 = vpack.c.b16 %v3957, %v3953
        %v4002 = vpack.c.b16 %v3958, %v3954
        %v4003 = vpack.c.b16 %v3959, %v3955
        %v4004 = vpack.c.b16 %v3964, %v3960
        %v4005 = vpack.c.b16 %v3965, %v3961
        %v4006 = vpack.c.b16 %v3966, %v3962
        %v4007 = vpack.c.b16 %v3967, %v3963
        %v4008 = vpack.c.b16 %v3972, %v3968
        %v4009 = vpack.c.b16 %v3973, %v3969
        %v4010 = vpack.c.b16 %v3974, %v3970
        %v4011 = vpack.c.b16 %v3975, %v3971
        %v4012 = vpack.c.b16 %v3980, %v3976
        %v4013 = vpack.c.b16 %v3981, %v3977
        %v4014 = vpack.c.b16 %v3982, %v3978
        %v4015 = vpack.c.b16 %v3983, %v3979
        %4048 = vmatprep.subr.bf16.mxu0 %v3985
        %4049 = vmatpush1.bf16.msra.mxu0 %v3984
        %4050 = vmatprep.subr.bf16.mxu0 %v3989
        %4051 = vmatpush1.bf16.msra.mxu0 %v3988
        %4052 = vmatprep.subr.bf16.mxu0 %v3993
        %4053 = vmatpush1.bf16.msra.mxu0 %v3992
        %4054 = vmatprep.subr.bf16.mxu0 %v3997
        %4055 = vmatpush1.bf16.msra.mxu0 %v3996
        %4056 = vmatprep.subr.bf16.mxu0 %v4001
        %4057 = vmatpush1.bf16.msra.mxu0 %v4000
        %4058 = vmatprep.subr.bf16.mxu0 %v4005
        %4059 = vmatpush1.bf16.msra.mxu0 %v4004
        %4060 = vmatprep.subr.bf16.mxu0 %v4009
        %4061 = vmatpush1.bf16.msra.mxu0 %v4008
        %4062 = vmatprep.subr.bf16.mxu0 %v4013
        %4063 = vmatpush1.bf16.msra.mxu0 %v4012
        %4064 = vmatprep.subr.bf16.mxu0 0
        %4065 = vmatpush1.bf16.msra.mxu0 0
        %4066 = vmatprep.subr.bf16.mxu0 0
        %4067 = vmatpush1.bf16.msra.mxu0 0
        %4068 = vmatprep.subr.bf16.mxu0 0
        %4069 = vmatpush1.bf16.msra.mxu0 0
        %4070 = vmatprep.subr.bf16.mxu0 0
        %4071 = vmatpush1.bf16.msra.mxu0 0
        %4072 = vmatprep.subr.bf16.mxu0 0
        %4073 = vmatpush1.bf16.msra.mxu0 0
        %4074 = vmatprep.subr.bf16.mxu0 0
        %4075 = vmatpush1.bf16.msra.mxu0 0
        %4076 = vmatprep.subr.bf16.mxu0 0
        %4077 = vmatpush1.bf16.msra.mxu0 0
        %4078 = vmatprep.subr.bf16.mxu0 0
        %4079 = vmatpush1.bf16.msra.mxu0 0
        %4080 = vmatprep.mubr.bf16.mxu0 0
        %4081 = vmatmul.mubr.bf16.gmra.mrb[0].mxu0 %v1817
        %v4082 = vpop.f32.mrb[0].mxu0
        %v4083 = vadd.f32 %v3871, %v4082
        %v4084 = vpop.f32.mrb[0].mxu0
        %v4085 = vadd.f32 %v3875, %v4084
        %v4086 = vpop.f32.mrb[0].mxu0
        %v4087 = vadd.f32 %v3871, %v4086
        %v4088 = vpop.f32.mrb[0].mxu0
        %v4089 = vadd.f32 %v3875, %v4088
        %4090 = vdwg.mxu0
        %4091 = vmatprep.subr.bf16.mxu0 %v3987
        %4092 = vmatpush1.bf16.msra.mxu0 %v3986
        %4093 = vmatprep.subr.bf16.mxu0 %v3991
        %4094 = vmatpush1.bf16.msra.mxu0 %v3990
        %4095 = vmatprep.subr.bf16.mxu0 %v3995
        %4096 = vmatpush1.bf16.msra.mxu0 %v3994
        %4097 = vmatprep.subr.bf16.mxu0 %v3999
        %4098 = vmatpush1.bf16.msra.mxu0 %v3998
        %4099 = vmatprep.subr.bf16.mxu0 %v4003
        %4100 = vmatpush1.bf16.msra.mxu0 %v4002
        %4101 = vmatprep.subr.bf16.mxu0 %v4007
        %4102 = vmatpush1.bf16.msra.mxu0 %v4006
        %4103 = vmatprep.subr.bf16.mxu0 %v4011
        %4104 = vmatpush1.bf16.msra.mxu0 %v4010
        %4105 = vmatprep.subr.bf16.mxu0 %v4015
        %4106 = vmatpush1.bf16.msra.mxu0 %v4014
        %4107 = vmatprep.subr.bf16.mxu0 0
        %4108 = vmatpush1.bf16.msra.mxu0 0
        %4109 = vmatprep.subr.bf16.mxu0 0
        %4110 = vmatpush1.bf16.msra.mxu0 0
        %4111 = vmatprep.subr.bf16.mxu0 0
        %4112 = vmatpush1.bf16.msra.mxu0 0
        %4113 = vmatprep.subr.bf16.mxu0 0
        %4114 = vmatpush1.bf16.msra.mxu0 0
        %4115 = vmatprep.subr.bf16.mxu0 0
        %4116 = vmatpush1.bf16.msra.mxu0 0
        %4117 = vmatprep.subr.bf16.mxu0 0
        %4118 = vmatpush1.bf16.msra.mxu0 0
        %4119 = vmatprep.subr.bf16.mxu0 0
        %4120 = vmatpush1.bf16.msra.mxu0 0
        %4121 = vmatprep.subr.bf16.mxu0 0
        %4122 = vmatpush1.bf16.msra.mxu0 0
        %4123 = vmatprep.mubr.bf16.mxu0 0
        %4124 = vmatmul.mubr.bf16.gmra.mrb[0].mxu0 %v1817
        %v4125 = vpop.f32.mrb[0].mxu0
        %v4126 = vadd.f32 %v3879, %v4125
        %v4127 = vpop.f32.mrb[0].mxu0
        %v4128 = vadd.f32 %v3883, %v4127
        %v4129 = vpop.f32.mrb[0].mxu0
        %v4130 = vadd.f32 %v3879, %v4129
        %v4131 = vpop.f32.mrb[0].mxu0
        %v4132 = vadd.f32 %v3883, %v4131
        %4133 = vdwg.mxu0
        %v4134 = vmax.f32 %v4083, 0.0
        %v4135 = vmax.f32 %v4085, 0.0
        %v4136 = vmax.f32 %v4126, 0.0
        %v4137 = vmax.f32 %v4128, 0.0
        %v4138 = vmax.f32 %v4087, 0.0
        %v4139 = vmax.f32 %v4089, 0.0
        %v4140 = vmax.f32 %v4130, 0.0
        %v4141 = vmax.f32 %v4132, 0.0
        %v4142 = vpack.c.bf16 %v4138, %v4134
        %v4143 = vpack.c.bf16 %v4139, %v4135
        %v4144 = vpack.c.bf16 %v4140, %v4136
        %v4145 = vpack.c.bf16 %v4141, %v4137
        %v4210 = vunpack.c.l.b16 %v3803
        %v4211 = vunpack.c.l.b16 %v3804
        %v4212 = vunpack.c.l.b16 %v3805
        %v4213 = vunpack.c.l.b16 %v3806
        %v4214 = vunpack.c.l.b16 %v3807
        %v4215 = vunpack.c.l.b16 %v3808
        %v4216 = vunpack.c.l.b16 %v3809
        %v4217 = vunpack.c.l.b16 %v3810
        %v4218 = vunpack.c.l.b16 %v3811
        %v4219 = vunpack.c.l.b16 %v3812
        %v4220 = vunpack.c.l.b16 %v3813
        %v4221 = vunpack.c.l.b16 %v3814
        %v4222 = vunpack.c.l.b16 %v3815
        %v4223 = vunpack.c.l.b16 %v3816
        %v4224 = vunpack.c.l.b16 %v3817
        %v4225 = vunpack.c.l.b16 %v3818
        %v4226 = vunpack.c.l.b16 %v3819
        %v4227 = vunpack.c.l.b16 %v3820
        %v4228 = vunpack.c.l.b16 %v3821
        %v4229 = vunpack.c.l.b16 %v3822
        %v4230 = vunpack.c.l.b16 %v3823
        %v4231 = vunpack.c.l.b16 %v3824
        %v4232 = vunpack.c.l.b16 %v3825
        %v4233 = vunpack.c.l.b16 %v3826
        %v4234 = vunpack.c.l.b16 %v3827
        %v4235 = vunpack.c.l.b16 %v3828
        %v4236 = vunpack.c.l.b16 %v3829
        %v4237 = vunpack.c.l.b16 %v3830
        %v4238 = vunpack.c.l.b16 %v3831
        %v4239 = vunpack.c.l.b16 %v3832
        %v4240 = vunpack.c.l.b16 %v3833
        %v4241 = vunpack.c.l.b16 %v3834
        %v4242 = vunpack.c.l.b16 %v3835
        %v4243 = vunpack.c.l.b16 %v3836
        %v4244 = vunpack.c.l.b16 %v3837
        %v4245 = vunpack.c.l.b16 %v3838
        %v4246 = vunpack.c.l.b16 %v3839
        %v4247 = vunpack.c.l.b16 %v3840
        %v4248 = vunpack.c.l.b16 %v3841
        %v4249 = vunpack.c.l.b16 %v3842
        %v4250 = vunpack.c.l.b16 %v3843
        %v4251 = vunpack.c.l.b16 %v3844
        %v4252 = vunpack.c.l.b16 %v3845
        %v4253 = vunpack.c.l.b16 %v3846
        %v4254 = vunpack.c.l.b16 %v3847
        %v4255 = vunpack.c.l.b16 %v3848
        %v4256 = vunpack.c.l.b16 %v3849
        %v4257 = vunpack.c.l.b16 %v3850
        %v4258 = vunpack.c.l.b16 %v3851
        %v4259 = vunpack.c.l.b16 %v3852
        %v4260 = vunpack.c.l.b16 %v3853
        %v4261 = vunpack.c.l.b16 %v3854
        %v4262 = vunpack.c.l.b16 %v3855
        %v4263 = vunpack.c.l.b16 %v3856
        %v4264 = vunpack.c.l.b16 %v3857
        %v4265 = vunpack.c.l.b16 %v3858
        %v4266 = vunpack.c.l.b16 %v3859
        %v4267 = vunpack.c.l.b16 %v3860
        %v4268 = vunpack.c.l.b16 %v3861
        %v4269 = vunpack.c.l.b16 %v3862
        %v4270 = vunpack.c.l.b16 %v3863
        %v4271 = vunpack.c.l.b16 %v3864
        %v4272 = vunpack.c.l.b16 %v3865
        %v4273 = vunpack.c.l.b16 %v3866
        %v4274 = vpack.c.b16 %v4211, %v4210
        %v4275 = vpack.c.b16 %v4213, %v4212
        %v4276 = vpack.c.b16 %v4215, %v4214
        %v4277 = vpack.c.b16 %v4217, %v4216
        %v4278 = vpack.c.b16 %v4219, %v4218
        %v4279 = vpack.c.b16 %v4221, %v4220
        %v4280 = vpack.c.b16 %v4223, %v4222
        %v4281 = vpack.c.b16 %v4225, %v4224
        %v4282 = vpack.c.b16 %v4227, %v4226
        %v4283 = vpack.c.b16 %v4229, %v4228
        %v4284 = vpack.c.b16 %v4231, %v4230
        %v4285 = vpack.c.b16 %v4233, %v4232
        %v4286 = vpack.c.b16 %v4235, %v4234
        %v4287 = vpack.c.b16 %v4237, %v4236
        %v4288 = vpack.c.b16 %v4239, %v4238
        %v4289 = vpack.c.b16 %v4241, %v4240
        %v4290 = vpack.c.b16 %v4243, %v4242
        %v4291 = vpack.c.b16 %v4245, %v4244
        %v4292 = vpack.c.b16 %v4247, %v4246
        %v4293 = vpack.c.b16 %v4249, %v4248
        %v4294 = vpack.c.b16 %v4251, %v4250
        %v4295 = vpack.c.b16 %v4253, %v4252
        %v4296 = vpack.c.b16 %v4255, %v4254
        %v4297 = vpack.c.b16 %v4257, %v4256
        %v4298 = vpack.c.b16 %v4259, %v4258
        %v4299 = vpack.c.b16 %v4261, %v4260
        %v4300 = vpack.c.b16 %v4263, %v4262
        %v4301 = vpack.c.b16 %v4265, %v4264
        %v4302 = vpack.c.b16 %v4267, %v4266
        %v4303 = vpack.c.b16 %v4269, %v4268
        %v4304 = vpack.c.b16 %v4271, %v4270
        %v4305 = vpack.c.b16 %v4273, %v4272
        %4338 = vmatprep.subr.bf16.mxu0 0
        %4339 = vmatpush1.bf16.msra.mxu0 %v4274
        %4340 = vmatprep.subr.bf16.mxu0 0
        %4341 = vmatpush1.bf16.msra.mxu0 %v4275
        %4342 = vmatprep.subr.bf16.mxu0 0
        %4343 = vmatpush1.bf16.msra.mxu0 %v4276
        %4344 = vmatprep.subr.bf16.mxu0 0
        %4345 = vmatpush1.bf16.msra.mxu0 %v4277
        %4346 = vmatprep.subr.bf16.mxu0 0
        %4347 = vmatpush1.bf16.msra.mxu0 %v4278
        %4348 = vmatprep.subr.bf16.mxu0 0
        %4349 = vmatpush1.bf16.msra.mxu0 %v4279
        %4350 = vmatprep.subr.bf16.mxu0 0
        %4351 = vmatpush1.bf16.msra.mxu0 %v4280
        %4352 = vmatprep.subr.bf16.mxu0 0
        %4353 = vmatpush1.bf16.msra.mxu0 %v4281
        %4354 = vmatprep.subr.bf16.mxu0 0
        %4355 = vmatpush1.bf16.msra.mxu0 %v4282
        %4356 = vmatprep.subr.bf16.mxu0 0
        %4357 = vmatpush1.bf16.msra.mxu0 %v4283
        %4358 = vmatprep.subr.bf16.mxu0 0
        %4359 = vmatpush1.bf16.msra.mxu0 %v4284
        %4360 = vmatprep.subr.bf16.mxu0 0
        %4361 = vmatpush1.bf16.msra.mxu0 %v4285
        %4362 = vmatprep.subr.bf16.mxu0 0
        %4363 = vmatpush1.bf16.msra.mxu0 %v4286
        %4364 = vmatprep.subr.bf16.mxu0 0
        %4365 = vmatpush1.bf16.msra.mxu0 %v4287
        %4366 = vmatprep.subr.bf16.mxu0 0
        %4367 = vmatpush1.bf16.msra.mxu0 %v4288
        %4368 = vmatprep.subr.bf16.mxu0 0
        %4369 = vmatpush1.bf16.msra.mxu0 %v4289
        %4370 = vmatprep.mubr.bf16.mxu0 %v4143
        %4371 = vmatmul.mubr.bf16.gmra.mrb[0].mxu0 %v4142
        %v4372 = vpop.f32.mrb[0].mxu0
        %v4373 = vadd.f32 0.0, %v4372
        %v4374 = vpop.f32.mrb[0].mxu0
        %v4375 = vpop.f32.mrb[0].mxu0
        %v4376 = vadd.f32 0.0, %v4375
        %v4377 = vpop.f32.mrb[0].mxu0
        %4378 = vdwg.mxu0
        %4379 = vmatprep.subr.bf16.mxu0 0
        %4380 = vmatpush1.bf16.msra.mxu0 %v4290
        %4381 = vmatprep.subr.bf16.mxu0 0
        %4382 = vmatpush1.bf16.msra.mxu0 %v4291
        %4383 = vmatprep.subr.bf16.mxu0 0
        %4384 = vmatpush1.bf16.msra.mxu0 %v4292
        %4385 = vmatprep.subr.bf16.mxu0 0
        %4386 = vmatpush1.bf16.msra.mxu0 %v4293
        %4387 = vmatprep.subr.bf16.mxu0 0
        %4388 = vmatpush1.bf16.msra.mxu0 %v4294
        %4389 = vmatprep.subr.bf16.mxu0 0
        %4390 = vmatpush1.bf16.msra.mxu0 %v4295
        %4391 = vmatprep.subr.bf16.mxu0 0
        %4392 = vmatpush1.bf16.msra.mxu0 %v4296
        %4393 = vmatprep.subr.bf16.mxu0 0
        %4394 = vmatpush1.bf16.msra.mxu0 %v4297
        %4395 = vmatprep.subr.bf16.mxu0 0
        %4396 = vmatpush1.bf16.msra.mxu0 %v4298
        %4397 = vmatprep.subr.bf16.mxu0 0
        %4398 = vmatpush1.bf16.msra.mxu0 %v4299
        %4399 = vmatprep.subr.bf16.mxu0 0
        %4400 = vmatpush1.bf16.msra.mxu0 %v4300
        %4401 = vmatprep.subr.bf16.mxu0 0
        %4402 = vmatpush1.bf16.msra.mxu0 %v4301
        %4403 = vmatprep.subr.bf16.mxu0 0
        %4404 = vmatpush1.bf16.msra.mxu0 %v4302
        %4405 = vmatprep.subr.bf16.mxu0 0
        %4406 = vmatpush1.bf16.msra.mxu0 %v4303
        %4407 = vmatprep.subr.bf16.mxu0 0
        %4408 = vmatpush1.bf16.msra.mxu0 %v4304
        %4409 = vmatprep.subr.bf16.mxu0 0
        %4410 = vmatpush1.bf16.msra.mxu0 %v4305
        %4411 = vmatprep.mubr.bf16.mxu0 %v4145
        %4412 = vmatmul.mubr.bf16.gmra.mrb[0].mxu0 %v4144
        %v4413 = vpop.f32.mrb[0].mxu0
        %v4414 = vadd.f32 %v4373, %v4413
        %v4415 = vpop.f32.mrb[0].mxu0
        %v4416 = vpop.f32.mrb[0].mxu0
        %v4417 = vadd.f32 %v4376, %v4416
        %v4418 = vpop.f32.mrb[0].mxu0
        %4419 = vdwg.mxu0
        %v4420 = vadd.f32 %v3768, %v4414
        %v4421 = vadd.f32 %v3769, %v4417
        %v4422 = vlaneseq
        %v4423 = vshrl.u32 %v4422, 7
        %v4424 = vsub.s32 0, %v4423
        %v4425 = vrot.slane %v561, %v4424
        %v4426 = vadd.f32 %v4420, %v4425
        %v4427 = vadd.f32 %v4421, %v4425
        %v4428 = vadd.f32 %v1815, %v4426
        %v4429 = vadd.f32 %v1816, %v4427
        %4430 = vadd.xlane.f32.xlu0 %v4428
        %v4431 = vpop.xlane.xlu0 %4430
        %4432 = vadd.xlane.f32.xlu0 %v4429
        %v4433 = vpop.xlane.xlu0 %4432
        %v4434 = vmul.f32 %v4431, 0.01
        %v4435 = vmul.f32 %v4433, 0.01
        %v4436 = vsub.f32 %v4428, %v4434
        %v4437 = vsub.f32 %v4429, %v4435
        %v4438 = vmul.f32 %v4436, %v540
        %v4439 = vmul.f32 %v4437, %v540
        %v4440 = vmul.f32 %v4438, %v4438
        %v4441 = vmul.f32 %v4439, %v4439
        %4442 = vadd.xlane.f32.xlu0 %v4440
        %v4443 = vpop.xlane.xlu0 %4442
        %4444 = vadd.xlane.f32.xlu0 %v4441
        %v4445 = vpop.xlane.xlu0 %4444
        %v4446 = vmul.f32 %v4443, 0.01
        %v4447 = vmul.f32 %v4445, 0.01
        %v4448 = vadd.f32 %v4446, 1e-05
        %v4449 = vadd.f32 %v4447, 1e-05
        %v4450 = vrsqrt.pop %v4448
        %v4451 = vrsqrt.pop %v4449
        %v4452 = vmul.f32 %v4438, %v4450
        %v4453 = vmul.f32 %v4439, %v4451
        %v4454 = vlaneseq
        %v4455 = vshrl.u32 %v4454, 7
        %v4456 = vsub.s32 6, %v4455
        %v4457 = vrot.slane %v560, %v4456
        %v4458 = vmul.f32 %v4452, %v4457
        %v4459 = vmul.f32 %v4453, %v4457
        %v4460 = vlaneseq
        %v4461 = vshrl.u32 %v4460, 7
        %v4462 = vsub.s32 7, %v4461
        %v4463 = vrot.slane %v560, %v4462
        %v4464 = vadd.f32 %v4458, %v4463
        %v4465 = vadd.f32 %v4459, %v4463
        %4466 = vst [vmem:[#allocation2] sm:$0xff] %v4464
        %4467 = vst [vmem:[#allocation2 + $0x8] sm:$0xff] %v4465
        %p4468 = scmp.eq.s32.totalorder %s31, 1
        // Predicated region
        $region85: #{model_forward.1} parent=59 // pred_check
          %p4469 = pneg %p4468
        $region86: #{model_forward.1} parent=59 // pred_check_branch
          %4471 = sbr.rel (%p4469) target = $region88
        $region87: #{model_forward.1} parent=59 // pred_region
          %v4472 = vld [vmem:[#allocation2] sm:$0x1]
          %v4473 = vld [vmem:[%s9] sm:$0x7]
          %v4474 = vpack.c.bf16 %v4472, %v4472
          %v4475 = vld [vmem:[#allocation11] sm:$0xf]
          %v4476 = vld [vmem:[#allocation11 + $0x4] sm:$0xf]
          %v4477 = vld [vmem:[#allocation11 + $0x8] sm:$0xf]
          %v4478 = vld [vmem:[#allocation11 + $0xc] sm:$0xf]
          %v4479 = vld [vmem:[#allocation11 + $0x10] sm:$0xf]
          %v4480 = vld [vmem:[#allocation11 + $0x14] sm:$0xf]
          %v4481 = vld [vmem:[#allocation11 + $0x18] sm:$0xf]
          %v4482 = vld [vmem:[#allocation11 + $0x1c] sm:$0xf]
          %v4483 = vld [vmem:[#allocation11 + $0x20] sm:$0xf]
          %v4484 = vld [vmem:[#allocation11 + $0x24] sm:$0xf]
          %v4485 = vld [vmem:[#allocation11 + $0x28] sm:$0xf]
          %v4486 = vld [vmem:[#allocation11 + $0x2c] sm:$0xf]
          %v4487 = vld [vmem:[#allocation11 + $0x30] sm:$0xf]
          %v4488 = vld [vmem:[#allocation11 + $0x34] sm:$0xf]
          %v4489 = vld [vmem:[#allocation11 + $0x38] sm:$0xf]
          %v4490 = vld [vmem:[#allocation11 + $0x3c] sm:$0xf]
          %v4507 = vunpack.c.l.b16 %v4475
          %v4508 = vunpack.c.l.b16 %v4476
          %v4509 = vunpack.c.l.b16 %v4477
          %v4510 = vunpack.c.l.b16 %v4478
          %v4511 = vunpack.c.l.b16 %v4479
          %v4512 = vunpack.c.l.b16 %v4480
          %v4513 = vunpack.c.l.b16 %v4481
          %v4514 = vunpack.c.l.b16 %v4482
          %v4515 = vunpack.c.l.b16 %v4483
          %v4516 = vunpack.c.l.b16 %v4484
          %v4517 = vunpack.c.l.b16 %v4485
          %v4518 = vunpack.c.l.b16 %v4486
          %v4519 = vunpack.c.l.b16 %v4487
          %v4520 = vunpack.c.l.b16 %v4488
          %v4521 = vunpack.c.l.b16 %v4489
          %v4522 = vunpack.c.l.b16 %v4490
          %v4523 = vpack.c.b16 %v4508, %v4507
          %v4524 = vpack.c.b16 %v4510, %v4509
          %v4525 = vpack.c.b16 %v4512, %v4511
          %v4526 = vpack.c.b16 %v4514, %v4513
          %v4527 = vpack.c.b16 %v4516, %v4515
          %v4528 = vpack.c.b16 %v4518, %v4517
          %v4529 = vpack.c.b16 %v4520, %v4519
          %v4530 = vpack.c.b16 %v4522, %v4521
          %4539 = vmatprep.subr.bf16.mxu0 0
          %4540 = vmatpush1.bf16.msra.mxu0 %v4523
          %4541 = vmatprep.subr.bf16.mxu0 0
          %4542 = vmatpush1.bf16.msra.mxu0 %v4524
          %4543 = vmatprep.subr.bf16.mxu0 0
          %4544 = vmatpush1.bf16.msra.mxu0 %v4525
          %4545 = vmatprep.subr.bf16.mxu0 0
          %4546 = vmatpush1.bf16.msra.mxu0 %v4526
          %4547 = vmatprep.subr.bf16.mxu0 0
          %4548 = vmatpush1.bf16.msra.mxu0 %v4527
          %4549 = vmatprep.subr.bf16.mxu0 0
          %4550 = vmatpush1.bf16.msra.mxu0 %v4528
          %4551 = vmatprep.subr.bf16.mxu0 0
          %4552 = vmatpush1.bf16.msra.mxu0 %v4529
          %4553 = vmatprep.subr.bf16.mxu0 0
          %4554 = vmatpush1.bf16.msra.mxu0 %v4530
          %4555 = vmatprep.subr.bf16.mxu0 0
          %4556 = vmatpush1.bf16.msra.mxu0 0
          %4557 = vmatprep.subr.bf16.mxu0 0
          %4558 = vmatpush1.bf16.msra.mxu0 0
          %4559 = vmatprep.subr.bf16.mxu0 0
          %4560 = vmatpush1.bf16.msra.mxu0 0
          %4561 = vmatprep.subr.bf16.mxu0 0
          %4562 = vmatpush1.bf16.msra.mxu0 0
          %4563 = vmatprep.subr.bf16.mxu0 0
          %4564 = vmatpush1.bf16.msra.mxu0 0
          %4565 = vmatprep.subr.bf16.mxu0 0
          %4566 = vmatpush1.bf16.msra.mxu0 0
          %4567 = vmatprep.subr.bf16.mxu0 0
          %4568 = vmatpush1.bf16.msra.mxu0 0
          %4569 = vmatprep.subr.bf16.mxu0 0
          %4570 = vmatpush1.bf16.msra.mxu0 0
          %4571 = vmatprep.mubr.bf16.mxu0 0
          %4572 = vmatmul.mubr.bf16.gmra.mrb[0].mxu0 %v4474
          %v4573 = vpop.f32.mrb[0].mxu0
          %v4574 = vadd.f32 %v4473, %v4573
          %v4575 = vpop.f32.mrb[0].mxu0
          %v4576 = vpop.f32.mrb[0].mxu0
          %v4577 = vpop.f32.mrb[0].mxu0
          %4578 = vdwg.mxu0
          %vm4579 = vcmp.ge.f32.partialorder %v4574, 0.0
          %v4580 = vmul.f32 %v4574, 0.01
          %v4581 = vsel %vm4579, %v4574, %v4580
          %v4583 = vrot.slane %v4473, 1
          %v4585 = vmul.f32 %v4581, %v4583
          %vm4586 = vcmask 1040384
          %v4587 = vsel %vm4586, %v4585, 0.0
          %4588 = vadd.xlane.f32.xlu0 %v4587
          %v4589 = vpop.xlane.xlu0 %4588
          %v4590 = vrot.slane %v4473, 2
          %v4592 = vadd.f32 %v4589, %v4590
          %v4593 = vsub.f32 0.0, %v4592
          %v4594 = vmul.f32 %v4593, 1.442695
          %v4595 = vpow.pop %v4594
          %v4596 = vadd.f32 %v4595, 1.0
          %v4597 = vrcp.pop %v4596
          %v4598 = vmul.f32 1.0, %v4597
          %vm4599 = vcmask 0
          %4600 = vst.msk [vmem:[#allocation12] sm:$0x1] %vm4599, %v4598
        $region88: #{model_forward.1} parent=59 // pred_fallthru
          _
        // Predicated region
        $region89: #{model_forward.1} parent=59 // pred_check
          %p4601 = pneg %p284
        $region90: #{model_forward.1} parent=59 // pred_check_branch
          %4603 = sbr.rel (%p4601) target = $region92
        $region91: #{model_forward.1} parent=59 // pred_region
          %s4605 = ssub.s32 16, 16
          %4606 = vsyncadd [#allocation5], %s4605
          %s4608 = sshll.u32 [#allocation12], 4
          %s4609 = int_to_ptr.vmem [resolvable:$true] %s4608
          %4611 = dma.vmem_to_hbm [thread:$0]  %s4609, 16, %s10, [#allocation5]
        $region92: #{model_forward.1} parent=59 // pred_fallthru
          _
        // Predicated region
        $region93: #{model_forward.1} parent=59 // pred_check
          %p4612 = pneg %p284
        $region94: #{model_forward.1} parent=59 // pred_check_branch
          %4614 = sbr.rel (%p4612) target = $region96
        $region95: #{model_forward.1} parent=59 // pred_region
          %4615 = dma.done [#allocation5], 16
        $region96: #{model_forward.1} parent=59 // pred_fallthru
          _
      $region60: #{model_forward.1} parent=5 // pred_fallthru
        _
      %p4616 = scmp.le.s32.totalorder 2, %s26
      // Predicated region
      $region97: #{model_forward.1} parent=5 // pred_check
        %p4617 = pneg %p4616
      $region98: #{model_forward.1} parent=5 // pred_check_branch
        %4619 = sbr.rel (%p4617) target = $region100
      $region99: #{model_forward.1} parent=5 // pred_region
        %s4620 = ssub.s32 %s26, 2
      $region100: #{model_forward.1} parent=5 // pred_fallthru
        _
    $region6: #{model_forward.1} parent=1 // loop_footer
      %s30 = sadd.s32 1, %s26
    $region7: #{model_forward.1} parent=1 // loop_footer_branch
      %25 = sbr.rel target = $region3
    $region8: #{model_forward.1} parent=1 // loop_exit
      _
    %4621 = vsyncpa [#allocation4], 1
    %s4622 = scalar_lea.sflag [#allocation4], 1
    %4623 = vsyncpa %s4622, 1
    %4624 = vsyncpa [#allocation7], 1
    %s4625 = scalar_lea.sflag [#allocation7], 1
    %4626 = vsyncpa %s4625, 1
    %4627 = vsyncpa [#allocation10], 1
    %s4628 = scalar_lea.sflag [#allocation10], 1
    %4629 = vsyncpa %s4628, 1
    %4630 = vsyncpa [#allocation5], 1
    %s4631 = scalar_lea.sflag [#allocation5], 1
    %4632 = vsyncpa %s4631, 1

</llo_original>
